<compile_context>
chip_gen: v6e
topology: v6e:2x2x1
jax: 0.10.0
libtpu: 0.0.40
codegen_flags: <defaults>
</compile_context>

<pallas_src>
import functools

import numpy as np
import jax
import jax.numpy as jnp
from jax import lax
from jax.experimental import pallas as pl
from jax.experimental.pallas import tpu as pltpu


def _round_up(x, m):
    return (x + m - 1) // m * m


def _conv_out(n, k, s, p):
    return (n + 2 * p - k) // s + 1


# ---------------------- fused matmul Pallas kernels ------------------------- #

def _mm_kernel_single(*refs, relu_out, has_bias, has_res):
    """Single K step: out = [relu](a @ b + bias) (+ res), written directly
    (no accumulator scratch, no zero-init, no acc->o copy)."""
    a_ref, b_ref = refs[0], refs[1]
    idx = 2
    bias_ref = None
    res_ref = None
    if has_bias:
        bias_ref = refs[idx]
        idx += 1
    if has_res:
        res_ref = refs[idx]
        idx += 1
    o_ref = refs[idx]

    out = jnp.dot(a_ref[...], b_ref[...], preferred_element_type=jnp.float32)
    if has_bias:
        out = out + bias_ref[...]
    if relu_out:
        out = jnp.maximum(out, 0.0)
    if has_res:
        out = out + res_ref[...]
    o_ref[...] = out.astype(o_ref.dtype)


def _mm_kernel_kloop(*refs, relu_out, has_bias, has_res):
    """K-loop variant (only used when Kp > tk_max, not hit at demo shapes)."""
    a_ref, b_ref = refs[0], refs[1]
    idx = 2
    bias_ref = None
    res_ref = None
    if has_bias:
        bias_ref = refs[idx]
        idx += 1
    if has_res:
        res_ref = refs[idx]
        idx += 1
    o_ref = refs[idx]
    acc_ref = refs[idx + 1]

    k = pl.program_id(1)

    @pl.when(k == 0)
    def _():
        acc_ref[...] = jnp.zeros_like(acc_ref)

    acc_ref[...] += jnp.dot(a_ref[...], b_ref[...],
                            preferred_element_type=jnp.float32)

    @pl.when(k == pl.num_programs(1) - 1)
    def _():
        out = acc_ref[...]
        if has_bias:
            out = out + bias_ref[...]
        if relu_out:
            out = jnp.maximum(out, 0.0)
        if has_res:
            out = out + res_ref[...]
        o_ref[...] = out.astype(o_ref.dtype)


def fused_matmul(a, b_p, bias_p=None, residual=None, *, n_valid,
                 relu_out=False, out_dtype=jnp.float32,
                 tm_max=256, tk_max=4096):
    """out[:M, :n_valid] = [relu](a @ b + bias) (+ residual).

    a:      (M, K) activations (cast to bf16 + padded here).
    b_p:    (Kp, Np) PRE-PADDED bf16 weight matrix (Kp, Np multiples of 128).
    bias_p: (1, Np) PRE-PADDED f32 bias or None.
    residual: (M, n_valid) or None (fallback path only).
    """
    M, K = a.shape
    Kp, Np = b_p.shape
    assert Kp >= K and Kp % 128 == 0 and Np % 128 == 0, (K, Kp, Np)

    # M tile: minimal padded-row waste given <= tm_max rows per tile
    # (e.g. M=882 -> nm=4, tm=224, Mp=896 instead of 1024).
    nm = max(1, (M + tm_max - 1) // tm_max)
    tm = _round_up((M + nm - 1) // nm, 8)
    Mp = nm * tm

    a_p = jnp.pad(a.astype(jnp.bfloat16), ((0, Mp - M), (0, Kp - K)))

    has_bias = bias_p is not None
    has_res = residual is not None
    if has_res:
        res_p = jnp.pad(residual.astype(jnp.float32),
                        ((0, Mp - M), (0, Np - n_valid)))

    if Kp <= tk_max:
        arrays = [a_p, b_p]
        in_specs = [pl.BlockSpec((tm, Kp), lambda i: (i, 0)),
                    pl.BlockSpec((Kp, Np), lambda i: (0, 0))]
        if has_bias:
            arrays.append(bias_p)
            in_specs.append(pl.BlockSpec((1, Np), lambda i: (0, 0)))
        if has_res:
            arrays.append(res_p)
            in_specs.append(pl.BlockSpec((tm, Np), lambda i: (i, 0)))
        kernel = functools.partial(_mm_kernel_single, relu_out=relu_out,
                                   has_bias=has_bias, has_res=has_res)
        out = pl.pallas_call(
            kernel,
            out_shape=jax.ShapeDtypeStruct((Mp, Np), out_dtype),
            grid=(nm,),
            in_specs=in_specs,
            out_specs=pl.BlockSpec((tm, Np), lambda i: (i, 0)),
            compiler_params=pltpu.CompilerParams(
                dimension_semantics=("parallel",)),
        )(*arrays)
    else:
        nk = (Kp + tk_max - 1) // tk_max
        tk = _round_up((Kp + nk - 1) // nk, 128)
        Kpp = nk * tk
        if Kpp != Kp:
            a_p = jnp.pad(a_p, ((0, 0), (0, Kpp - Kp)))
            b_p = jnp.pad(b_p, ((0, Kpp - Kp), (0, 0)))
        arrays = [a_p, b_p]
        in_specs = [pl.BlockSpec((tm, tk), lambda i, k: (i, k)),
                    pl.BlockSpec((tk, Np), lambda i, k: (k, 0))]
        if has_bias:
            arrays.append(bias_p)
            in_specs.append(pl.BlockSpec((1, Np), lambda i, k: (0, 0)))
        if has_res:
            arrays.append(res_p)
            in_specs.append(pl.BlockSpec((tm, Np), lambda i, k: (i, 0)))
        kernel = functools.partial(_mm_kernel_kloop, relu_out=relu_out,
                                   has_bias=has_bias, has_res=has_res)
        out = pl.pallas_call(
            kernel,
            out_shape=jax.ShapeDtypeStruct((Mp, Np), out_dtype),
            grid=(nm, nk),
            in_specs=in_specs,
            out_specs=pl.BlockSpec((tm, Np), lambda i, k: (i, 0)),
            scratch_shapes=[pltpu.VMEM((tm, Np), jnp.float32)],
            compiler_params=pltpu.CompilerParams(
                dimension_semantics=("parallel", "arbitrary")),
        )(*arrays)
    return out[:M, :n_valid]


# ------------------------------ patch / conv glue --------------------------- #

def _extract_patches(x_nhwc, kh, kw, stride, pad):
    """NHWC -> (B, Ho, Wo, Cin*kh*kw) bf16 patches via ONE XLA grouped conv.
    Feature order is (cin, di, dj) (input channel slowest-varying)."""
    return lax.conv_general_dilated_patches(
        x_nhwc.astype(jnp.bfloat16), (kh, kw), stride,
        [(pad[0], pad[0]), (pad[1], pad[1])],
        dimension_numbers=("NHWC", "HWIO", "NHWC"))


def conv2d_pallas(x_nhwc, w_mat_p, bias_p, *, kh, kw, stride, pad, cout,
                  relu_out=False, residual=None, out_dtype=jnp.float32):
    """2-D conv (PyTorch semantics) as patches + one fused Pallas matmul.
    w_mat_p is the pre-padded (Kp, Np) bf16 matrix with rows ordered
    (cin, di, dj) to match _extract_patches."""
    B = x_nhwc.shape[0]
    patches = _extract_patches(x_nhwc, kh, kw, stride, pad)
    _, Ho, Wo, K = patches.shape
    a = patches.reshape(B * Ho * Wo, K)
    res = None if residual is None else residual.reshape(B * Ho * Wo, cout)
    out = fused_matmul(a, w_mat_p, bias_p, residual=res, n_valid=cout,
                       relu_out=relu_out, out_dtype=out_dtype)
    return out.reshape(B, Ho, Wo, cout)


def conv2d_oihw(x, w_oihw, bias, stride, pad, *, relu_out=False, residual=None):
    """Fallback conv (only used when the fused tail is gated off)."""
    cout, cin, kh, kw = w_oihw.shape
    wm = jnp.transpose(w_oihw, (1, 2, 3, 0)).reshape(cin * kh * kw, cout)
    kp = _round_up(wm.shape[0], 128)
    npd = _round_up(cout, 128)
    wm_p = jnp.pad(wm, ((0, kp - wm.shape[0]), (0, npd - cout))
                   ).astype(jnp.bfloat16)
    b_p = None
    if bias is not None:
        b_p = jnp.pad(bias.astype(jnp.float32).reshape(1, -1),
                      ((0, 0), (0, npd - cout)))
    return conv2d_pallas(x, wm_p, b_p, kh=kh, kw=kw, stride=stride, pad=pad,
                         cout=cout, relu_out=relu_out, residual=residual)


# ---- fused tail kernel: conv_2 + conv_3 + residual stack + pre-VQ conv ----- #

def _tail_kernel(x_ref, w2_ref, b2_ref, w3_ref, b3_ref, *refs, num_layers):
    # refs: (wa_l, wb_l) * num_layers, wq, bq, o_ref
    layer_refs = refs[:2 * num_layers]
    wq_ref = refs[2 * num_layers]
    bq_ref = refs[2 * num_layers + 1]
    o_ref = refs[2 * num_layers + 2]

    def mm(u_bf16, w_ref):
        return jnp.dot(u_bf16, w_ref[...], preferred_element_type=jnp.float32)

    # conv_2 (strided conv as structured matmul) + bias + ReLU.
    x = mm(x_ref[...], w2_ref) + b2_ref[...]
    # conv_3 (3x3 "same" as structured matmul) + bias.  Trunk x stays f32.
    x = mm(jnp.maximum(x, 0.0).astype(jnp.bfloat16), w3_ref) + b3_ref[...]
    # Residual stack: cast the trunk once per layer, keep h in bf16 between
    # the two matmuls; only the f32 trunk accumulates.
    for l in range(num_layers):
        wa_ref = layer_refs[2 * l]
        wb_ref = layer_refs[2 * l + 1]
        h = jnp.maximum(x, 0.0).astype(jnp.bfloat16)
        h = jnp.maximum(mm(h, wa_ref), 0.0).astype(jnp.bfloat16)
        x = x + mm(h, wb_ref)
    # ResidualStack final ReLU + pre-VQ 1x1 conv.
    x = jnp.maximum(x, 0.0).astype(jnp.bfloat16)
    o_ref[...] = (mm(x, wq_ref) + bq_ref[...]).astype(o_ref.dtype)


def tail_fused(x1f, tail, n_valid):
    """x1f: (B, H1*W1*nh2) bf16 flattened conv_1 output ((h, w, c) order).
    Runs conv_2 .. pre-VQ in ONE Pallas kernel; activations stay in VMEM."""
    B, K1 = x1f.shape
    Kp = tail["w2_s"].shape[0]
    Np = tail["wq_s"].shape[1]
    Mp = _round_up(B, 8)
    x_p = jnp.pad(x1f.astype(jnp.bfloat16), ((0, Mp - B), (0, Kp - K1)))

    arrays = [x_p, tail["w2_s"], tail["b2_e"], tail["w3_s"], tail["b3_e"]]
    for (wa, wb) in tail["layers"]:
        arrays.extend((wa, wb))
    arrays.extend((tail["wq_s"], tail["bq_e"]))

    in_specs = [pl.BlockSpec(a.shape, lambda i: (0, 0)) for a in arrays]
    kernel = functools.partial(_tail_kernel, num_layers=len(tail["layers"]))
    out = pl.pallas_call(
        kernel,
        out_shape=jax.ShapeDtypeStruct((Mp, Np), jnp.float32),
        grid=(1,),
        in_specs=in_specs,
        out_specs=pl.BlockSpec((Mp, Np), lambda i: (0, 0)),
        compiler_params=pltpu.CompilerParams(
            dimension_semantics=("arbitrary",)),
    )(*arrays)
    return out[:B, :n_valid]


# ----------------- weight preprocessing (done ONCE, outside jit) ------------ #

def _conv_struct(w_oihw, hin, win, stride, pad):
    """Conv2d (OIHW weights, PyTorch semantics) on a (hin, win) grid lowered
    to a (hin*win*Cin, hout*wout*Cout) matmul matrix acting on activations
    flattened position-major (h, w, c)."""
    w = np.asarray(w_oihw, np.float32)
    cout, cin, kh, kw = w.shape
    sh, sw = stride
    ph, pw = pad
    hout = (hin + 2 * ph - kh) // sh + 1
    wout = (win + 2 * pw - kw) // sw + 1
    w_hwio = np.transpose(w, (2, 3, 1, 0))                # (kh, kw, cin, cout)
    ws = np.zeros((hin * win, cin, hout * wout, cout), np.float32)
    for i in range(hout):
        for j in range(wout):
            po = i * wout + j
            for di in range(kh):
                for dj in range(kw):
                    u = i * sh - ph + di
                    v = j * sw - pw + dj
                    if 0 <= u < hin and 0 <= v < win:
                        ws[u * win + v, :, po, :] = w_hwio[di, dj]
    return ws.reshape(hin * win * cin, hout * wout * cout)


def _pad2_bf16(w):
    r, c = w.shape
    wp = np.zeros((_round_up(r, 128), _round_up(c, 128)), np.float32)
    wp[:r, :c] = np.asarray(w, np.float32)
    return jnp.asarray(wp, dtype=jnp.bfloat16)


def _padb_f32(b):
    b = np.asarray(b, np.float32)
    n = b.shape[0]
    bp = np.zeros((1, _round_up(n, 128)), np.float32)
    bp[0, :n] = b
    return jnp.asarray(bp)


def _im2col_weight_padded(w_oihw):
    """(Cout, Cin, kh, kw) -> pre-padded bf16 (Kp, Np) matrix; row order
    (cin, di, dj) matches lax.conv_general_dilated_patches."""
    w = np.asarray(w_oihw, np.float32)
    cout, cin, kh, kw = w.shape
    wm = np.transpose(w, (1, 2, 3, 0)).reshape(cin * kh * kw, cout)
    return _pad2_bf16(wm)


def prepare_encoder_params(p, input_hw, *, max_tail_positions=9,
                           max_tail_weight_bytes=5 << 20):
    """All padding / bf16 casting / structured-matrix building happens here,
    once, outside jit.  The fused tail is gated on post-conv_2 spatial extent
    (P <= 9) and on total structured-weight bytes so it fits the scoped VMEM
    of every TPU generation (v5e 16 MiB, v6e 32 MiB, v7x 32 MiB default)."""
    H, W = input_hw
    H1, W1 = _conv_out(H, 10, 8, 1), _conv_out(W, 11, 9, 1)
    H2, W2 = _conv_out(H1, 12, 10, 1), _conv_out(W1, 12, 10, 1)
    assert H1 >= 1 and W1 >= 1 and H2 >= 1 and W2 >= 1, \
        "input too small for the strided convs"
    P = H2 * W2

    prepared = {
        "w1_mat": _im2col_weight_padded(p["w1"]),
        "b1": _padb_f32(p["b1"]),
    }

    # Structured matrices for the fused tail.
    w2_s = _conv_struct(p["w2"], H1, W1, (10, 10), (1, 1))
    w3_s = _conv_struct(p["w3"], H2, W2, (1, 1), (1, 1))
    layers = [(_conv_struct(wr1, H2, W2, (1, 1), (1, 1)),
               _conv_struct(wr2, H2, W2, (1, 1), (0, 0)))
              for (wr1, wr2) in p["res"]]
    wq_s = _conv_struct(p["w_prevq"], H2, W2, (1, 1), (0, 0))
    mats = [w2_s, w3_s, wq_s] + [m for lw in layers for m in lw]
    tail_bytes = sum(_round_up(m.shape[0], 128) * _round_up(m.shape[1], 128) * 2
                     for m in mats)

    if P <= max_tail_positions and tail_bytes <= max_tail_weight_bytes:
        prepared["tail"] = {
            "w2_s": _pad2_bf16(w2_s),
            "b2_e": _padb_f32(np.tile(np.asarray(p["b2"], np.float32), P)),
            "w3_s": _pad2_bf16(w3_s),
            "b3_e": _padb_f32(np.tile(np.asarray(p["b3"], np.float32), P)),
            "layers": [(_pad2_bf16(wa), _pad2_bf16(wb)) for (wa, wb) in layers],
            "wq_s": _pad2_bf16(wq_s),
            "bq_e": _padb_f32(np.tile(np.asarray(p["b_prevq"], np.float32), P)),
        }
    else:
        # TODO(synk): large-spatial / large-channel tail stays un-fused
        # (per-conv Pallas matmuls); residual-weight streaming not implemented.
        prepared["tail_raw"] = {
            "w2": p["w2"], "b2": p["b2"],
            "w3": p["w3"], "b3": p["b3"],
            "res": [(wr1, wr2) for (wr1, wr2) in p["res"]],
            "wq": p["w_prevq"], "bq": p["b_prevq"],
        }
    return prepared


# --------------------------- Encoder definition ----------------------------- #

def init_encoder_params(key, in_channels, num_hiddens, num_residual_layers,
                        num_residual_hiddens, embedding_dim):
    def conv_w(k, cout, cin, kh, kw):
        fan_in = cin * kh * kw
        return (jax.random.normal(k, (cout, cin, kh, kw), jnp.float32)
                / jnp.sqrt(float(fan_in)))

    keys = jax.random.split(key, 8 + 2 * num_residual_layers)
    nh2 = num_hiddens // 2
    p = {}
    p["w1"] = conv_w(keys[0], nh2, in_channels, 10, 11)
    p["b1"] = 0.01 * jax.random.normal(keys[1], (nh2,), jnp.float32)
    p["w2"] = conv_w(keys[2], num_hiddens, nh2, 12, 12)
    p["b2"] = 0.01 * jax.random.normal(keys[3], (num_hiddens,), jnp.float32)
    p["w3"] = conv_w(keys[4], num_hiddens, num_hiddens, 3, 3)
    p["b3"] = 0.01 * jax.random.normal(keys[5], (num_hiddens,), jnp.float32)
    p["w_prevq"] = conv_w(keys[6], embedding_dim, num_hiddens, 1, 1)
    p["b_prevq"] = 0.01 * jax.random.normal(keys[7], (embedding_dim,),
                                            jnp.float32)
    p["res"] = []
    for l in range(num_residual_layers):
        wr1 = conv_w(keys[8 + 2 * l], num_residual_hiddens, num_hiddens, 3, 3)
        wr2 = conv_w(keys[8 + 2 * l + 1], num_hiddens, num_residual_hiddens, 1, 1)
        p["res"].append((wr1, wr2))          # bias=False convs
    return p


@functools.partial(jax.jit, static_argnames=("nh2", "emb"))
def encoder_forward(x_nchw, prepared, *, nh2, emb):
    x = jnp.transpose(x_nchw, (0, 2, 3, 1))                 # NCHW -> NHWC

    # conv_1 (k=(10,11), s=(8,9), p=1) + ReLU: one Pallas matmul, bf16 output.
    x = conv2d_pallas(x, prepared["w1_mat"], prepared["b1"],
                      kh=10, kw=11, stride=(8, 9), pad=(1, 1), cout=nh2,
                      relu_out=True, out_dtype=jnp.bfloat16)
    B, H1, W1, _ = x.shape
    H2 = _conv_out(H1, 12, 10, 1)
    W2 = _conv_out(W1, 12, 10, 1)

    if "tail" in prepared:
        # conv_2 + ReLU + conv_3 + residual stack + final ReLU + pre-VQ conv:
        # ONE Pallas kernel on structured matmul matrices.
        x1f = x.reshape(B, H1 * W1 * nh2)
        out = tail_fused(x1f, prepared["tail"], n_valid=H2 * W2 * emb)
        x = out.reshape(B, H2, W2, emb)
    else:
        # Fallback path (fused tail gated off): per-conv Pallas matmuls.
        t = prepared["tail_raw"]
        x = conv2d_oihw(x, t["w2"], t["b2"], (10, 10), (1, 1), relu_out=True)
        x = conv2d_oihw(x, t["w3"], t["b3"], (1, 1), (1, 1))
        for (wr1, wr2) in t["res"]:
            h = conv2d_oihw(jnp.maximum(x, 0.0), wr1, None, (1, 1), (1, 1),
                            relu_out=True)
            x = conv2d_oihw(h, wr2, None, (1, 1), (0, 0), residual=x)
        x = conv2d_oihw(jnp.maximum(x, 0.0), t["wq"], t["bq"], (1, 1), (0, 0))

    return jnp.transpose(x, (0, 3, 1, 2))                   # NHWC -> NCHW


# ------------------------- pure-JAX fp32 reference -------------------------- #

def encoder_reference(x, p):
    def conv(x, w, b, stride, pad):
        out = jax.lax.conv_general_dilated(
            x, w, window_strides=stride,
            padding=[(pad[0], pad[0]), (pad[1], pad[1])],
            dimension_numbers=("NCHW", "OIHW", "NCHW"))
        if b is not None:
            out = out + b.reshape(1, -1, 1, 1)
        return out

    x = jax.nn.relu(conv(x, p["w1"], p["b1"], (8, 9), (1, 1)))
    x = jax.nn.relu(conv(x, p["w2"], p["b2"], (10, 10), (1, 1)))
    x = conv(x, p["w3"], p["b3"], (1, 1), (1, 1))
    for (wr1, wr2) in p["res"]:
        h = jax.nn.relu(x)
        h = conv(h, wr1, None, (1, 1), (1, 1))
        h = jax.nn.relu(h)
        h = conv(h, wr2, None, (1, 1), (0, 0))
        x = x + h
    x = jax.nn.relu(x)
    return conv(x, p["w_prevq"], p["b_prevq"], (1, 1), (0, 0))


# --------------------------------- main ------------------------------------- #

if __name__ == "__main__":
    # Small config consistent with the module (the large-stride convs need a
    # reasonably big spatial extent to produce a valid 2x2 output).
    B, in_channels, H, W = 2, 3, 168, 189
    num_hiddens = 32
    num_residual_layers = 2
    num_residual_hiddens = 8
    embedding_dim = 16

    key = jax.random.PRNGKey(0)
    k_x, k_p = jax.random.split(key)
    x_nchw = jax.random.normal(k_x, (B, in_channels, H, W), jnp.float32)
    params = init_encoder_params(k_p, in_channels, num_hiddens,
                                 num_residual_layers, num_residual_hiddens,
                                 embedding_dim)
    prepared = prepare_encoder_params(params, (H, W))

    out = encoder_forward(x_nchw, prepared, nh2=num_hiddens // 2,
                          emb=embedding_dim)
    out = jax.block_until_ready(out)

    # Expected shape: (B, embedding_dim, 2, 2) for the chosen input size.
    assert out.shape == (B, embedding_dim, 2, 2), out.shape
    assert bool(jnp.all(jnp.isfinite(out)))

    # Numerical check against an fp32 XLA reference (bf16 MXU inputs => loose tol).
    ref = encoder_reference(x_nchw, params)
    err = float(jnp.max(jnp.abs(out - ref)))
    scale = float(jnp.max(jnp.abs(ref)))
    assert err < 0.1 + 0.05 * scale, (err, scale)

    print("KERNEL_OK")
</pallas_src>

<mosaic_0001>
module attributes {stable_mosaic.version = 11 : i64} {
  func.func @_mm_kernel_single(%arg0: i32, %arg1: memref<224x384xbf16, #tpu.memory_space<vmem>>, %arg2: memref<384x128xbf16, #tpu.memory_space<vmem>>, %arg3: memref<1x128xf32, #tpu.memory_space<vmem>>, %arg4: memref<224x128xbf16, #tpu.memory_space<vmem>>) attributes {dimension_semantics = [#tpu.dimension_semantics<parallel>], iteration_bounds = array<i64: 4>, scalar_prefetch = 0 : i64, scratch_operands = 0 : i64, tpu.core_type = #tpu.core_type<tc>, window_params = [{transform_indices = @transform_0, window_bounds = array<i64: 224, 384>}, {pipeline_mode = #tpu.pipeline_mode<synchronous>, transform_indices = @transform_1, window_bounds = array<i64: 384, 128>}, {pipeline_mode = #tpu.pipeline_mode<synchronous>, transform_indices = @transform_2, window_bounds = array<i64: 1, 128>}, {transform_indices = @transform_3, window_bounds = array<i64: 224, 128>}]} {
    %c0 = arith.constant 0 : index
    %c0_0 = arith.constant 0 : index
    %0 = vector.load %arg1[%c0, %c0_0] : memref<224x384xbf16, #tpu.memory_space<vmem>>, vector<224x384xbf16>
    %c0_1 = arith.constant 0 : index
    %c0_2 = arith.constant 0 : index
    %1 = vector.load %arg2[%c0_1, %c0_2] : memref<384x128xbf16, #tpu.memory_space<vmem>>, vector<384x128xbf16>
    %cst = arith.constant dense<0.000000e+00> : vector<224x128xf32>
    %2 = tpu.matmul %0, %1, %cst {dimension_numbers = #tpu.dot_dimension_numbers<[1], [0], [0], [1], [0, 0, 1, 1], [], []>} : vector<224x384xbf16>, vector<384x128xbf16>, vector<224x128xf32> -> vector<224x128xf32>
    %c0_3 = arith.constant 0 : index
    %c0_4 = arith.constant 0 : index
    %3 = vector.load %arg3[%c0_3, %c0_4] : memref<1x128xf32, #tpu.memory_space<vmem>>, vector<1x128xf32>
    %4 = vector.broadcast %3 : vector<1x128xf32> to vector<224x128xf32>
    %5 = arith.addf %2, %4 : vector<224x128xf32>
    %cst_5 = arith.constant 0.000000e+00 : f32
    %6 = vector.broadcast %cst_5 : f32 to vector<224x128xf32>
    %7 = arith.maximumf %5, %6 : vector<224x128xf32>
    %8 = arith.truncf %7 : vector<224x128xf32> to vector<224x128xbf16>
    %c0_6 = arith.constant 0 : index
    %c0_7 = arith.constant 0 : index
    %9 = vector.load %arg4[%c0_6, %c0_7] : memref<224x128xbf16, #tpu.memory_space<vmem>>, vector<224x128xbf16>
    tpu.vector_store %arg4[%c0_6, %c0_7], %8 {strides = array<i32>} : memref<224x128xbf16, #tpu.memory_space<vmem>>, vector<224x128xbf16>,
    return
  }
  func.func @transform_0(%arg0: i32) -> (i32, i32) {
    %c0_i32 = arith.constant 0 : i32
    %c0_i32_0 = arith.constant 0 : i32
    return %arg0, %c0_i32 : i32, i32
  }
  func.func @transform_1(%arg0: i32) -> (i32, i32) {
    %c0_i32 = arith.constant 0 : i32
    %c0_i32_0 = arith.constant 0 : i32
    %c0_i32_1 = arith.constant 0 : i32
    return %c0_i32, %c0_i32_0 : i32, i32
  }
  func.func @transform_2(%arg0: i32) -> (i32, i32) {
    %c0_i32 = arith.constant 0 : i32
    %c0_i32_0 = arith.constant 0 : i32
    %c0_i32_1 = arith.constant 0 : i32
    return %c0_i32, %c0_i32_0 : i32, i32
  }
  func.func @transform_3(%arg0: i32) -> (i32, i32) {
    %c0_i32 = arith.constant 0 : i32
    %c0_i32_0 = arith.constant 0 : i32
    return %arg0, %c0_i32 : i32, i32
  }
}

module attributes {stable_mosaic.version = 11 : i64} {
  func.func @_tail_kernel(%arg0: i32, %arg1: memref<8x7168xbf16, #tpu.memory_space<vmem>>, %arg2: memref<7168x128xbf16, #tpu.memory_space<vmem>>, %arg3: memref<1x128xf32, #tpu.memory_space<vmem>>, %arg4: memref<128x128xbf16, #tpu.memory_space<vmem>>, %arg5: memref<1x128xf32, #tpu.memory_space<vmem>>, %arg6: memref<128x128xbf16, #tpu.memory_space<vmem>>, %arg7: memref<128x128xbf16, #tpu.memory_space<vmem>>, %arg8: memref<128x128xbf16, #tpu.memory_space<vmem>>, %arg9: memref<128x128xbf16, #tpu.memory_space<vmem>>, %arg10: memref<128x128xbf16, #tpu.memory_space<vmem>>, %arg11: memref<1x128xf32, #tpu.memory_space<vmem>>, %arg12: memref<8x128xf32, #tpu.memory_space<vmem>>) attributes {dimension_semantics = [#tpu.dimension_semantics<arbitrary>], iteration_bounds = array<i64: 1>, scalar_prefetch = 0 : i64, scratch_operands = 0 : i64, tpu.core_type = #tpu.core_type<tc>, window_params = [{pipeline_mode = #tpu.pipeline_mode<synchronous>, transform_indices = @transform_0, window_bounds = array<i64: 8, 7168>}, {pipeline_mode = #tpu.pipeline_mode<synchronous>, transform_indices = @transform_1, window_bounds = array<i64: 7168, 128>}, {pipeline_mode = #tpu.pipeline_mode<synchronous>, transform_indices = @transform_2, window_bounds = array<i64: 1, 128>}, {pipeline_mode = #tpu.pipeline_mode<synchronous>, transform_indices = @transform_3, window_bounds = array<i64: 128, 128>}, {pipeline_mode = #tpu.pipeline_mode<synchronous>, transform_indices = @transform_4, window_bounds = array<i64: 1, 128>}, {pipeline_mode = #tpu.pipeline_mode<synchronous>, transform_indices = @transform_5, window_bounds = array<i64: 128, 128>}, {pipeline_mode = #tpu.pipeline_mode<synchronous>, transform_indices = @transform_6, window_bounds = array<i64: 128, 128>}, {pipeline_mode = #tpu.pipeline_mode<synchronous>, transform_indices = @transform_7, window_bounds = array<i64: 128, 128>}, {pipeline_mode = #tpu.pipeline_mode<synchronous>, transform_indices = @transform_8, window_bounds = array<i64: 128, 128>}, {pipeline_mode = #tpu.pipeline_mode<synchronous>, transform_indices = @transform_9, window_bounds = array<i64: 128, 128>}, {pipeline_mode = #tpu.pipeline_mode<synchronous>, transform_indices = @transform_10, window_bounds = array<i64: 1, 128>}, {pipeline_mode = #tpu.pipeline_mode<synchronous>, transform_indices = @transform_11, window_bounds = array<i64: 8, 128>}]} {
    %c0 = arith.constant 0 : index
    %c0_0 = arith.constant 0 : index
    %0 = vector.load %arg1[%c0, %c0_0] : memref<8x7168xbf16, #tpu.memory_space<vmem>>, vector<8x7168xbf16>
    %c0_1 = arith.constant 0 : index
    %c0_2 = arith.constant 0 : index
    %1 = vector.load %arg2[%c0_1, %c0_2] : memref<7168x128xbf16, #tpu.memory_space<vmem>>, vector<7168x128xbf16>
    %cst = arith.constant dense<0.000000e+00> : vector<8x128xf32>
    %2 = tpu.matmul %0, %1, %cst {dimension_numbers = #tpu.dot_dimension_numbers<[1], [0], [0], [1], [0, 0, 1, 1], [], []>} : vector<8x7168xbf16>, vector<7168x128xbf16>, vector<8x128xf32> -> vector<8x128xf32>
    %c0_3 = arith.constant 0 : index
    %c0_4 = arith.constant 0 : index
    %3 = vector.load %arg3[%c0_3, %c0_4] : memref<1x128xf32, #tpu.memory_space<vmem>>, vector<1x128xf32>
    %4 = vector.broadcast %3 : vector<1x128xf32> to vector<8x128xf32>
    %5 = arith.addf %2, %4 : vector<8x128xf32>
    %cst_5 = arith.constant 0.000000e+00 : f32
    %6 = vector.broadcast %cst_5 : f32 to vector<8x128xf32>
    %7 = arith.maximumf %5, %6 : vector<8x128xf32>
    %8 = arith.truncf %7 : vector<8x128xf32> to vector<8x128xbf16>
    %c0_6 = arith.constant 0 : index
    %c0_7 = arith.constant 0 : index
    %9 = vector.load %arg4[%c0_6, %c0_7] : memref<128x128xbf16, #tpu.memory_space<vmem>>, vector<128x128xbf16>
    %cst_8 = arith.constant dense<0.000000e+00> : vector<8x128xf32>
    %10 = tpu.matmul %8, %9, %cst_8 {dimension_numbers = #tpu.dot_dimension_numbers<[1], [0], [0], [1], [0, 0, 1, 1], [], []>} : vector<8x128xbf16>, vector<128x128xbf16>, vector<8x128xf32> -> vector<8x128xf32>
    %c0_9 = arith.constant 0 : index
    %c0_10 = arith.constant 0 : index
    %11 = vector.load %arg5[%c0_9, %c0_10] : memref<1x128xf32, #tpu.memory_space<vmem>>, vector<1x128xf32>
    %12 = vector.broadcast %11 : vector<1x128xf32> to vector<8x128xf32>
    %13 = arith.addf %10, %12 : vector<8x128xf32>
    %cst_11 = arith.constant 0.000000e+00 : f32
    %14 = vector.broadcast %cst_11 : f32 to vector<8x128xf32>
    %15 = arith.maximumf %13, %14 : vector<8x128xf32>
    %16 = arith.truncf %15 : vector<8x128xf32> to vector<8x128xbf16>
    %c0_12 = arith.constant 0 : index
    %c0_13 = arith.constant 0 : index
    %17 = vector.load %arg6[%c0_12, %c0_13] : memref<128x128xbf16, #tpu.memory_space<vmem>>, vector<128x128xbf16>
    %cst_14 = arith.constant dense<0.000000e+00> : vector<8x128xf32>
    %18 = tpu.matmul %16, %17, %cst_14 {dimension_numbers = #tpu.dot_dimension_numbers<[1], [0], [0], [1], [0, 0, 1, 1], [], []>} : vector<8x128xbf16>, vector<128x128xbf16>, vector<8x128xf32> -> vector<8x128xf32>
    %cst_15 = arith.constant 0.000000e+00 : f32
    %19 = vector.broadcast %cst_15 : f32 to vector<8x128xf32>
    %20 = arith.maximumf %18, %19 : vector<8x128xf32>
    %21 = arith.truncf %20 : vector<8x128xf32> to vector<8x128xbf16>
    %c0_16 = arith.constant 0 : index
    %c0_17 = arith.constant 0 : index
    %22 = vector.load %arg7[%c0_16, %c0_17] : memref<128x128xbf16, #tpu.memory_space<vmem>>, vector<128x128xbf16>
    %cst_18 = arith.constant dense<0.000000e+00> : vector<8x128xf32>
    %23 = tpu.matmul %21, %22, %cst_18 {dimension_numbers = #tpu.dot_dimension_numbers<[1], [0], [0], [1], [0, 0, 1, 1], [], []>} : vector<8x128xbf16>, vector<128x128xbf16>, vector<8x128xf32> -> vector<8x128xf32>
    %24 = arith.addf %13, %23 : vector<8x128xf32>
    %cst_19 = arith.constant 0.000000e+00 : f32
    %25 = vector.broadcast %cst_19 : f32 to vector<8x128xf32>
    %26 = arith.maximumf %24, %25 : vector<8x128xf32>
    %27 = arith.truncf %26 : vector<8x128xf32> to vector<8x128xbf16>
    %c0_20 = arith.constant 0 : index
    %c0_21 = arith.constant 0 : index
    %28 = vector.load %arg8[%c0_20, %c0_21] : memref<128x128xbf16, #tpu.memory_space<vmem>>, vector<128x128xbf16>
    %cst_22 = arith.constant dense<0.000000e+00> : vector<8x128xf32>
    %29 = tpu.matmul %27, %28, %cst_22 {dimension_numbers = #tpu.dot_dimension_numbers<[1], [0], [0], [1], [0, 0, 1, 1], [], []>} : vector<8x128xbf16>, vector<128x128xbf16>, vector<8x128xf32> -> vector<8x128xf32>
    %cst_23 = arith.constant 0.000000e+00 : f32
    %30 = vector.broadcast %cst_23 : f32 to vector<8x128xf32>
    %31 = arith.maximumf %29, %30 : vector<8x128xf32>
    %32 = arith.truncf %31 : vector<8x128xf32> to vector<8x128xbf16>
    %c0_24 = arith.constant 0 : index
    %c0_25 = arith.constant 0 : index
    %33 = vector.load %arg9[%c0_24, %c0_25] : memref<128x128xbf16, #tpu.memory_space<vmem>>, vector<128x128xbf16>
    %cst_26 = arith.constant dense<0.000000e+00> : vector<8x128xf32>
    %34 = tpu.matmul %32, %33, %cst_26 {dimension_numbers = #tpu.dot_dimension_numbers<[1], [0], [0], [1], [0, 0, 1, 1], [], []>} : vector<8x128xbf16>, vector<128x128xbf16>, vector<8x128xf32> -> vector<8x128xf32>
    %35 = arith.addf %24, %34 : vector<8x128xf32>
    %cst_27 = arith.constant 0.000000e+00 : f32
    %36 = vector.broadcast %cst_27 : f32 to vector<8x128xf32>
    %37 = arith.maximumf %35, %36 : vector<8x128xf32>
    %38 = arith.truncf %37 : vector<8x128xf32> to vector<8x128xbf16>
    %c0_28 = arith.constant 0 : index
    %c0_29 = arith.constant 0 : index
    %39 = vector.load %arg10[%c0_28, %c0_29] : memref<128x128xbf16, #tpu.memory_space<vmem>>, vector<128x128xbf16>
    %cst_30 = arith.constant dense<0.000000e+00> : vector<8x128xf32>
    %40 = tpu.matmul %38, %39, %cst_30 {dimension_numbers = #tpu.dot_dimension_numbers<[1], [0], [0], [1], [0, 0, 1, 1], [], []>} : vector<8x128xbf16>, vector<128x128xbf16>, vector<8x128xf32> -> vector<8x128xf32>
    %c0_31 = arith.constant 0 : index
    %c0_32 = arith.constant 0 : index
    %41 = vector.load %arg11[%c0_31, %c0_32] : memref<1x128xf32, #tpu.memory_space<vmem>>, vector<1x128xf32>
    %42 = vector.broadcast %41 : vector<1x128xf32> to vector<8x128xf32>
    %43 = arith.addf %40, %42 : vector<8x128xf32>
    %c0_33 = arith.constant 0 : index
    %c0_34 = arith.constant 0 : index
    %44 = vector.load %arg12[%c0_33, %c0_34] : memref<8x128xf32, #tpu.memory_space<vmem>>, vector<8x128xf32>
    tpu.vector_store %arg12[%c0_33, %c0_34], %43 {strides = array<i32>} : memref<8x128xf32, #tpu.memory_space<vmem>>, vector<8x128xf32>,
    return
  }
  func.func @transform_0(%arg0: i32) -> (i32, i32) {
    %c0_i32 = arith.constant 0 : i32
    %c0_i32_0 = arith.constant 0 : i32
    %c0_i32_1 = arith.constant 0 : i32
    return %c0_i32, %c0_i32_0 : i32, i32
  }
  func.func @transform_1(%arg0: i32) -> (i32, i32) {
    %c0_i32 = arith.constant 0 : i32
    %c0_i32_0 = arith.constant 0 : i32
    %c0_i32_1 = arith.constant 0 : i32
    return %c0_i32, %c0_i32_0 : i32, i32
  }
  func.func @transform_2(%arg0: i32) -> (i32, i32) {
    %c0_i32 = arith.constant 0 : i32
    %c0_i32_0 = arith.constant 0 : i32
    %c0_i32_1 = arith.constant 0 : i32
    return %c0_i32, %c0_i32_0 : i32, i32
  }
  func.func @transform_3(%arg0: i32) -> (i32, i32) {
    %c0_i32 = arith.constant 0 : i32
    %c0_i32_0 = arith.constant 0 : i32
    %c0_i32_1 = arith.constant 0 : i32
    return %c0_i32, %c0_i32_0 : i32, i32
  }
  func.func @transform_4(%arg0: i32) -> (i32, i32) {
    %c0_i32 = arith.constant 0 : i32
    %c0_i32_0 = arith.constant 0 : i32
    %c0_i32_1 = arith.constant 0 : i32
    return %c0_i32, %c0_i32_0 : i32, i32
  }
  func.func @transform_5(%arg0: i32) -> (i32, i32) {
    %c0_i32 = arith.constant 0 : i32
    %c0_i32_0 = arith.constant 0 : i32
    %c0_i32_1 = arith.constant 0 : i32
    return %c0_i32, %c0_i32_0 : i32, i32
  }
  func.func @transform_6(%arg0: i32) -> (i32, i32) {
    %c0_i32 = arith.constant 0 : i32
    %c0_i32_0 = arith.constant 0 : i32
    %c0_i32_1 = arith.constant 0 : i32
    return %c0_i32, %c0_i32_0 : i32, i32
  }
  func.func @transform_7(%arg0: i32) -> (i32, i32) {
    %c0_i32 = arith.constant 0 : i32
    %c0_i32_0 = arith.constant 0 : i32
    %c0_i32_1 = arith.constant 0 : i32
    return %c0_i32, %c0_i32_0 : i32, i32
  }
  func.func @transform_8(%arg0: i32) -> (i32, i32) {
    %c0_i32 = arith.constant 0 : i32
    %c0_i32_0 = arith.constant 0 : i32
    %c0_i32_1 = arith.constant 0 : i32
    return %c0_i32, %c0_i32_0 : i32, i32
  }
  func.func @transform_9(%arg0: i32) -> (i32, i32) {
    %c0_i32 = arith.constant 0 : i32
    %c0_i32_0 = arith.constant 0 : i32
    %c0_i32_1 = arith.constant 0 : i32
    return %c0_i32, %c0_i32_0 : i32, i32
  }
  func.func @transform_10(%arg0: i32) -> (i32, i32) {
    %c0_i32 = arith.constant 0 : i32
    %c0_i32_0 = arith.constant 0 : i32
    %c0_i32_1 = arith.constant 0 : i32
    return %c0_i32, %c0_i32_0 : i32, i32
  }
  func.func @transform_11(%arg0: i32) -> (i32, i32) {
    %c0_i32 = arith.constant 0 : i32
    %c0_i32_0 = arith.constant 0 : i32
    %c0_i32_1 = arith.constant 0 : i32
    return %c0_i32, %c0_i32_0 : i32, i32
  }
}

</mosaic_0001>

<llo_original>
// kernel: encoder_forward.2
$region0: #{encoder_forward.2}
  #allocation0 [shape = 'u32[]', space=smem, size = 0x4, offset = 0x4, fixed_abs, tag = 'smem constant byte address 0x4 - core index']
  #allocation1 [shape = 'u32[144,128]{1,0:T(1,128)}', space=vmem, size = 0x12000, scoped, tag = 'internal scratch']
  %s0 = inlined_call_operand.vmem [shape: bf16[896,384], index: 0, kind: input, shape index: {}]
  %s1 = inlined_call_operand.vmem [shape: bf16[384,128], index: 1, kind: input, shape index: {}]
  %s2 = inlined_call_operand.vmem [shape: f32[1,128], index: 2, kind: input, shape index: {}]
  %s3 = inlined_call_operand.vmem [shape: bf16[896,128], index: 3, kind: output, shape index: {}]
  %s4 = sld [smem:[#allocation0]]
  $region45: #{encoder_forward.2} parent=0
    _
  %s6 = ssub.s32 1, %s4
  %s7 = scalar_select 0, %s6, %s4
  loop: start=0, step=1, limit=6
  $region2: #{encoder_forward.2} parent=0 // loop_pre_header
    _
  $region3: #{encoder_forward.2} parent=0 // loop_header
    %s9 = sphi 0, %s13
    %p10 = scmp.ge.s32.totalorder %s9, 6
    %s19 = sphi 0, %s21
    %s22 = sphi 0, %s19
    %s23 = sphi 0, %s22
    %s39 = sphi 0, %s23
    %s43 = sphi 0, %s43
    %s45 = sphi 0, %s43
    %s46 = sphi 0, %s45
    %s60 = sphi 0, %s46
    %s64 = sphi 0, %s64
    %s66 = sphi 0, %s64
    %s67 = sphi 0, %s66
    %s81 = sphi 0, %s67
    %s87 = sphi 0, %s89
    %s90 = sphi 0, %s87
    %s91 = sphi 0, %s90
    %s107 = sphi 0, %s91
  $region4: #{encoder_forward.2} parent=0 // loop_header_branch
    %12 = sbr.rel (%p10) target = $region8
  $region5: #{encoder_forward.2} parent=0 // loop_body
    %s14 = ssub.s32 %s9, 1
    %s15 = ssub.s32 %s9, 2
    %s16 = sadd.s32 %s9, 1
    %s17 = ssub.s32 %s9, %s16
    %p18 = scmp.eq.s32.totalorder %s17, 0
    %s20 = sadd.s32 %s19, 1
    %s21 = scalar_select %p18, %s19, %s20
    %p24 = pneg %p18
    %p25 = scmp.eq.s32.totalorder %s9, 3
    %p26 = por %p24, %p25
    %p27 = scmp.ne.s32.totalorder %s19, %s22
    %p28 = scmp.eq.s32.totalorder %s9, 0
    %p29 = por %p27, %p28
    %p30 = scmp.ne.s32.totalorder %s19, %s22
    %p31 = scmp.eq.s32.totalorder %s14, 3
    %p32 = por %p30, %p31
    %p33 = scmp.ne.s32.totalorder %s22, %s23
    %p34 = scmp.eq.s32.totalorder %s14, 0
    %p35 = por %p33, %p34
    %p36 = scmp.ne.s32.totalorder %s22, %s23
    %p37 = scmp.eq.s32.totalorder %s15, 3
    %p38 = por %p36, %p37
    %p40 = scmp.ne.s32.totalorder %s23, %s39
    %p41 = scmp.eq.s32.totalorder %s15, 0
    %p42 = por %p40, %p41
    %s44 = sadd.s32 %s43, 1
    %p47 = scmp.eq.s32.totalorder %s9, 3
    %p48 = scmp.ne.s32.totalorder %s43, %s45
    %p49 = scmp.eq.s32.totalorder %s9, 0
    %p50 = por %p48, %p49
    %p51 = scmp.ne.s32.totalorder %s43, %s45
    %p52 = scmp.eq.s32.totalorder %s14, 3
    %p53 = por %p51, %p52
    %p54 = scmp.ne.s32.totalorder %s45, %s46
    %p55 = scmp.eq.s32.totalorder %s14, 0
    %p56 = por %p54, %p55
    %p57 = scmp.ne.s32.totalorder %s45, %s46
    %p58 = scmp.eq.s32.totalorder %s15, 3
    %p59 = por %p57, %p58
    %p61 = scmp.ne.s32.totalorder %s46, %s60
    %p62 = scmp.eq.s32.totalorder %s15, 0
    %p63 = por %p61, %p62
    %s65 = sadd.s32 %s64, 1
    %p68 = scmp.eq.s32.totalorder %s9, 3
    %p69 = scmp.ne.s32.totalorder %s64, %s66
    %p70 = scmp.eq.s32.totalorder %s9, 0
    %p71 = por %p69, %p70
    %p72 = scmp.ne.s32.totalorder %s64, %s66
    %p73 = scmp.eq.s32.totalorder %s14, 3
    %p74 = por %p72, %p73
    %p75 = scmp.ne.s32.totalorder %s66, %s67
    %p76 = scmp.eq.s32.totalorder %s14, 0
    %p77 = por %p75, %p76
    %p78 = scmp.ne.s32.totalorder %s66, %s67
    %p79 = scmp.eq.s32.totalorder %s15, 3
    %p80 = por %p78, %p79
    %p82 = scmp.ne.s32.totalorder %s67, %s81
    %p83 = scmp.eq.s32.totalorder %s15, 0
    %p84 = por %p82, %p83
    %s85 = ssub.s32 %s9, %s16
    %p86 = scmp.eq.s32.totalorder %s85, 0
    %s88 = sadd.s32 %s87, 1
    %s89 = scalar_select %p86, %s87, %s88
    %p92 = pneg %p86
    %p93 = scmp.eq.s32.totalorder %s9, 3
    %p94 = por %p92, %p93
    %p95 = scmp.ne.s32.totalorder %s87, %s90
    %p96 = scmp.eq.s32.totalorder %s9, 0
    %p97 = por %p95, %p96
    %p98 = scmp.ne.s32.totalorder %s87, %s90
    %p99 = scmp.eq.s32.totalorder %s14, 3
    %p100 = por %p98, %p99
    %p101 = scmp.ne.s32.totalorder %s90, %s91
    %p102 = scmp.eq.s32.totalorder %s14, 0
    %p103 = por %p101, %p102
    %p104 = scmp.ne.s32.totalorder %s90, %s91
    %p105 = scmp.eq.s32.totalorder %s15, 3
    %p106 = por %p104, %p105
    %p108 = scmp.ne.s32.totalorder %s91, %s107
    %p109 = scmp.eq.s32.totalorder %s15, 0
    %p110 = por %p108, %p109
    %p111 = scmp.le.s32.totalorder 1, %s9
    %p112 = scmp.lt.s32.totalorder %s9, 5
    %p113 = pnand %p111, %p112
    %p114 = pneg %p113
    // Predicated region
    $region9: #{encoder_forward.2} parent=5 // pred_check
      _
    $region10: #{encoder_forward.2} parent=5 // pred_check_branch
      %116 = sbr.rel (%p113) target = $region12
    $region11: #{encoder_forward.2} parent=5 // pred_region
      %s117 = ssub.s32 %s9, 1
      // Predicated region
      $region13: #{encoder_forward.2} parent=11 // pred_check
        %p118 = pneg %p56
      $region14: #{encoder_forward.2} parent=11 // pred_check_branch
        %120 = sbr.rel (%p118) target = $region16
      $region15: #{encoder_forward.2} parent=11 // pred_region
        _
      $region16: #{encoder_forward.2} parent=11 // pred_fallthru
        _
      // Predicated region
      $region17: #{encoder_forward.2} parent=11 // pred_check
        %p121 = pneg %p77
      $region18: #{encoder_forward.2} parent=11 // pred_check_branch
        %123 = sbr.rel (%p121) target = $region20
      $region19: #{encoder_forward.2} parent=11 // pred_region
        _
      $region20: #{encoder_forward.2} parent=11 // pred_fallthru
        _
    $region12: #{encoder_forward.2} parent=5 // pred_fallthru
      _
    %p124 = scmp.lt.s32.totalorder %s9, 4
    // Predicated region
    $region21: #{encoder_forward.2} parent=5 // pred_check
      %p125 = pneg %p124
    $region22: #{encoder_forward.2} parent=5 // pred_check_branch
      %127 = sbr.rel (%p125) target = $region24
    $region23: #{encoder_forward.2} parent=5 // pred_region
      // Predicated region
      $region25: #{encoder_forward.2} parent=23 // pred_check
        %p128 = pneg %p29
      $region26: #{encoder_forward.2} parent=23 // pred_check_branch
        %130 = sbr.rel (%p128) target = $region28
      $region27: #{encoder_forward.2} parent=23 // pred_region
        %s131 = smul.u32 28, %s9
        %p132 = scmp.lt.s32.totalorder %s131, 111
        %s133 = scalar_select %p132, %s131, 111
        %s134 = smul.addr %s133, 3
        %s135 = smul.addr %s134, 4
        %s136 = scalar_lea.vmem %s0, %s135
        %s137 = smul.u32 28, %s9
      $region28: #{encoder_forward.2} parent=23 // pred_fallthru
        _
    $region24: #{encoder_forward.2} parent=5 // pred_fallthru
      _
    %p138 = scmp.le.s32.totalorder 1, %s9
    %p139 = scmp.lt.s32.totalorder %s9, 5
    %p140 = pnand %p138, %p139
    %p141 = pneg %p140
    // Predicated region
    $region29: #{encoder_forward.2} parent=5 // pred_check
      _
    $region30: #{encoder_forward.2} parent=5 // pred_check_branch
      %143 = sbr.rel (%p140) target = $region32
    $region31: #{encoder_forward.2} parent=5 // pred_region
      %s144 = ssub.s32 %s9, 1
      %s145 = smul.u32 28, %s14
      %p146 = scmp.lt.s32.totalorder %s145, 111
      %s147 = scalar_select %p146, %s145, 111
      %s148 = smul.addr %s147, 3
      %s149 = smul.addr %s148, 4
      %s150 = scalar_lea.vmem %s0, %s149
      %p151 = pneg %p35
      %p152 = pneg %p32
      %p153 = pneg %p56
      %p154 = pneg %p53
      %p155 = pneg %p77
      %p156 = pneg %p74
      %p157 = pneg %p103
      %p158 = pneg %p100
      %s159 = smul.u32 28, %s14
      %p160 = scmp.lt.s32.totalorder %s159, 111
      %s161 = scalar_select %p160, %s159, 111
      %s162 = smul.addr %s161, 4
      %s163 = scalar_lea.vmem %s3, %s162
      %s164 = smul.u32 28, %s14
      %p165 = scmp.lt.s32.totalorder %s164, 111
      %s166 = scalar_select %p165, %s164, 111
      %s167 = smul.addr %s166, 3
      %s168 = smul.addr %s167, 4
      %s169 = scalar_lea.vmem %s0, %s168
      %s170 = smul.u32 28, %s14
      %s171 = smul.u32 28, %s14
      %p172 = scmp.lt.s32.totalorder %s171, 111
      %s173 = scalar_select %p172, %s171, 111
      %s174 = smul.addr %s173, 4
      %s175 = scalar_lea.vmem %s3, %s174
      %s176 = smul.u32 28, %s14
      %v178 = vld [vmem:[%s169] sm:$0xff]
      %v179 = vld [vmem:[%s169 + $0x8] sm:$0xf]
      %v180 = vld [vmem:[%s169 + $0xc] sm:$0xff]
      %v181 = vld [vmem:[%s169 + $0x14] sm:$0xf]
      %v182 = vld [vmem:[%s169 + $0x18] sm:$0xff]
      %v183 = vld [vmem:[%s169 + $0x20] sm:$0xf]
      %v184 = vld [vmem:[%s169 + $0x24] sm:$0xff]
      %v185 = vld [vmem:[%s169 + $0x2c] sm:$0xf]
      %v186 = vld [vmem:[%s169 + $0x30] sm:$0xff]
      %v187 = vld [vmem:[%s169 + $0x38] sm:$0xf]
      %v188 = vld [vmem:[%s169 + $0x3c] sm:$0xff]
      %v189 = vld [vmem:[%s169 + $0x44] sm:$0xf]
      %v190 = vld [vmem:[%s169 + $0x48] sm:$0xff]
      %v191 = vld [vmem:[%s169 + $0x50] sm:$0xf]
      %v192 = vld [vmem:[%s169 + $0x54] sm:$0xff]
      %v193 = vld [vmem:[%s169 + $0x5c] sm:$0xf]
      %v194 = vld [vmem:[%s169 + $0x60] sm:$0xff]
      %v195 = vld [vmem:[%s169 + $0x68] sm:$0xf]
      %v196 = vld [vmem:[%s169 + $0x6c] sm:$0xff]
      %v197 = vld [vmem:[%s169 + $0x74] sm:$0xf]
      %v198 = vld [vmem:[%s169 + $0x78] sm:$0xff]
      %v199 = vld [vmem:[%s169 + $0x80] sm:$0xf]
      %v200 = vld [vmem:[%s169 + $0x84] sm:$0xff]
      %v201 = vld [vmem:[%s169 + $0x8c] sm:$0xf]
      %v202 = vld [vmem:[%s169 + $0x90] sm:$0xff]
      %v203 = vld [vmem:[%s169 + $0x98] sm:$0xf]
      %v204 = vld [vmem:[%s169 + $0x9c] sm:$0xff]
      %v205 = vld [vmem:[%s169 + $0xa4] sm:$0xf]
      %v206 = vld [vmem:[%s169 + $0xa8] sm:$0xff]
      %v207 = vld [vmem:[%s169 + $0xb0] sm:$0xf]
      %v208 = vld [vmem:[%s169 + $0xb4] sm:$0xff]
      %v209 = vld [vmem:[%s169 + $0xbc] sm:$0xf]
      %v210 = vld [vmem:[%s169 + $0xc0] sm:$0xff]
      %v211 = vld [vmem:[%s169 + $0xc8] sm:$0xf]
      %v212 = vld [vmem:[%s169 + $0xcc] sm:$0xff]
      %v213 = vld [vmem:[%s169 + $0xd4] sm:$0xf]
      %v214 = vld [vmem:[%s169 + $0xd8] sm:$0xff]
      %v215 = vld [vmem:[%s169 + $0xe0] sm:$0xf]
      %v216 = vld [vmem:[%s169 + $0xe4] sm:$0xff]
      %v217 = vld [vmem:[%s169 + $0xec] sm:$0xf]
      %v218 = vld [vmem:[%s169 + $0xf0] sm:$0xff]
      %v219 = vld [vmem:[%s169 + $0xf8] sm:$0xf]
      %v220 = vld [vmem:[%s169 + $0xfc] sm:$0xff]
      %v221 = vld [vmem:[%s169 + $0x104] sm:$0xf]
      %v222 = vld [vmem:[%s169 + $0x108] sm:$0xff]
      %v223 = vld [vmem:[%s169 + $0x110] sm:$0xf]
      %v224 = vld [vmem:[%s169 + $0x114] sm:$0xff]
      %v225 = vld [vmem:[%s169 + $0x11c] sm:$0xf]
      %v226 = vld [vmem:[%s169 + $0x120] sm:$0xff]
      %v227 = vld [vmem:[%s169 + $0x128] sm:$0xf]
      %v228 = vld [vmem:[%s169 + $0x12c] sm:$0xff]
      %v229 = vld [vmem:[%s169 + $0x134] sm:$0xf]
      %v230 = vld [vmem:[%s169 + $0x138] sm:$0xff]
      %v231 = vld [vmem:[%s169 + $0x140] sm:$0xf]
      %v232 = vld [vmem:[%s169 + $0x144] sm:$0xff]
      %v233 = vld [vmem:[%s169 + $0x14c] sm:$0xf]
      %v234 = vld [vmem:[%s1] sm:$0xf]
      %v235 = vld [vmem:[%s1 + $0x4] sm:$0xf]
      %v236 = vld [vmem:[%s1 + $0x8] sm:$0xf]
      %v237 = vld [vmem:[%s1 + $0xc] sm:$0xf]
      %v238 = vld [vmem:[%s1 + $0x10] sm:$0xf]
      %v239 = vld [vmem:[%s1 + $0x14] sm:$0xf]
      %v240 = vld [vmem:[%s1 + $0x18] sm:$0xf]
      %v241 = vld [vmem:[%s1 + $0x1c] sm:$0xf]
      %v242 = vld [vmem:[%s1 + $0x20] sm:$0xf]
      %v243 = vld [vmem:[%s1 + $0x24] sm:$0xf]
      %v244 = vld [vmem:[%s1 + $0x28] sm:$0xf]
      %v245 = vld [vmem:[%s1 + $0x2c] sm:$0xf]
      %v246 = vld [vmem:[%s1 + $0x30] sm:$0xf]
      %v247 = vld [vmem:[%s1 + $0x34] sm:$0xf]
      %v248 = vld [vmem:[%s1 + $0x38] sm:$0xf]
      %v249 = vld [vmem:[%s1 + $0x3c] sm:$0xf]
      %v250 = vld [vmem:[%s1 + $0x40] sm:$0xf]
      %v251 = vld [vmem:[%s1 + $0x44] sm:$0xf]
      %v252 = vld [vmem:[%s1 + $0x48] sm:$0xf]
      %v253 = vld [vmem:[%s1 + $0x4c] sm:$0xf]
      %v254 = vld [vmem:[%s1 + $0x50] sm:$0xf]
      %v255 = vld [vmem:[%s1 + $0x54] sm:$0xf]
      %v256 = vld [vmem:[%s1 + $0x58] sm:$0xf]
      %v257 = vld [vmem:[%s1 + $0x5c] sm:$0xf]
      %v258 = vld [vmem:[%s1 + $0x60] sm:$0xf]
      %v259 = vld [vmem:[%s1 + $0x64] sm:$0xf]
      %v260 = vld [vmem:[%s1 + $0x68] sm:$0xf]
      %v261 = vld [vmem:[%s1 + $0x6c] sm:$0xf]
      %v262 = vld [vmem:[%s1 + $0x70] sm:$0xf]
      %v263 = vld [vmem:[%s1 + $0x74] sm:$0xf]
      %v264 = vld [vmem:[%s1 + $0x78] sm:$0xf]
      %v265 = vld [vmem:[%s1 + $0x7c] sm:$0xf]
      %v266 = vld [vmem:[%s1 + $0x80] sm:$0xf]
      %v267 = vld [vmem:[%s1 + $0x84] sm:$0xf]
      %v268 = vld [vmem:[%s1 + $0x88] sm:$0xf]
      %v269 = vld [vmem:[%s1 + $0x8c] sm:$0xf]
      %v270 = vld [vmem:[%s1 + $0x90] sm:$0xf]
      %v271 = vld [vmem:[%s1 + $0x94] sm:$0xf]
      %v272 = vld [vmem:[%s1 + $0x98] sm:$0xf]
      %v273 = vld [vmem:[%s1 + $0x9c] sm:$0xf]
      %v274 = vld [vmem:[%s1 + $0xa0] sm:$0xf]
      %v275 = vld [vmem:[%s1 + $0xa4] sm:$0xf]
      %v276 = vld [vmem:[%s1 + $0xa8] sm:$0xf]
      %v277 = vld [vmem:[%s1 + $0xac] sm:$0xf]
      %v278 = vld [vmem:[%s1 + $0xb0] sm:$0xf]
      %v279 = vld [vmem:[%s1 + $0xb4] sm:$0xf]
      %v280 = vld [vmem:[%s1 + $0xb8] sm:$0xf]
      %v281 = vld [vmem:[%s1 + $0xbc] sm:$0xf]
      %v282 = vld [vmem:[%s2] sm:$0x1]
      %v284 = vlaneseq
      %v285 = vshrl.u32 %v284, 7
      %v286 = vsub.s32 0, %v285
      %v287 = vrot.slane %v282, %v286
      %v345 = vunpack.c.l.b16 %v178
      %v346 = vunpack.c.h.b16 %v178
      %v347 = vunpack.c.l.b16 %v179
      %v348 = vunpack.c.l.b16 %v180
      %v349 = vunpack.c.h.b16 %v180
      %v350 = vunpack.c.l.b16 %v181
      %v351 = vunpack.c.l.b16 %v182
      %v352 = vunpack.c.h.b16 %v182
      %v353 = vunpack.c.l.b16 %v183
      %v354 = vunpack.c.l.b16 %v184
      %v355 = vunpack.c.h.b16 %v184
      %v356 = vunpack.c.l.b16 %v185
      %v357 = vunpack.c.l.b16 %v186
      %v358 = vunpack.c.h.b16 %v186
      %v359 = vunpack.c.l.b16 %v187
      %v360 = vunpack.c.l.b16 %v188
      %v361 = vunpack.c.h.b16 %v188
      %v362 = vunpack.c.l.b16 %v189
      %v363 = vunpack.c.l.b16 %v190
      %v364 = vunpack.c.h.b16 %v190
      %v365 = vunpack.c.l.b16 %v191
      %v366 = vunpack.c.l.b16 %v192
      %v367 = vunpack.c.h.b16 %v192
      %v368 = vunpack.c.l.b16 %v193
      %v369 = vunpack.c.l.b16 %v194
      %v370 = vunpack.c.h.b16 %v194
      %v371 = vunpack.c.l.b16 %v195
      %v372 = vunpack.c.l.b16 %v196
      %v373 = vunpack.c.h.b16 %v196
      %v374 = vunpack.c.l.b16 %v197
      %v375 = vunpack.c.l.b16 %v198
      %v376 = vunpack.c.h.b16 %v198
      %v377 = vunpack.c.l.b16 %v199
      %v378 = vunpack.c.l.b16 %v200
      %v379 = vunpack.c.h.b16 %v200
      %v380 = vunpack.c.l.b16 %v201
      %v381 = vunpack.c.l.b16 %v202
      %v382 = vunpack.c.h.b16 %v202
      %v383 = vunpack.c.l.b16 %v203
      %v384 = vunpack.c.l.b16 %v204
      %v385 = vunpack.c.h.b16 %v204
      %v386 = vunpack.c.l.b16 %v205
      %v387 = vunpack.c.l.b16 %v206
      %v388 = vunpack.c.h.b16 %v206
      %v389 = vunpack.c.l.b16 %v207
      %v390 = vunpack.c.l.b16 %v208
      %v391 = vunpack.c.h.b16 %v208
      %v392 = vunpack.c.l.b16 %v209
      %v393 = vunpack.c.l.b16 %v210
      %v394 = vunpack.c.h.b16 %v210
      %v395 = vunpack.c.l.b16 %v211
      %v396 = vunpack.c.l.b16 %v212
      %v397 = vunpack.c.h.b16 %v212
      %v398 = vunpack.c.l.b16 %v213
      %v399 = vunpack.c.l.b16 %v214
      %v400 = vunpack.c.h.b16 %v214
      %v401 = vunpack.c.l.b16 %v215
      %v402 = vunpack.c.l.b16 %v216
      %v403 = vunpack.c.h.b16 %v216
      %v404 = vunpack.c.l.b16 %v217
      %v405 = vunpack.c.l.b16 %v218
      %v406 = vunpack.c.h.b16 %v218
      %v407 = vunpack.c.l.b16 %v219
      %v408 = vunpack.c.l.b16 %v220
      %v409 = vunpack.c.h.b16 %v220
      %v410 = vunpack.c.l.b16 %v221
      %v411 = vunpack.c.l.b16 %v222
      %v412 = vunpack.c.h.b16 %v222
      %v413 = vunpack.c.l.b16 %v223
      %v414 = vunpack.c.l.b16 %v224
      %v415 = vunpack.c.h.b16 %v224
      %v416 = vunpack.c.l.b16 %v225
      %v417 = vunpack.c.l.b16 %v226
      %v418 = vunpack.c.h.b16 %v226
      %v419 = vunpack.c.l.b16 %v227
      %v420 = vunpack.c.l.b16 %v228
      %v421 = vunpack.c.h.b16 %v228
      %v422 = vunpack.c.l.b16 %v229
      %v423 = vunpack.c.l.b16 %v230
      %v424 = vunpack.c.h.b16 %v230
      %v425 = vunpack.c.l.b16 %v231
      %v426 = vunpack.c.l.b16 %v232
      %v427 = vunpack.c.h.b16 %v232
      %v428 = vunpack.c.l.b16 %v233
      %v429 = vpack.c.b16 %v348, %v345
      %v430 = vpack.c.b16 %v349, %v346
      %v431 = vpack.c.b16 %v350, %v347
      %v432 = vpack.c.b16 %v354, %v351
      %v433 = vpack.c.b16 %v355, %v352
      %v434 = vpack.c.b16 %v356, %v353
      %v435 = vpack.c.b16 %v360, %v357
      %v436 = vpack.c.b16 %v361, %v358
      %v437 = vpack.c.b16 %v362, %v359
      %v438 = vpack.c.b16 %v366, %v363
      %v439 = vpack.c.b16 %v367, %v364
      %v440 = vpack.c.b16 %v368, %v365
      %v441 = vpack.c.b16 %v372, %v369
      %v442 = vpack.c.b16 %v373, %v370
      %v443 = vpack.c.b16 %v374, %v371
      %v444 = vpack.c.b16 %v378, %v375
      %v445 = vpack.c.b16 %v379, %v376
      %v446 = vpack.c.b16 %v380, %v377
      %v447 = vpack.c.b16 %v384, %v381
      %v448 = vpack.c.b16 %v385, %v382
      %v449 = vpack.c.b16 %v386, %v383
      %v450 = vpack.c.b16 %v390, %v387
      %v451 = vpack.c.b16 %v391, %v388
      %v452 = vpack.c.b16 %v392, %v389
      %v453 = vpack.c.b16 %v396, %v393
      %v454 = vpack.c.b16 %v397, %v394
      %v455 = vpack.c.b16 %v398, %v395
      %v456 = vpack.c.b16 %v402, %v399
      %v457 = vpack.c.b16 %v403, %v400
      %v458 = vpack.c.b16 %v404, %v401
      %v459 = vpack.c.b16 %v408, %v405
      %v460 = vpack.c.b16 %v409, %v406
      %v461 = vpack.c.b16 %v410, %v407
      %v462 = vpack.c.b16 %v414, %v411
      %v463 = vpack.c.b16 %v415, %v412
      %v464 = vpack.c.b16 %v416, %v413
      %v465 = vpack.c.b16 %v420, %v417
      %v466 = vpack.c.b16 %v421, %v418
      %v467 = vpack.c.b16 %v422, %v419
      %v468 = vpack.c.b16 %v426, %v423
      %v469 = vpack.c.b16 %v427, %v424
      %v470 = vpack.c.b16 %v428, %v425
      %v561 = vunpack.c.l.b16 %v234
      %v562 = vunpack.c.l.b16 %v235
      %v563 = vunpack.c.l.b16 %v236
      %v564 = vunpack.c.l.b16 %v237
      %v565 = vunpack.c.l.b16 %v238
      %v566 = vunpack.c.l.b16 %v239
      %v567 = vunpack.c.l.b16 %v240
      %v568 = vunpack.c.l.b16 %v241
      %v569 = vunpack.c.l.b16 %v242
      %v570 = vunpack.c.l.b16 %v243
      %v571 = vunpack.c.l.b16 %v244
      %v572 = vunpack.c.l.b16 %v245
      %v573 = vunpack.c.l.b16 %v246
      %v574 = vunpack.c.l.b16 %v247
      %v575 = vunpack.c.l.b16 %v248
      %v576 = vunpack.c.l.b16 %v249
      %v577 = vunpack.c.l.b16 %v250
      %v578 = vunpack.c.l.b16 %v251
      %v579 = vunpack.c.l.b16 %v252
      %v580 = vunpack.c.l.b16 %v253
      %v581 = vunpack.c.l.b16 %v254
      %v582 = vunpack.c.l.b16 %v255
      %v583 = vunpack.c.l.b16 %v256
      %v584 = vunpack.c.l.b16 %v257
      %v585 = vunpack.c.l.b16 %v258
      %v586 = vunpack.c.l.b16 %v259
      %v587 = vunpack.c.l.b16 %v260
      %v588 = vunpack.c.l.b16 %v261
      %v589 = vunpack.c.l.b16 %v262
      %v590 = vunpack.c.l.b16 %v263
      %v591 = vunpack.c.l.b16 %v264
      %v592 = vunpack.c.l.b16 %v265
      %v593 = vunpack.c.l.b16 %v266
      %v594 = vunpack.c.l.b16 %v267
      %v595 = vunpack.c.l.b16 %v268
      %v596 = vunpack.c.l.b16 %v269
      %v597 = vunpack.c.l.b16 %v270
      %v598 = vunpack.c.l.b16 %v271
      %v599 = vunpack.c.l.b16 %v272
      %v600 = vunpack.c.l.b16 %v273
      %v601 = vunpack.c.l.b16 %v274
      %v602 = vunpack.c.l.b16 %v275
      %v603 = vunpack.c.l.b16 %v276
      %v604 = vunpack.c.l.b16 %v277
      %v605 = vunpack.c.l.b16 %v278
      %v606 = vunpack.c.l.b16 %v279
      %v607 = vunpack.c.l.b16 %v280
      %v608 = vunpack.c.l.b16 %v281
      %v609 = vpack.c.b16 %v562, %v561
      %v610 = vpack.c.b16 %v564, %v563
      %v611 = vpack.c.b16 %v566, %v565
      %v612 = vpack.c.b16 %v568, %v567
      %v613 = vpack.c.b16 %v570, %v569
      %v614 = vpack.c.b16 %v572, %v571
      %v615 = vpack.c.b16 %v574, %v573
      %v616 = vpack.c.b16 %v576, %v575
      %v617 = vpack.c.b16 %v578, %v577
      %v618 = vpack.c.b16 %v580, %v579
      %v619 = vpack.c.b16 %v582, %v581
      %v620 = vpack.c.b16 %v584, %v583
      %v621 = vpack.c.b16 %v586, %v585
      %v622 = vpack.c.b16 %v588, %v587
      %v623 = vpack.c.b16 %v590, %v589
      %v624 = vpack.c.b16 %v592, %v591
      %v625 = vpack.c.b16 %v594, %v593
      %v626 = vpack.c.b16 %v596, %v595
      %v627 = vpack.c.b16 %v598, %v597
      %v628 = vpack.c.b16 %v600, %v599
      %v629 = vpack.c.b16 %v602, %v601
      %v630 = vpack.c.b16 %v604, %v603
      %v631 = vpack.c.b16 %v606, %v605
      %v632 = vpack.c.b16 %v608, %v607
      %657 = vmatprep.subr.bf16.mxu0 0
      %658 = vmatpush1.bf16.msra.mxu0 %v616
      %659 = vmatprep.subr.bf16.mxu0 0
      %660 = vmatpush1.bf16.msra.mxu0 %v615
      %661 = vmatprep.subr.bf16.mxu0 0
      %662 = vmatpush1.bf16.msra.mxu0 %v614
      %663 = vmatprep.subr.bf16.mxu0 0
      %664 = vmatpush1.bf16.msra.mxu0 %v613
      %665 = vmatprep.subr.bf16.mxu0 0
      %666 = vmatpush1.bf16.msra.mxu0 %v612
      %667 = vmatprep.subr.bf16.mxu0 0
      %668 = vmatpush1.bf16.msra.mxu0 %v611
      %669 = vmatprep.subr.bf16.mxu0 0
      %670 = vmatpush1.bf16.msra.mxu0 %v610
      %671 = vmatprep.subr.bf16.mxu0 0
      %672 = vmatpush1.bf16.msra.mxu0 %v609
      %673 = vmatprep.subr.bf16.mxu0 0
      %674 = vmatpush2.bf16.msra.mxu0 %v624
      %675 = vmatprep.subr.bf16.mxu0 0
      %676 = vmatpush2.bf16.msra.mxu0 %v623
      %677 = vmatprep.subr.bf16.mxu0 0
      %678 = vmatpush2.bf16.msra.mxu0 %v622
      %679 = vmatprep.subr.bf16.mxu0 0
      %680 = vmatpush2.bf16.msra.mxu0 %v621
      %681 = vmatprep.subr.bf16.mxu0 0
      %682 = vmatpush2.bf16.msra.mxu0 %v620
      %683 = vmatprep.subr.bf16.mxu0 0
      %684 = vmatpush2.bf16.msra.mxu0 %v619
      %685 = vmatprep.subr.bf16.mxu0 0
      %686 = vmatpush2.bf16.msra.mxu0 %v618
      %687 = vmatprep.subr.bf16.mxu0 0
      %688 = vmatpush2.bf16.msra.mxu0 %v617
      %689 = vmatprep.mubr.bf16.mxu0 %v430
      %690 = vmatmul.mubr.bf16.gmra.mxu0 %v429
      %v691 = vpop.f32.mrf.mxu0
      %v692 = vadd.f32 %v287, %v691
      %v693 = vpop.f32.mrf.mxu0
      %v694 = vpop.f32.mrf.mxu0
      %v695 = vadd.f32 %v287, %v694
      %v696 = vpop.f32.mrf.mxu0
      %697 = vmatprep.mubr.bf16.mxu0 %v433
      %698 = vmatmul.mubr.bf16.gmra.mxu0 %v432
      %v699 = vpop.f32.mrf.mxu0
      %v700 = vadd.f32 %v287, %v699
      %v701 = vpop.f32.mrf.mxu0
      %v702 = vpop.f32.mrf.mxu0
      %v703 = vadd.f32 %v287, %v702
      %v704 = vpop.f32.mrf.mxu0
      %705 = vmatprep.mubr.bf16.mxu0 %v436
      %706 = vmatmul.mubr.bf16.gmra.mxu0 %v435
      %v707 = vpop.f32.mrf.mxu0
      %v708 = vadd.f32 %v287, %v707
      %v709 = vpop.f32.mrf.mxu0
      %v710 = vpop.f32.mrf.mxu0
      %v711 = vadd.f32 %v287, %v710
      %v712 = vpop.f32.mrf.mxu0
      %713 = vmatprep.mubr.bf16.mxu0 %v439
      %714 = vmatmul.mubr.bf16.gmra.mxu0 %v438
      %v715 = vpop.f32.mrf.mxu0
      %v716 = vadd.f32 %v287, %v715
      %v717 = vpop.f32.mrf.mxu0
      %v718 = vpop.f32.mrf.mxu0
      %v719 = vadd.f32 %v287, %v718
      %v720 = vpop.f32.mrf.mxu0
      %721 = vmatprep.mubr.bf16.mxu0 %v442
      %722 = vmatmul.mubr.bf16.gmra.mxu0 %v441
      %v723 = vpop.f32.mrf.mxu0
      %v724 = vadd.f32 %v287, %v723
      %v725 = vpop.f32.mrf.mxu0
      %v726 = vpop.f32.mrf.mxu0
      %v727 = vadd.f32 %v287, %v726
      %v728 = vpop.f32.mrf.mxu0
      %729 = vmatprep.mubr.bf16.mxu0 %v445
      %730 = vmatmul.mubr.bf16.gmra.mxu0 %v444
      %v731 = vpop.f32.mrf.mxu0
      %v732 = vadd.f32 %v287, %v731
      %v733 = vpop.f32.mrf.mxu0
      %v734 = vpop.f32.mrf.mxu0
      %v735 = vadd.f32 %v287, %v734
      %v736 = vpop.f32.mrf.mxu0
      %737 = vmatprep.mubr.bf16.mxu0 %v448
      %738 = vmatmul.mubr.bf16.gmra.mxu0 %v447
      %v739 = vpop.f32.mrf.mxu0
      %v740 = vadd.f32 %v287, %v739
      %v741 = vpop.f32.mrf.mxu0
      %v742 = vpop.f32.mrf.mxu0
      %v743 = vadd.f32 %v287, %v742
      %v744 = vpop.f32.mrf.mxu0
      %745 = vmatprep.mubr.bf16.mxu0 %v451
      %746 = vmatmul.mubr.bf16.gmra.mxu0 %v450
      %v747 = vpop.f32.mrf.mxu0
      %v748 = vadd.f32 %v287, %v747
      %v749 = vpop.f32.mrf.mxu0
      %v750 = vpop.f32.mrf.mxu0
      %v751 = vadd.f32 %v287, %v750
      %v752 = vpop.f32.mrf.mxu0
      %753 = vmatprep.mubr.bf16.mxu0 %v454
      %754 = vmatmul.mubr.bf16.gmra.mxu0 %v453
      %v755 = vpop.f32.mrf.mxu0
      %v756 = vadd.f32 %v287, %v755
      %v757 = vpop.f32.mrf.mxu0
      %v758 = vpop.f32.mrf.mxu0
      %v759 = vadd.f32 %v287, %v758
      %v760 = vpop.f32.mrf.mxu0
      %761 = vmatprep.mubr.bf16.mxu0 %v457
      %762 = vmatmul.mubr.bf16.gmra.mxu0 %v456
      %v763 = vpop.f32.mrf.mxu0
      %v764 = vadd.f32 %v287, %v763
      %v765 = vpop.f32.mrf.mxu0
      %v766 = vpop.f32.mrf.mxu0
      %v767 = vadd.f32 %v287, %v766
      %v768 = vpop.f32.mrf.mxu0
      %769 = vmatprep.mubr.bf16.mxu0 %v460
      %770 = vmatmul.mubr.bf16.gmra.mxu0 %v459
      %v771 = vpop.f32.mrf.mxu0
      %v772 = vadd.f32 %v287, %v771
      %v773 = vpop.f32.mrf.mxu0
      %v774 = vpop.f32.mrf.mxu0
      %v775 = vadd.f32 %v287, %v774
      %v776 = vpop.f32.mrf.mxu0
      %777 = vmatprep.mubr.bf16.mxu0 %v463
      %778 = vmatmul.mubr.bf16.gmra.mxu0 %v462
      %v779 = vpop.f32.mrf.mxu0
      %v780 = vadd.f32 %v287, %v779
      %v781 = vpop.f32.mrf.mxu0
      %v782 = vpop.f32.mrf.mxu0
      %v783 = vadd.f32 %v287, %v782
      %v784 = vpop.f32.mrf.mxu0
      %785 = vmatprep.mubr.bf16.mxu0 %v466
      %786 = vmatmul.mubr.bf16.gmra.mxu0 %v465
      %v787 = vpop.f32.mrf.mxu0
      %v788 = vadd.f32 %v287, %v787
      %v789 = vpop.f32.mrf.mxu0
      %v790 = vpop.f32.mrf.mxu0
      %v791 = vadd.f32 %v287, %v790
      %v792 = vpop.f32.mrf.mxu0
      %793 = vmatprep.mubr.bf16.mxu0 %v469
      %794 = vmatmul.mubr.bf16.gmra.mxu0 %v468
      %v795 = vpop.f32.mrf.mxu0
      %v796 = vadd.f32 %v287, %v795
      %v797 = vpop.f32.mrf.mxu0
      %v798 = vpop.f32.mrf.mxu0
      %v799 = vadd.f32 %v287, %v798
      %v800 = vpop.f32.mrf.mxu0
      %801 = vdwg.mxu0
      %802 = vmatprep.subr.bf16.mxu0 0
      %803 = vmatpush1.bf16.msra.mxu0 %v632
      %804 = vmatprep.subr.bf16.mxu0 0
      %805 = vmatpush1.bf16.msra.mxu0 %v631
      %806 = vmatprep.subr.bf16.mxu0 0
      %807 = vmatpush1.bf16.msra.mxu0 %v630
      %808 = vmatprep.subr.bf16.mxu0 0
      %809 = vmatpush1.bf16.msra.mxu0 %v629
      %810 = vmatprep.subr.bf16.mxu0 0
      %811 = vmatpush1.bf16.msra.mxu0 %v628
      %812 = vmatprep.subr.bf16.mxu0 0
      %813 = vmatpush1.bf16.msra.mxu0 %v627
      %814 = vmatprep.subr.bf16.mxu0 0
      %815 = vmatpush1.bf16.msra.mxu0 %v626
      %816 = vmatprep.subr.bf16.mxu0 0
      %817 = vmatpush1.bf16.msra.mxu0 %v625
      %818 = vmatprep.subr.bf16.mxu0 0
      %819 = vmatpush2.bf16.msra.mxu0 0
      %820 = vmatprep.subr.bf16.mxu0 0
      %821 = vmatpush2.bf16.msra.mxu0 0
      %822 = vmatprep.subr.bf16.mxu0 0
      %823 = vmatpush2.bf16.msra.mxu0 0
      %824 = vmatprep.subr.bf16.mxu0 0
      %825 = vmatpush2.bf16.msra.mxu0 0
      %826 = vmatprep.subr.bf16.mxu0 0
      %827 = vmatpush2.bf16.msra.mxu0 0
      %828 = vmatprep.subr.bf16.mxu0 0
      %829 = vmatpush2.bf16.msra.mxu0 0
      %830 = vmatprep.subr.bf16.mxu0 0
      %831 = vmatpush2.bf16.msra.mxu0 0
      %832 = vmatprep.subr.bf16.mxu0 0
      %833 = vmatpush2.bf16.msra.mxu0 0
      %834 = vmatprep.mubr.bf16.mxu0 0
      %835 = vmatmul.mubr.bf16.gmra.mxu0 %v431
      %v836 = vpop.f32.mrf.mxu0
      %v837 = vadd.f32 %v692, %v836
      %v838 = vpop.f32.mrf.mxu0
      %v839 = vpop.f32.mrf.mxu0
      %v840 = vadd.f32 %v695, %v839
      %v841 = vpop.f32.mrf.mxu0
      %842 = vmatprep.mubr.bf16.mxu0 0
      %843 = vmatmul.mubr.bf16.gmra.mxu0 %v434
      %v844 = vpop.f32.mrf.mxu0
      %v845 = vadd.f32 %v700, %v844
      %v846 = vpop.f32.mrf.mxu0
      %v847 = vpop.f32.mrf.mxu0
      %v848 = vadd.f32 %v703, %v847
      %v849 = vpop.f32.mrf.mxu0
      %850 = vmatprep.mubr.bf16.mxu0 0
      %851 = vmatmul.mubr.bf16.gmra.mxu0 %v437
      %v852 = vpop.f32.mrf.mxu0
      %v853 = vadd.f32 %v708, %v852
      %v854 = vpop.f32.mrf.mxu0
      %v855 = vpop.f32.mrf.mxu0
      %v856 = vadd.f32 %v711, %v855
      %v857 = vpop.f32.mrf.mxu0
      %858 = vmatprep.mubr.bf16.mxu0 0
      %859 = vmatmul.mubr.bf16.gmra.mxu0 %v440
      %v860 = vpop.f32.mrf.mxu0
      %v861 = vadd.f32 %v716, %v860
      %v862 = vpop.f32.mrf.mxu0
      %v863 = vpop.f32.mrf.mxu0
      %v864 = vadd.f32 %v719, %v863
      %v865 = vpop.f32.mrf.mxu0
      %866 = vmatprep.mubr.bf16.mxu0 0
      %867 = vmatmul.mubr.bf16.gmra.mxu0 %v443
      %v868 = vpop.f32.mrf.mxu0
      %v869 = vadd.f32 %v724, %v868
      %v870 = vpop.f32.mrf.mxu0
      %v871 = vpop.f32.mrf.mxu0
      %v872 = vadd.f32 %v727, %v871
      %v873 = vpop.f32.mrf.mxu0
      %874 = vmatprep.mubr.bf16.mxu0 0
      %875 = vmatmul.mubr.bf16.gmra.mxu0 %v446
      %v876 = vpop.f32.mrf.mxu0
      %v877 = vadd.f32 %v732, %v876
      %v878 = vpop.f32.mrf.mxu0
      %v879 = vpop.f32.mrf.mxu0
      %v880 = vadd.f32 %v735, %v879
      %v881 = vpop.f32.mrf.mxu0
      %882 = vmatprep.mubr.bf16.mxu0 0
      %883 = vmatmul.mubr.bf16.gmra.mxu0 %v449
      %v884 = vpop.f32.mrf.mxu0
      %v885 = vadd.f32 %v740, %v884
      %v886 = vpop.f32.mrf.mxu0
      %v887 = vpop.f32.mrf.mxu0
      %v888 = vadd.f32 %v743, %v887
      %v889 = vpop.f32.mrf.mxu0
      %890 = vmatprep.mubr.bf16.mxu0 0
      %891 = vmatmul.mubr.bf16.gmra.mxu0 %v452
      %v892 = vpop.f32.mrf.mxu0
      %v893 = vadd.f32 %v748, %v892
      %v894 = vpop.f32.mrf.mxu0
      %v895 = vpop.f32.mrf.mxu0
      %v896 = vadd.f32 %v751, %v895
      %v897 = vpop.f32.mrf.mxu0
      %898 = vmatprep.mubr.bf16.mxu0 0
      %899 = vmatmul.mubr.bf16.gmra.mxu0 %v455
      %v900 = vpop.f32.mrf.mxu0
      %v901 = vadd.f32 %v756, %v900
      %v902 = vpop.f32.mrf.mxu0
      %v903 = vpop.f32.mrf.mxu0
      %v904 = vadd.f32 %v759, %v903
      %v905 = vpop.f32.mrf.mxu0
      %906 = vmatprep.mubr.bf16.mxu0 0
      %907 = vmatmul.mubr.bf16.gmra.mxu0 %v458
      %v908 = vpop.f32.mrf.mxu0
      %v909 = vadd.f32 %v764, %v908
      %v910 = vpop.f32.mrf.mxu0
      %v911 = vpop.f32.mrf.mxu0
      %v912 = vadd.f32 %v767, %v911
      %v913 = vpop.f32.mrf.mxu0
      %914 = vmatprep.mubr.bf16.mxu0 0
      %915 = vmatmul.mubr.bf16.gmra.mxu0 %v461
      %v916 = vpop.f32.mrf.mxu0
      %v917 = vadd.f32 %v772, %v916
      %v918 = vpop.f32.mrf.mxu0
      %v919 = vpop.f32.mrf.mxu0
      %v920 = vadd.f32 %v775, %v919
      %v921 = vpop.f32.mrf.mxu0
      %922 = vmatprep.mubr.bf16.mxu0 0
      %923 = vmatmul.mubr.bf16.gmra.mxu0 %v464
      %v924 = vpop.f32.mrf.mxu0
      %v925 = vadd.f32 %v780, %v924
      %v926 = vpop.f32.mrf.mxu0
      %v927 = vpop.f32.mrf.mxu0
      %v928 = vadd.f32 %v783, %v927
      %v929 = vpop.f32.mrf.mxu0
      %930 = vmatprep.mubr.bf16.mxu0 0
      %931 = vmatmul.mubr.bf16.gmra.mxu0 %v467
      %v932 = vpop.f32.mrf.mxu0
      %v933 = vadd.f32 %v788, %v932
      %v934 = vpop.f32.mrf.mxu0
      %v935 = vpop.f32.mrf.mxu0
      %v936 = vadd.f32 %v791, %v935
      %v937 = vpop.f32.mrf.mxu0
      %938 = vmatprep.mubr.bf16.mxu0 0
      %939 = vmatmul.mubr.bf16.gmra.mxu0 %v470
      %v940 = vpop.f32.mrf.mxu0
      %v941 = vadd.f32 %v796, %v940
      %v942 = vpop.f32.mrf.mxu0
      %v943 = vpop.f32.mrf.mxu0
      %v944 = vadd.f32 %v799, %v943
      %v945 = vpop.f32.mrf.mxu0
      %946 = vdwg.mxu0
      %v947 = vmax.f32 %v837, 0.0
      %v948 = vmax.f32 %v840, 0.0
      %v949 = vmax.f32 %v845, 0.0
      %v950 = vmax.f32 %v848, 0.0
      %v951 = vmax.f32 %v853, 0.0
      %v952 = vmax.f32 %v856, 0.0
      %v953 = vmax.f32 %v861, 0.0
      %v954 = vmax.f32 %v864, 0.0
      %v955 = vmax.f32 %v869, 0.0
      %v956 = vmax.f32 %v872, 0.0
      %v957 = vmax.f32 %v877, 0.0
      %v958 = vmax.f32 %v880, 0.0
      %v959 = vmax.f32 %v885, 0.0
      %v960 = vmax.f32 %v888, 0.0
      %v961 = vmax.f32 %v893, 0.0
      %v962 = vmax.f32 %v896, 0.0
      %v963 = vmax.f32 %v901, 0.0
      %v964 = vmax.f32 %v904, 0.0
      %v965 = vmax.f32 %v909, 0.0
      %v966 = vmax.f32 %v912, 0.0
      %v967 = vmax.f32 %v917, 0.0
      %v968 = vmax.f32 %v920, 0.0
      %v969 = vmax.f32 %v925, 0.0
      %v970 = vmax.f32 %v928, 0.0
      %v971 = vmax.f32 %v933, 0.0
      %v972 = vmax.f32 %v936, 0.0
      %v973 = vmax.f32 %v941, 0.0
      %v974 = vmax.f32 %v944, 0.0
      %v975 = vpack.c.bf16 %v948, %v947
      %v976 = vpack.c.bf16 %v950, %v949
      %v977 = vpack.c.bf16 %v952, %v951
      %v978 = vpack.c.bf16 %v954, %v953
      %v979 = vpack.c.bf16 %v956, %v955
      %v980 = vpack.c.bf16 %v958, %v957
      %v981 = vpack.c.bf16 %v960, %v959
      %v982 = vpack.c.bf16 %v962, %v961
      %v983 = vpack.c.bf16 %v964, %v963
      %v984 = vpack.c.bf16 %v966, %v965
      %v985 = vpack.c.bf16 %v968, %v967
      %v986 = vpack.c.bf16 %v970, %v969
      %v987 = vpack.c.bf16 %v972, %v971
      %v988 = vpack.c.bf16 %v974, %v973
      %v1003 = vunpack.c.l.b16 %v975
      %v1004 = vunpack.c.h.b16 %v975
      %v1005 = vunpack.c.l.b16 %v976
      %v1006 = vunpack.c.h.b16 %v976
      %v1007 = vunpack.c.l.b16 %v977
      %v1008 = vunpack.c.h.b16 %v977
      %v1009 = vunpack.c.l.b16 %v978
      %v1010 = vunpack.c.h.b16 %v978
      %v1011 = vunpack.c.l.b16 %v979
      %v1012 = vunpack.c.h.b16 %v979
      %v1013 = vunpack.c.l.b16 %v980
      %v1014 = vunpack.c.h.b16 %v980
      %v1015 = vunpack.c.l.b16 %v981
      %v1016 = vunpack.c.h.b16 %v981
      %v1017 = vunpack.c.l.b16 %v982
      %v1018 = vunpack.c.h.b16 %v982
      %v1019 = vunpack.c.l.b16 %v983
      %v1020 = vunpack.c.h.b16 %v983
      %v1021 = vunpack.c.l.b16 %v984
      %v1022 = vunpack.c.h.b16 %v984
      %v1023 = vunpack.c.l.b16 %v985
      %v1024 = vunpack.c.h.b16 %v985
      %v1025 = vunpack.c.l.b16 %v986
      %v1026 = vunpack.c.h.b16 %v986
      %v1027 = vunpack.c.l.b16 %v987
      %v1028 = vunpack.c.h.b16 %v987
      %v1029 = vunpack.c.l.b16 %v988
      %v1030 = vunpack.c.h.b16 %v988
      %v1031 = vpack.c.b16 %v1003, %v1003
      %v1032 = vpack.c.b16 %v1004, %v1004
      %v1033 = vpack.c.b16 %v1005, %v1005
      %v1034 = vpack.c.b16 %v1006, %v1006
      %v1035 = vpack.c.b16 %v1007, %v1007
      %v1036 = vpack.c.b16 %v1008, %v1008
      %v1037 = vpack.c.b16 %v1009, %v1009
      %v1038 = vpack.c.b16 %v1010, %v1010
      %v1039 = vpack.c.b16 %v1011, %v1011
      %v1040 = vpack.c.b16 %v1012, %v1012
      %v1041 = vpack.c.b16 %v1013, %v1013
      %v1042 = vpack.c.b16 %v1014, %v1014
      %v1043 = vpack.c.b16 %v1015, %v1015
      %v1044 = vpack.c.b16 %v1016, %v1016
      %v1045 = vpack.c.b16 %v1017, %v1017
      %v1046 = vpack.c.b16 %v1018, %v1018
      %v1047 = vpack.c.b16 %v1019, %v1019
      %v1048 = vpack.c.b16 %v1020, %v1020
      %v1049 = vpack.c.b16 %v1021, %v1021
      %v1050 = vpack.c.b16 %v1022, %v1022
      %v1051 = vpack.c.b16 %v1023, %v1023
      %v1052 = vpack.c.b16 %v1024, %v1024
      %v1053 = vpack.c.b16 %v1025, %v1025
      %v1054 = vpack.c.b16 %v1026, %v1026
      %v1055 = vpack.c.b16 %v1027, %v1027
      %v1056 = vpack.c.b16 %v1028, %v1028
      %v1057 = vpack.c.b16 %v1029, %v1029
      %v1058 = vpack.c.b16 %v1030, %v1030
      %1087 = vst [vmem:[%s175] sm:$0xf] %v1031
      %1088 = vst [vmem:[%s175 + $0x4] sm:$0xf] %v1032
      %1089 = vst [vmem:[%s175 + $0x8] sm:$0xf] %v1033
      %1090 = vst [vmem:[%s175 + $0xc] sm:$0xf] %v1034
      %1091 = vst [vmem:[%s175 + $0x10] sm:$0xf] %v1035
      %1092 = vst [vmem:[%s175 + $0x14] sm:$0xf] %v1036
      %1093 = vst [vmem:[%s175 + $0x18] sm:$0xf] %v1037
      %1094 = vst [vmem:[%s175 + $0x1c] sm:$0xf] %v1038
      %1095 = vst [vmem:[%s175 + $0x20] sm:$0xf] %v1039
      %1096 = vst [vmem:[%s175 + $0x24] sm:$0xf] %v1040
      %1097 = vst [vmem:[%s175 + $0x28] sm:$0xf] %v1041
      %1098 = vst [vmem:[%s175 + $0x2c] sm:$0xf] %v1042
      %1099 = vst [vmem:[%s175 + $0x30] sm:$0xf] %v1043
      %1100 = vst [vmem:[%s175 + $0x34] sm:$0xf] %v1044
      %1101 = vst [vmem:[%s175 + $0x38] sm:$0xf] %v1045
      %1102 = vst [vmem:[%s175 + $0x3c] sm:$0xf] %v1046
      %1103 = vst [vmem:[%s175 + $0x40] sm:$0xf] %v1047
      %1104 = vst [vmem:[%s175 + $0x44] sm:$0xf] %v1048
      %1105 = vst [vmem:[%s175 + $0x48] sm:$0xf] %v1049
      %1106 = vst [vmem:[%s175 + $0x4c] sm:$0xf] %v1050
      %1107 = vst [vmem:[%s175 + $0x50] sm:$0xf] %v1051
      %1108 = vst [vmem:[%s175 + $0x54] sm:$0xf] %v1052
      %1109 = vst [vmem:[%s175 + $0x58] sm:$0xf] %v1053
      %1110 = vst [vmem:[%s175 + $0x5c] sm:$0xf] %v1054
      %1111 = vst [vmem:[%s175 + $0x60] sm:$0xf] %v1055
      %1112 = vst [vmem:[%s175 + $0x64] sm:$0xf] %v1056
      %1113 = vst [vmem:[%s175 + $0x68] sm:$0xf] %v1057
      %1114 = vst [vmem:[%s175 + $0x6c] sm:$0xf] %v1058
      %s1115 = smul.u32 28, %s14
      %p1116 = scmp.lt.s32.totalorder %s1115, 111
      %s1117 = scalar_select %p1116, %s1115, 111
      %s1118 = smul.addr %s1117, 4
      %s1119 = scalar_lea.vmem %s3, %s1118
      // Predicated region
      $region33: #{encoder_forward.2} parent=31 // pred_check
        %p1120 = pneg %p100
      $region34: #{encoder_forward.2} parent=31 // pred_check_branch
        %1122 = sbr.rel (%p1120) target = $region36
      $region35: #{encoder_forward.2} parent=31 // pred_region
        %s1123 = smul.u32 28, %s14
      $region36: #{encoder_forward.2} parent=31 // pred_fallthru
        _
    $region32: #{encoder_forward.2} parent=5 // pred_fallthru
      _
    %p1124 = scmp.le.s32.totalorder 2, %s9
    // Predicated region
    $region37: #{encoder_forward.2} parent=5 // pred_check
      %p1125 = pneg %p1124
    $region38: #{encoder_forward.2} parent=5 // pred_check_branch
      %1127 = sbr.rel (%p1125) target = $region40
    $region39: #{encoder_forward.2} parent=5 // pred_region
      %s1128 = ssub.s32 %s9, 2
      // Predicated region
      $region41: #{encoder_forward.2} parent=39 // pred_check
        %p1129 = pneg %p106
      $region42: #{encoder_forward.2} parent=39 // pred_check_branch
        %1131 = sbr.rel (%p1129) target = $region44
      $region43: #{encoder_forward.2} parent=39 // pred_region
        %s1132 = smul.u32 28, %s15
        %p1133 = scmp.lt.s32.totalorder %s1132, 111
        %s1134 = scalar_select %p1133, %s1132, 111
        %s1135 = smul.addr %s1134, 4
        %s1136 = scalar_lea.vmem %s3, %s1135
      $region44: #{encoder_forward.2} parent=39 // pred_fallthru
        _
    $region40: #{encoder_forward.2} parent=5 // pred_fallthru
      _
  $region6: #{encoder_forward.2} parent=0 // loop_footer
    %s13 = sadd.s32 1, %s9
  $region7: #{encoder_forward.2} parent=0 // loop_footer_branch
    %8 = sbr.rel target = $region3
  $region8: #{encoder_forward.2} parent=0 // loop_exit
    _

// kernel: encoder_forward.3
$region0: #{encoder_forward.3}
  #allocation0 [shape = 'u32[]', space=smem, size = 0x4, offset = 0x4, fixed_abs, tag = 'smem constant byte address 0x4 - core index']
  #allocation1 [shape = 'u32[144,128]{1,0:T(1,128)}', space=vmem, size = 0x12000, scoped, tag = 'internal scratch']
  %s0 = inlined_call_operand.vmem [shape: bf16[8,7168], index: 0, kind: input, shape index: {}]
  %s1 = inlined_call_operand.vmem [shape: bf16[7168,128], index: 1, kind: input, shape index: {}]
  %s2 = inlined_call_operand.vmem [shape: f32[1,128], index: 2, kind: input, shape index: {}]
  %s3 = inlined_call_operand.vmem [shape: bf16[128,128], index: 3, kind: input, shape index: {}]
  %s4 = inlined_call_operand.vmem [shape: f32[1,128], index: 4, kind: input, shape index: {}]
  %s5 = inlined_call_operand.vmem [shape: bf16[128,128], index: 5, kind: input, shape index: {}]
  %s6 = inlined_call_operand.vmem [shape: bf16[128,128], index: 6, kind: input, shape index: {}]
  %s7 = inlined_call_operand.vmem [shape: bf16[128,128], index: 7, kind: input, shape index: {}]
  %s8 = inlined_call_operand.vmem [shape: bf16[128,128], index: 8, kind: input, shape index: {}]
  %s9 = inlined_call_operand.vmem [shape: bf16[128,128], index: 9, kind: input, shape index: {}]
  %s10 = inlined_call_operand.vmem [shape: f32[1,128], index: 10, kind: input, shape index: {}]
  %s11 = inlined_call_operand.vmem [shape: f32[8,128], index: 11, kind: output, shape index: {}]
  %s12 = sld [smem:[#allocation0]]
  $region54: #{encoder_forward.3} parent=0
    _
  %s14 = ssub.s32 1, %s12
  %s15 = scalar_select 0, %s14, %s12
  // Predicated region
  $region2: #{encoder_forward.3} parent=0 // pred_check
    _
  $region3: #{encoder_forward.3} parent=0 // pred_check_branch
    %17 = sbr.rel (0) target = $region5
  $region4: #{encoder_forward.3} parent=0 // pred_region
    _
  $region5: #{encoder_forward.3} parent=0 // pred_fallthru
    _
  // Predicated region
  $region6: #{encoder_forward.3} parent=0 // pred_check
    _
  $region7: #{encoder_forward.3} parent=0 // pred_check_branch
    %19 = sbr.rel (0) target = $region9
  $region8: #{encoder_forward.3} parent=0 // pred_region
    _
  $region9: #{encoder_forward.3} parent=0 // pred_fallthru
    _
  // Predicated region
  $region10: #{encoder_forward.3} parent=0 // pred_check
    _
  $region11: #{encoder_forward.3} parent=0 // pred_check_branch
    %21 = sbr.rel (0) target = $region13
  $region12: #{encoder_forward.3} parent=0 // pred_region
    _
  $region13: #{encoder_forward.3} parent=0 // pred_fallthru
    _
  // Predicated region
  $region14: #{encoder_forward.3} parent=0 // pred_check
    _
  $region15: #{encoder_forward.3} parent=0 // pred_check_branch
    %23 = sbr.rel (0) target = $region17
  $region16: #{encoder_forward.3} parent=0 // pred_region
    _
  $region17: #{encoder_forward.3} parent=0 // pred_fallthru
    _
  // Predicated region
  $region18: #{encoder_forward.3} parent=0 // pred_check
    _
  $region19: #{encoder_forward.3} parent=0 // pred_check_branch
    %25 = sbr.rel (0) target = $region21
  $region20: #{encoder_forward.3} parent=0 // pred_region
    _
  $region21: #{encoder_forward.3} parent=0 // pred_fallthru
    _
  // Predicated region
  $region22: #{encoder_forward.3} parent=0 // pred_check
    _
  $region23: #{encoder_forward.3} parent=0 // pred_check_branch
    %27 = sbr.rel (0) target = $region25
  $region24: #{encoder_forward.3} parent=0 // pred_region
    _
  $region25: #{encoder_forward.3} parent=0 // pred_fallthru
    _
  // Predicated region
  $region26: #{encoder_forward.3} parent=0 // pred_check
    _
  $region27: #{encoder_forward.3} parent=0 // pred_check_branch
    %29 = sbr.rel (0) target = $region29
  $region28: #{encoder_forward.3} parent=0 // pred_region
    _
  $region29: #{encoder_forward.3} parent=0 // pred_fallthru
    _
  // Predicated region
  $region30: #{encoder_forward.3} parent=0 // pred_check
    _
  $region31: #{encoder_forward.3} parent=0 // pred_check_branch
    %31 = sbr.rel (0) target = $region33
  $region32: #{encoder_forward.3} parent=0 // pred_region
    _
  $region33: #{encoder_forward.3} parent=0 // pred_fallthru
    _
  // Predicated region
  $region34: #{encoder_forward.3} parent=0 // pred_check
    _
  $region35: #{encoder_forward.3} parent=0 // pred_check_branch
    %33 = sbr.rel (0) target = $region37
  $region36: #{encoder_forward.3} parent=0 // pred_region
    _
  $region37: #{encoder_forward.3} parent=0 // pred_fallthru
    _
  // Predicated region
  $region38: #{encoder_forward.3} parent=0 // pred_check
    _
  $region39: #{encoder_forward.3} parent=0 // pred_check_branch
    %35 = sbr.rel (0) target = $region41
  $region40: #{encoder_forward.3} parent=0 // pred_region
    _
  $region41: #{encoder_forward.3} parent=0 // pred_fallthru
    _
  // Predicated region
  $region42: #{encoder_forward.3} parent=0 // pred_check
    _
  $region43: #{encoder_forward.3} parent=0 // pred_check_branch
    %37 = sbr.rel (0) target = $region45
  $region44: #{encoder_forward.3} parent=0 // pred_region
    _
  $region45: #{encoder_forward.3} parent=0 // pred_fallthru
    _
  %v39 = vld [vmem:[%s0] sm:$0xff]
  %v40 = vld [vmem:[%s0 + $0x8] sm:$0xff]
  %v41 = vld [vmem:[%s0 + $0x10] sm:$0xff]
  %v42 = vld [vmem:[%s0 + $0x18] sm:$0xff]
  %v43 = vld [vmem:[%s0 + $0x20] sm:$0xff]
  %v44 = vld [vmem:[%s0 + $0x28] sm:$0xff]
  %v45 = vld [vmem:[%s0 + $0x30] sm:$0xff]
  %v46 = vld [vmem:[%s0 + $0x38] sm:$0xff]
  %v47 = vld [vmem:[%s0 + $0x40] sm:$0xff]
  %v48 = vld [vmem:[%s0 + $0x48] sm:$0xff]
  %v49 = vld [vmem:[%s0 + $0x50] sm:$0xff]
  %v50 = vld [vmem:[%s0 + $0x58] sm:$0xff]
  %v51 = vld [vmem:[%s0 + $0x60] sm:$0xff]
  %v52 = vld [vmem:[%s0 + $0x68] sm:$0xff]
  %v53 = vld [vmem:[%s0 + $0x70] sm:$0xff]
  %v54 = vld [vmem:[%s0 + $0x78] sm:$0xff]
  %v55 = vld [vmem:[%s0 + $0x80] sm:$0xff]
  %v56 = vld [vmem:[%s0 + $0x88] sm:$0xff]
  %v57 = vld [vmem:[%s0 + $0x90] sm:$0xff]
  %v58 = vld [vmem:[%s0 + $0x98] sm:$0xff]
  %v59 = vld [vmem:[%s0 + $0xa0] sm:$0xff]
  %v60 = vld [vmem:[%s0 + $0xa8] sm:$0xff]
  %v61 = vld [vmem:[%s0 + $0xb0] sm:$0xff]
  %v62 = vld [vmem:[%s0 + $0xb8] sm:$0xff]
  %v63 = vld [vmem:[%s0 + $0xc0] sm:$0xff]
  %v64 = vld [vmem:[%s0 + $0xc8] sm:$0xff]
  %v65 = vld [vmem:[%s0 + $0xd0] sm:$0xff]
  %v66 = vld [vmem:[%s0 + $0xd8] sm:$0xff]
  %v67 = vld [vmem:[%s1] sm:$0xf]
  %v68 = vld [vmem:[%s1 + $0x4] sm:$0xf]
  %v69 = vld [vmem:[%s1 + $0x8] sm:$0xf]
  %v70 = vld [vmem:[%s1 + $0xc] sm:$0xf]
  %v71 = vld [vmem:[%s1 + $0x10] sm:$0xf]
  %v72 = vld [vmem:[%s1 + $0x14] sm:$0xf]
  %v73 = vld [vmem:[%s1 + $0x18] sm:$0xf]
  %v74 = vld [vmem:[%s1 + $0x1c] sm:$0xf]
  %v75 = vld [vmem:[%s1 + $0x20] sm:$0xf]
  %v76 = vld [vmem:[%s1 + $0x24] sm:$0xf]
  %v77 = vld [vmem:[%s1 + $0x28] sm:$0xf]
  %v78 = vld [vmem:[%s1 + $0x2c] sm:$0xf]
  %v79 = vld [vmem:[%s1 + $0x30] sm:$0xf]
  %v80 = vld [vmem:[%s1 + $0x34] sm:$0xf]
  %v81 = vld [vmem:[%s1 + $0x38] sm:$0xf]
  %v82 = vld [vmem:[%s1 + $0x3c] sm:$0xf]
  %v83 = vld [vmem:[%s1 + $0x40] sm:$0xf]
  %v84 = vld [vmem:[%s1 + $0x44] sm:$0xf]
  %v85 = vld [vmem:[%s1 + $0x48] sm:$0xf]
  %v86 = vld [vmem:[%s1 + $0x4c] sm:$0xf]
  %v87 = vld [vmem:[%s1 + $0x50] sm:$0xf]
  %v88 = vld [vmem:[%s1 + $0x54] sm:$0xf]
  %v89 = vld [vmem:[%s1 + $0x58] sm:$0xf]
  %v90 = vld [vmem:[%s1 + $0x5c] sm:$0xf]
  %v91 = vld [vmem:[%s1 + $0x60] sm:$0xf]
  %v92 = vld [vmem:[%s1 + $0x64] sm:$0xf]
  %v93 = vld [vmem:[%s1 + $0x68] sm:$0xf]
  %v94 = vld [vmem:[%s1 + $0x6c] sm:$0xf]
  %v95 = vld [vmem:[%s1 + $0x70] sm:$0xf]
  %v96 = vld [vmem:[%s1 + $0x74] sm:$0xf]
  %v97 = vld [vmem:[%s1 + $0x78] sm:$0xf]
  %v98 = vld [vmem:[%s1 + $0x7c] sm:$0xf]
  %v99 = vld [vmem:[%s1 + $0x80] sm:$0xf]
  %v100 = vld [vmem:[%s1 + $0x84] sm:$0xf]
  %v101 = vld [vmem:[%s1 + $0x88] sm:$0xf]
  %v102 = vld [vmem:[%s1 + $0x8c] sm:$0xf]
  %v103 = vld [vmem:[%s1 + $0x90] sm:$0xf]
  %v104 = vld [vmem:[%s1 + $0x94] sm:$0xf]
  %v105 = vld [vmem:[%s1 + $0x98] sm:$0xf]
  %v106 = vld [vmem:[%s1 + $0x9c] sm:$0xf]
  %v107 = vld [vmem:[%s1 + $0xa0] sm:$0xf]
  %v108 = vld [vmem:[%s1 + $0xa4] sm:$0xf]
  %v109 = vld [vmem:[%s1 + $0xa8] sm:$0xf]
  %v110 = vld [vmem:[%s1 + $0xac] sm:$0xf]
  %v111 = vld [vmem:[%s1 + $0xb0] sm:$0xf]
  %v112 = vld [vmem:[%s1 + $0xb4] sm:$0xf]
  %v113 = vld [vmem:[%s1 + $0xb8] sm:$0xf]
  %v114 = vld [vmem:[%s1 + $0xbc] sm:$0xf]
  %v115 = vld [vmem:[%s1 + $0xc0] sm:$0xf]
  %v116 = vld [vmem:[%s1 + $0xc4] sm:$0xf]
  %v117 = vld [vmem:[%s1 + $0xc8] sm:$0xf]
  %v118 = vld [vmem:[%s1 + $0xcc] sm:$0xf]
  %v119 = vld [vmem:[%s1 + $0xd0] sm:$0xf]
  %v120 = vld [vmem:[%s1 + $0xd4] sm:$0xf]
  %v121 = vld [vmem:[%s1 + $0xd8] sm:$0xf]
  %v122 = vld [vmem:[%s1 + $0xdc] sm:$0xf]
  %v123 = vld [vmem:[%s1 + $0xe0] sm:$0xf]
  %v124 = vld [vmem:[%s1 + $0xe4] sm:$0xf]
  %v125 = vld [vmem:[%s1 + $0xe8] sm:$0xf]
  %v126 = vld [vmem:[%s1 + $0xec] sm:$0xf]
  %v127 = vld [vmem:[%s1 + $0xf0] sm:$0xf]
  %v128 = vld [vmem:[%s1 + $0xf4] sm:$0xf]
  %v129 = vld [vmem:[%s1 + $0xf8] sm:$0xf]
  %v130 = vld [vmem:[%s1 + $0xfc] sm:$0xf]
  %v131 = vld [vmem:[%s1 + $0x100] sm:$0xf]
  %v132 = vld [vmem:[%s1 + $0x104] sm:$0xf]
  %v133 = vld [vmem:[%s1 + $0x108] sm:$0xf]
  %v134 = vld [vmem:[%s1 + $0x10c] sm:$0xf]
  %v135 = vld [vmem:[%s1 + $0x110] sm:$0xf]
  %v136 = vld [vmem:[%s1 + $0x114] sm:$0xf]
  %v137 = vld [vmem:[%s1 + $0x118] sm:$0xf]
  %v138 = vld [vmem:[%s1 + $0x11c] sm:$0xf]
  %v139 = vld [vmem:[%s1 + $0x120] sm:$0xf]
  %v140 = vld [vmem:[%s1 + $0x124] sm:$0xf]
  %v141 = vld [vmem:[%s1 + $0x128] sm:$0xf]
  %v142 = vld [vmem:[%s1 + $0x12c] sm:$0xf]
  %v143 = vld [vmem:[%s1 + $0x130] sm:$0xf]
  %v144 = vld [vmem:[%s1 + $0x134] sm:$0xf]
  %v145 = vld [vmem:[%s1 + $0x138] sm:$0xf]
  %v146 = vld [vmem:[%s1 + $0x13c] sm:$0xf]
  %v147 = vld [vmem:[%s1 + $0x140] sm:$0xf]
  %v148 = vld [vmem:[%s1 + $0x144] sm:$0xf]
  %v149 = vld [vmem:[%s1 + $0x148] sm:$0xf]
  %v150 = vld [vmem:[%s1 + $0x14c] sm:$0xf]
  %v151 = vld [vmem:[%s1 + $0x150] sm:$0xf]
  %v152 = vld [vmem:[%s1 + $0x154] sm:$0xf]
  %v153 = vld [vmem:[%s1 + $0x158] sm:$0xf]
  %v154 = vld [vmem:[%s1 + $0x15c] sm:$0xf]
  %v155 = vld [vmem:[%s1 + $0x160] sm:$0xf]
  %v156 = vld [vmem:[%s1 + $0x164] sm:$0xf]
  %v157 = vld [vmem:[%s1 + $0x168] sm:$0xf]
  %v158 = vld [vmem:[%s1 + $0x16c] sm:$0xf]
  %v159 = vld [vmem:[%s1 + $0x170] sm:$0xf]
  %v160 = vld [vmem:[%s1 + $0x174] sm:$0xf]
  %v161 = vld [vmem:[%s1 + $0x178] sm:$0xf]
  %v162 = vld [vmem:[%s1 + $0x17c] sm:$0xf]
  %v163 = vld [vmem:[%s1 + $0x180] sm:$0xf]
  %v164 = vld [vmem:[%s1 + $0x184] sm:$0xf]
  %v165 = vld [vmem:[%s1 + $0x188] sm:$0xf]
  %v166 = vld [vmem:[%s1 + $0x18c] sm:$0xf]
  %v167 = vld [vmem:[%s1 + $0x190] sm:$0xf]
  %v168 = vld [vmem:[%s1 + $0x194] sm:$0xf]
  %v169 = vld [vmem:[%s1 + $0x198] sm:$0xf]
  %v170 = vld [vmem:[%s1 + $0x19c] sm:$0xf]
  %v171 = vld [vmem:[%s1 + $0x1a0] sm:$0xf]
  %v172 = vld [vmem:[%s1 + $0x1a4] sm:$0xf]
  %v173 = vld [vmem:[%s1 + $0x1a8] sm:$0xf]
  %v174 = vld [vmem:[%s1 + $0x1ac] sm:$0xf]
  %v175 = vld [vmem:[%s1 + $0x1b0] sm:$0xf]
  %v176 = vld [vmem:[%s1 + $0x1b4] sm:$0xf]
  %v177 = vld [vmem:[%s1 + $0x1b8] sm:$0xf]
  %v178 = vld [vmem:[%s1 + $0x1bc] sm:$0xf]
  %v179 = vld [vmem:[%s1 + $0x1c0] sm:$0xf]
  %v180 = vld [vmem:[%s1 + $0x1c4] sm:$0xf]
  %v181 = vld [vmem:[%s1 + $0x1c8] sm:$0xf]
  %v182 = vld [vmem:[%s1 + $0x1cc] sm:$0xf]
  %v183 = vld [vmem:[%s1 + $0x1d0] sm:$0xf]
  %v184 = vld [vmem:[%s1 + $0x1d4] sm:$0xf]
  %v185 = vld [vmem:[%s1 + $0x1d8] sm:$0xf]
  %v186 = vld [vmem:[%s1 + $0x1dc] sm:$0xf]
  %v187 = vld [vmem:[%s1 + $0x1e0] sm:$0xf]
  %v188 = vld [vmem:[%s1 + $0x1e4] sm:$0xf]
  %v189 = vld [vmem:[%s1 + $0x1e8] sm:$0xf]
  %v190 = vld [vmem:[%s1 + $0x1ec] sm:$0xf]
  %v191 = vld [vmem:[%s1 + $0x1f0] sm:$0xf]
  %v192 = vld [vmem:[%s1 + $0x1f4] sm:$0xf]
  %v193 = vld [vmem:[%s1 + $0x1f8] sm:$0xf]
  %v194 = vld [vmem:[%s1 + $0x1fc] sm:$0xf]
  %v195 = vld [vmem:[%s1 + $0x200] sm:$0xf]
  %v196 = vld [vmem:[%s1 + $0x204] sm:$0xf]
  %v197 = vld [vmem:[%s1 + $0x208] sm:$0xf]
  %v198 = vld [vmem:[%s1 + $0x20c] sm:$0xf]
  %v199 = vld [vmem:[%s1 + $0x210] sm:$0xf]
  %v200 = vld [vmem:[%s1 + $0x214] sm:$0xf]
  %v201 = vld [vmem:[%s1 + $0x218] sm:$0xf]
  %v202 = vld [vmem:[%s1 + $0x21c] sm:$0xf]
  %v203 = vld [vmem:[%s1 + $0x220] sm:$0xf]
  %v204 = vld [vmem:[%s1 + $0x224] sm:$0xf]
  %v205 = vld [vmem:[%s1 + $0x228] sm:$0xf]
  %v206 = vld [vmem:[%s1 + $0x22c] sm:$0xf]
  %v207 = vld [vmem:[%s1 + $0x230] sm:$0xf]
  %v208 = vld [vmem:[%s1 + $0x234] sm:$0xf]
  %v209 = vld [vmem:[%s1 + $0x238] sm:$0xf]
  %v210 = vld [vmem:[%s1 + $0x23c] sm:$0xf]
  %v211 = vld [vmem:[%s1 + $0x240] sm:$0xf]
  %v212 = vld [vmem:[%s1 + $0x244] sm:$0xf]
  %v213 = vld [vmem:[%s1 + $0x248] sm:$0xf]
  %v214 = vld [vmem:[%s1 + $0x24c] sm:$0xf]
  %v215 = vld [vmem:[%s1 + $0x250] sm:$0xf]
  %v216 = vld [vmem:[%s1 + $0x254] sm:$0xf]
  %v217 = vld [vmem:[%s1 + $0x258] sm:$0xf]
  %v218 = vld [vmem:[%s1 + $0x25c] sm:$0xf]
  %v219 = vld [vmem:[%s1 + $0x260] sm:$0xf]
  %v220 = vld [vmem:[%s1 + $0x264] sm:$0xf]
  %v221 = vld [vmem:[%s1 + $0x268] sm:$0xf]
  %v222 = vld [vmem:[%s1 + $0x26c] sm:$0xf]
  %v223 = vld [vmem:[%s1 + $0x270] sm:$0xf]
  %v224 = vld [vmem:[%s1 + $0x274] sm:$0xf]
  %v225 = vld [vmem:[%s1 + $0x278] sm:$0xf]
  %v226 = vld [vmem:[%s1 + $0x27c] sm:$0xf]
  %v227 = vld [vmem:[%s1 + $0x280] sm:$0xf]
  %v228 = vld [vmem:[%s1 + $0x284] sm:$0xf]
  %v229 = vld [vmem:[%s1 + $0x288] sm:$0xf]
  %v230 = vld [vmem:[%s1 + $0x28c] sm:$0xf]
  %v231 = vld [vmem:[%s1 + $0x290] sm:$0xf]
  %v232 = vld [vmem:[%s1 + $0x294] sm:$0xf]
  %v233 = vld [vmem:[%s1 + $0x298] sm:$0xf]
  %v234 = vld [vmem:[%s1 + $0x29c] sm:$0xf]
  %v235 = vld [vmem:[%s1 + $0x2a0] sm:$0xf]
  %v236 = vld [vmem:[%s1 + $0x2a4] sm:$0xf]
  %v237 = vld [vmem:[%s1 + $0x2a8] sm:$0xf]
  %v238 = vld [vmem:[%s1 + $0x2ac] sm:$0xf]
  %v239 = vld [vmem:[%s1 + $0x2b0] sm:$0xf]
  %v240 = vld [vmem:[%s1 + $0x2b4] sm:$0xf]
  %v241 = vld [vmem:[%s1 + $0x2b8] sm:$0xf]
  %v242 = vld [vmem:[%s1 + $0x2bc] sm:$0xf]
  %v243 = vld [vmem:[%s1 + $0x2c0] sm:$0xf]
  %v244 = vld [vmem:[%s1 + $0x2c4] sm:$0xf]
  %v245 = vld [vmem:[%s1 + $0x2c8] sm:$0xf]
  %v246 = vld [vmem:[%s1 + $0x2cc] sm:$0xf]
  %v247 = vld [vmem:[%s1 + $0x2d0] sm:$0xf]
  %v248 = vld [vmem:[%s1 + $0x2d4] sm:$0xf]
  %v249 = vld [vmem:[%s1 + $0x2d8] sm:$0xf]
  %v250 = vld [vmem:[%s1 + $0x2dc] sm:$0xf]
  %v251 = vld [vmem:[%s1 + $0x2e0] sm:$0xf]
  %v252 = vld [vmem:[%s1 + $0x2e4] sm:$0xf]
  %v253 = vld [vmem:[%s1 + $0x2e8] sm:$0xf]
  %v254 = vld [vmem:[%s1 + $0x2ec] sm:$0xf]
  %v255 = vld [vmem:[%s1 + $0x2f0] sm:$0xf]
  %v256 = vld [vmem:[%s1 + $0x2f4] sm:$0xf]
  %v257 = vld [vmem:[%s1 + $0x2f8] sm:$0xf]
  %v258 = vld [vmem:[%s1 + $0x2fc] sm:$0xf]
  %v259 = vld [vmem:[%s1 + $0x300] sm:$0xf]
  %v260 = vld [vmem:[%s1 + $0x304] sm:$0xf]
  %v261 = vld [vmem:[%s1 + $0x308] sm:$0xf]
  %v262 = vld [vmem:[%s1 + $0x30c] sm:$0xf]
  %v263 = vld [vmem:[%s1 + $0x310] sm:$0xf]
  %v264 = vld [vmem:[%s1 + $0x314] sm:$0xf]
  %v265 = vld [vmem:[%s1 + $0x318] sm:$0xf]
  %v266 = vld [vmem:[%s1 + $0x31c] sm:$0xf]
  %v267 = vld [vmem:[%s1 + $0x320] sm:$0xf]
  %v268 = vld [vmem:[%s1 + $0x324] sm:$0xf]
  %v269 = vld [vmem:[%s1 + $0x328] sm:$0xf]
  %v270 = vld [vmem:[%s1 + $0x32c] sm:$0xf]
  %v271 = vld [vmem:[%s1 + $0x330] sm:$0xf]
  %v272 = vld [vmem:[%s1 + $0x334] sm:$0xf]
  %v273 = vld [vmem:[%s1 + $0x338] sm:$0xf]
  %v274 = vld [vmem:[%s1 + $0x33c] sm:$0xf]
  %v275 = vld [vmem:[%s1 + $0x340] sm:$0xf]
  %v276 = vld [vmem:[%s1 + $0x344] sm:$0xf]
  %v277 = vld [vmem:[%s1 + $0x348] sm:$0xf]
  %v278 = vld [vmem:[%s1 + $0x34c] sm:$0xf]
  %v279 = vld [vmem:[%s1 + $0x350] sm:$0xf]
  %v280 = vld [vmem:[%s1 + $0x354] sm:$0xf]
  %v281 = vld [vmem:[%s1 + $0x358] sm:$0xf]
  %v282 = vld [vmem:[%s1 + $0x35c] sm:$0xf]
  %v283 = vld [vmem:[%s1 + $0x360] sm:$0xf]
  %v284 = vld [vmem:[%s1 + $0x364] sm:$0xf]
  %v285 = vld [vmem:[%s1 + $0x368] sm:$0xf]
  %v286 = vld [vmem:[%s1 + $0x36c] sm:$0xf]
  %v287 = vld [vmem:[%s1 + $0x370] sm:$0xf]
  %v288 = vld [vmem:[%s1 + $0x374] sm:$0xf]
  %v289 = vld [vmem:[%s1 + $0x378] sm:$0xf]
  %v290 = vld [vmem:[%s1 + $0x37c] sm:$0xf]
  %v291 = vld [vmem:[%s1 + $0x380] sm:$0xf]
  %v292 = vld [vmem:[%s1 + $0x384] sm:$0xf]
  %v293 = vld [vmem:[%s1 + $0x388] sm:$0xf]
  %v294 = vld [vmem:[%s1 + $0x38c] sm:$0xf]
  %v295 = vld [vmem:[%s1 + $0x390] sm:$0xf]
  %v296 = vld [vmem:[%s1 + $0x394] sm:$0xf]
  %v297 = vld [vmem:[%s1 + $0x398] sm:$0xf]
  %v298 = vld [vmem:[%s1 + $0x39c] sm:$0xf]
  %v299 = vld [vmem:[%s1 + $0x3a0] sm:$0xf]
  %v300 = vld [vmem:[%s1 + $0x3a4] sm:$0xf]
  %v301 = vld [vmem:[%s1 + $0x3a8] sm:$0xf]
  %v302 = vld [vmem:[%s1 + $0x3ac] sm:$0xf]
  %v303 = vld [vmem:[%s1 + $0x3b0] sm:$0xf]
  %v304 = vld [vmem:[%s1 + $0x3b4] sm:$0xf]
  %v305 = vld [vmem:[%s1 + $0x3b8] sm:$0xf]
  %v306 = vld [vmem:[%s1 + $0x3bc] sm:$0xf]
  %v307 = vld [vmem:[%s1 + $0x3c0] sm:$0xf]
  %v308 = vld [vmem:[%s1 + $0x3c4] sm:$0xf]
  %v309 = vld [vmem:[%s1 + $0x3c8] sm:$0xf]
  %v310 = vld [vmem:[%s1 + $0x3cc] sm:$0xf]
  %v311 = vld [vmem:[%s1 + $0x3d0] sm:$0xf]
  %v312 = vld [vmem:[%s1 + $0x3d4] sm:$0xf]
  %v313 = vld [vmem:[%s1 + $0x3d8] sm:$0xf]
  %v314 = vld [vmem:[%s1 + $0x3dc] sm:$0xf]
  %v315 = vld [vmem:[%s1 + $0x3e0] sm:$0xf]
  %v316 = vld [vmem:[%s1 + $0x3e4] sm:$0xf]
  %v317 = vld [vmem:[%s1 + $0x3e8] sm:$0xf]
  %v318 = vld [vmem:[%s1 + $0x3ec] sm:$0xf]
  %v319 = vld [vmem:[%s1 + $0x3f0] sm:$0xf]
  %v320 = vld [vmem:[%s1 + $0x3f4] sm:$0xf]
  %v321 = vld [vmem:[%s1 + $0x3f8] sm:$0xf]
  %v322 = vld [vmem:[%s1 + $0x3fc] sm:$0xf]
  %v323 = vld [vmem:[%s1 + $0x400] sm:$0xf]
  %v324 = vld [vmem:[%s1 + $0x404] sm:$0xf]
  %v325 = vld [vmem:[%s1 + $0x408] sm:$0xf]
  %v326 = vld [vmem:[%s1 + $0x40c] sm:$0xf]
  %v327 = vld [vmem:[%s1 + $0x410] sm:$0xf]
  %v328 = vld [vmem:[%s1 + $0x414] sm:$0xf]
  %v329 = vld [vmem:[%s1 + $0x418] sm:$0xf]
  %v330 = vld [vmem:[%s1 + $0x41c] sm:$0xf]
  %v331 = vld [vmem:[%s1 + $0x420] sm:$0xf]
  %v332 = vld [vmem:[%s1 + $0x424] sm:$0xf]
  %v333 = vld [vmem:[%s1 + $0x428] sm:$0xf]
  %v334 = vld [vmem:[%s1 + $0x42c] sm:$0xf]
  %v335 = vld [vmem:[%s1 + $0x430] sm:$0xf]
  %v336 = vld [vmem:[%s1 + $0x434] sm:$0xf]
  %v337 = vld [vmem:[%s1 + $0x438] sm:$0xf]
  %v338 = vld [vmem:[%s1 + $0x43c] sm:$0xf]
  %v339 = vld [vmem:[%s1 + $0x440] sm:$0xf]
  %v340 = vld [vmem:[%s1 + $0x444] sm:$0xf]
  %v341 = vld [vmem:[%s1 + $0x448] sm:$0xf]
  %v342 = vld [vmem:[%s1 + $0x44c] sm:$0xf]
  %v343 = vld [vmem:[%s1 + $0x450] sm:$0xf]
  %v344 = vld [vmem:[%s1 + $0x454] sm:$0xf]
  %v345 = vld [vmem:[%s1 + $0x458] sm:$0xf]
  %v346 = vld [vmem:[%s1 + $0x45c] sm:$0xf]
  %v347 = vld [vmem:[%s1 + $0x460] sm:$0xf]
  %v348 = vld [vmem:[%s1 + $0x464] sm:$0xf]
  %v349 = vld [vmem:[%s1 + $0x468] sm:$0xf]
  %v350 = vld [vmem:[%s1 + $0x46c] sm:$0xf]
  %v351 = vld [vmem:[%s1 + $0x470] sm:$0xf]
  %v352 = vld [vmem:[%s1 + $0x474] sm:$0xf]
  %v353 = vld [vmem:[%s1 + $0x478] sm:$0xf]
  %v354 = vld [vmem:[%s1 + $0x47c] sm:$0xf]
  %v355 = vld [vmem:[%s1 + $0x480] sm:$0xf]
  %v356 = vld [vmem:[%s1 + $0x484] sm:$0xf]
  %v357 = vld [vmem:[%s1 + $0x488] sm:$0xf]
  %v358 = vld [vmem:[%s1 + $0x48c] sm:$0xf]
  %v359 = vld [vmem:[%s1 + $0x490] sm:$0xf]
  %v360 = vld [vmem:[%s1 + $0x494] sm:$0xf]
  %v361 = vld [vmem:[%s1 + $0x498] sm:$0xf]
  %v362 = vld [vmem:[%s1 + $0x49c] sm:$0xf]
  %v363 = vld [vmem:[%s1 + $0x4a0] sm:$0xf]
  %v364 = vld [vmem:[%s1 + $0x4a4] sm:$0xf]
  %v365 = vld [vmem:[%s1 + $0x4a8] sm:$0xf]
  %v366 = vld [vmem:[%s1 + $0x4ac] sm:$0xf]
  %v367 = vld [vmem:[%s1 + $0x4b0] sm:$0xf]
  %v368 = vld [vmem:[%s1 + $0x4b4] sm:$0xf]
  %v369 = vld [vmem:[%s1 + $0x4b8] sm:$0xf]
  %v370 = vld [vmem:[%s1 + $0x4bc] sm:$0xf]
  %v371 = vld [vmem:[%s1 + $0x4c0] sm:$0xf]
  %v372 = vld [vmem:[%s1 + $0x4c4] sm:$0xf]
  %v373 = vld [vmem:[%s1 + $0x4c8] sm:$0xf]
  %v374 = vld [vmem:[%s1 + $0x4cc] sm:$0xf]
  %v375 = vld [vmem:[%s1 + $0x4d0] sm:$0xf]
  %v376 = vld [vmem:[%s1 + $0x4d4] sm:$0xf]
  %v377 = vld [vmem:[%s1 + $0x4d8] sm:$0xf]
  %v378 = vld [vmem:[%s1 + $0x4dc] sm:$0xf]
  %v379 = vld [vmem:[%s1 + $0x4e0] sm:$0xf]
  %v380 = vld [vmem:[%s1 + $0x4e4] sm:$0xf]
  %v381 = vld [vmem:[%s1 + $0x4e8] sm:$0xf]
  %v382 = vld [vmem:[%s1 + $0x4ec] sm:$0xf]
  %v383 = vld [vmem:[%s1 + $0x4f0] sm:$0xf]
  %v384 = vld [vmem:[%s1 + $0x4f4] sm:$0xf]
  %v385 = vld [vmem:[%s1 + $0x4f8] sm:$0xf]
  %v386 = vld [vmem:[%s1 + $0x4fc] sm:$0xf]
  %v387 = vld [vmem:[%s1 + $0x500] sm:$0xf]
  %v388 = vld [vmem:[%s1 + $0x504] sm:$0xf]
  %v389 = vld [vmem:[%s1 + $0x508] sm:$0xf]
  %v390 = vld [vmem:[%s1 + $0x50c] sm:$0xf]
  %v391 = vld [vmem:[%s1 + $0x510] sm:$0xf]
  %v392 = vld [vmem:[%s1 + $0x514] sm:$0xf]
  %v393 = vld [vmem:[%s1 + $0x518] sm:$0xf]
  %v394 = vld [vmem:[%s1 + $0x51c] sm:$0xf]
  %v395 = vld [vmem:[%s1 + $0x520] sm:$0xf]
  %v396 = vld [vmem:[%s1 + $0x524] sm:$0xf]
  %v397 = vld [vmem:[%s1 + $0x528] sm:$0xf]
  %v398 = vld [vmem:[%s1 + $0x52c] sm:$0xf]
  %v399 = vld [vmem:[%s1 + $0x530] sm:$0xf]
  %v400 = vld [vmem:[%s1 + $0x534] sm:$0xf]
  %v401 = vld [vmem:[%s1 + $0x538] sm:$0xf]
  %v402 = vld [vmem:[%s1 + $0x53c] sm:$0xf]
  %v403 = vld [vmem:[%s1 + $0x540] sm:$0xf]
  %v404 = vld [vmem:[%s1 + $0x544] sm:$0xf]
  %v405 = vld [vmem:[%s1 + $0x548] sm:$0xf]
  %v406 = vld [vmem:[%s1 + $0x54c] sm:$0xf]
  %v407 = vld [vmem:[%s1 + $0x550] sm:$0xf]
  %v408 = vld [vmem:[%s1 + $0x554] sm:$0xf]
  %v409 = vld [vmem:[%s1 + $0x558] sm:$0xf]
  %v410 = vld [vmem:[%s1 + $0x55c] sm:$0xf]
  %v411 = vld [vmem:[%s1 + $0x560] sm:$0xf]
  %v412 = vld [vmem:[%s1 + $0x564] sm:$0xf]
  %v413 = vld [vmem:[%s1 + $0x568] sm:$0xf]
  %v414 = vld [vmem:[%s1 + $0x56c] sm:$0xf]
  %v415 = vld [vmem:[%s1 + $0x570] sm:$0xf]
  %v416 = vld [vmem:[%s1 + $0x574] sm:$0xf]
  %v417 = vld [vmem:[%s1 + $0x578] sm:$0xf]
  %v418 = vld [vmem:[%s1 + $0x57c] sm:$0xf]
  %v419 = vld [vmem:[%s1 + $0x580] sm:$0xf]
  %v420 = vld [vmem:[%s1 + $0x584] sm:$0xf]
  %v421 = vld [vmem:[%s1 + $0x588] sm:$0xf]
  %v422 = vld [vmem:[%s1 + $0x58c] sm:$0xf]
  %v423 = vld [vmem:[%s1 + $0x590] sm:$0xf]
  %v424 = vld [vmem:[%s1 + $0x594] sm:$0xf]
  %v425 = vld [vmem:[%s1 + $0x598] sm:$0xf]
  %v426 = vld [vmem:[%s1 + $0x59c] sm:$0xf]
  %v427 = vld [vmem:[%s1 + $0x5a0] sm:$0xf]
  %v428 = vld [vmem:[%s1 + $0x5a4] sm:$0xf]
  %v429 = vld [vmem:[%s1 + $0x5a8] sm:$0xf]
  %v430 = vld [vmem:[%s1 + $0x5ac] sm:$0xf]
  %v431 = vld [vmem:[%s1 + $0x5b0] sm:$0xf]
  %v432 = vld [vmem:[%s1 + $0x5b4] sm:$0xf]
  %v433 = vld [vmem:[%s1 + $0x5b8] sm:$0xf]
  %v434 = vld [vmem:[%s1 + $0x5bc] sm:$0xf]
  %v435 = vld [vmem:[%s1 + $0x5c0] sm:$0xf]
  %v436 = vld [vmem:[%s1 + $0x5c4] sm:$0xf]
  %v437 = vld [vmem:[%s1 + $0x5c8] sm:$0xf]
  %v438 = vld [vmem:[%s1 + $0x5cc] sm:$0xf]
  %v439 = vld [vmem:[%s1 + $0x5d0] sm:$0xf]
  %v440 = vld [vmem:[%s1 + $0x5d4] sm:$0xf]
  %v441 = vld [vmem:[%s1 + $0x5d8] sm:$0xf]
  %v442 = vld [vmem:[%s1 + $0x5dc] sm:$0xf]
  %v443 = vld [vmem:[%s1 + $0x5e0] sm:$0xf]
  %v444 = vld [vmem:[%s1 + $0x5e4] sm:$0xf]
  %v445 = vld [vmem:[%s1 + $0x5e8] sm:$0xf]
  %v446 = vld [vmem:[%s1 + $0x5ec] sm:$0xf]
  %v447 = vld [vmem:[%s1 + $0x5f0] sm:$0xf]
  %v448 = vld [vmem:[%s1 + $0x5f4] sm:$0xf]
  %v449 = vld [vmem:[%s1 + $0x5f8] sm:$0xf]
  %v450 = vld [vmem:[%s1 + $0x5fc] sm:$0xf]
  %v451 = vld [vmem:[%s1 + $0x600] sm:$0xf]
  %v452 = vld [vmem:[%s1 + $0x604] sm:$0xf]
  %v453 = vld [vmem:[%s1 + $0x608] sm:$0xf]
  %v454 = vld [vmem:[%s1 + $0x60c] sm:$0xf]
  %v455 = vld [vmem:[%s1 + $0x610] sm:$0xf]
  %v456 = vld [vmem:[%s1 + $0x614] sm:$0xf]
  %v457 = vld [vmem:[%s1 + $0x618] sm:$0xf]
  %v458 = vld [vmem:[%s1 + $0x61c] sm:$0xf]
  %v459 = vld [vmem:[%s1 + $0x620] sm:$0xf]
  %v460 = vld [vmem:[%s1 + $0x624] sm:$0xf]
  %v461 = vld [vmem:[%s1 + $0x628] sm:$0xf]
  %v462 = vld [vmem:[%s1 + $0x62c] sm:$0xf]
  %v463 = vld [vmem:[%s1 + $0x630] sm:$0xf]
  %v464 = vld [vmem:[%s1 + $0x634] sm:$0xf]
  %v465 = vld [vmem:[%s1 + $0x638] sm:$0xf]
  %v466 = vld [vmem:[%s1 + $0x63c] sm:$0xf]
  %v467 = vld [vmem:[%s1 + $0x640] sm:$0xf]
  %v468 = vld [vmem:[%s1 + $0x644] sm:$0xf]
  %v469 = vld [vmem:[%s1 + $0x648] sm:$0xf]
  %v470 = vld [vmem:[%s1 + $0x64c] sm:$0xf]
  %v471 = vld [vmem:[%s1 + $0x650] sm:$0xf]
  %v472 = vld [vmem:[%s1 + $0x654] sm:$0xf]
  %v473 = vld [vmem:[%s1 + $0x658] sm:$0xf]
  %v474 = vld [vmem:[%s1 + $0x65c] sm:$0xf]
  %v475 = vld [vmem:[%s1 + $0x660] sm:$0xf]
  %v476 = vld [vmem:[%s1 + $0x664] sm:$0xf]
  %v477 = vld [vmem:[%s1 + $0x668] sm:$0xf]
  %v478 = vld [vmem:[%s1 + $0x66c] sm:$0xf]
  %v479 = vld [vmem:[%s1 + $0x670] sm:$0xf]
  %v480 = vld [vmem:[%s1 + $0x674] sm:$0xf]
  %v481 = vld [vmem:[%s1 + $0x678] sm:$0xf]
  %v482 = vld [vmem:[%s1 + $0x67c] sm:$0xf]
  %v483 = vld [vmem:[%s1 + $0x680] sm:$0xf]
  %v484 = vld [vmem:[%s1 + $0x684] sm:$0xf]
  %v485 = vld [vmem:[%s1 + $0x688] sm:$0xf]
  %v486 = vld [vmem:[%s1 + $0x68c] sm:$0xf]
  %v487 = vld [vmem:[%s1 + $0x690] sm:$0xf]
  %v488 = vld [vmem:[%s1 + $0x694] sm:$0xf]
  %v489 = vld [vmem:[%s1 + $0x698] sm:$0xf]
  %v490 = vld [vmem:[%s1 + $0x69c] sm:$0xf]
  %v491 = vld [vmem:[%s1 + $0x6a0] sm:$0xf]
  %v492 = vld [vmem:[%s1 + $0x6a4] sm:$0xf]
  %v493 = vld [vmem:[%s1 + $0x6a8] sm:$0xf]
  %v494 = vld [vmem:[%s1 + $0x6ac] sm:$0xf]
  %v495 = vld [vmem:[%s1 + $0x6b0] sm:$0xf]
  %v496 = vld [vmem:[%s1 + $0x6b4] sm:$0xf]
  %v497 = vld [vmem:[%s1 + $0x6b8] sm:$0xf]
  %v498 = vld [vmem:[%s1 + $0x6bc] sm:$0xf]
  %v499 = vld [vmem:[%s1 + $0x6c0] sm:$0xf]
  %v500 = vld [vmem:[%s1 + $0x6c4] sm:$0xf]
  %v501 = vld [vmem:[%s1 + $0x6c8] sm:$0xf]
  %v502 = vld [vmem:[%s1 + $0x6cc] sm:$0xf]
  %v503 = vld [vmem:[%s1 + $0x6d0] sm:$0xf]
  %v504 = vld [vmem:[%s1 + $0x6d4] sm:$0xf]
  %v505 = vld [vmem:[%s1 + $0x6d8] sm:$0xf]
  %v506 = vld [vmem:[%s1 + $0x6dc] sm:$0xf]
  %v507 = vld [vmem:[%s1 + $0x6e0] sm:$0xf]
  %v508 = vld [vmem:[%s1 + $0x6e4] sm:$0xf]
  %v509 = vld [vmem:[%s1 + $0x6e8] sm:$0xf]
  %v510 = vld [vmem:[%s1 + $0x6ec] sm:$0xf]
  %v511 = vld [vmem:[%s1 + $0x6f0] sm:$0xf]
  %v512 = vld [vmem:[%s1 + $0x6f4] sm:$0xf]
  %v513 = vld [vmem:[%s1 + $0x6f8] sm:$0xf]
  %v514 = vld [vmem:[%s1 + $0x6fc] sm:$0xf]
  %v515 = vld [vmem:[%s1 + $0x700] sm:$0xf]
  %v516 = vld [vmem:[%s1 + $0x704] sm:$0xf]
  %v517 = vld [vmem:[%s1 + $0x708] sm:$0xf]
  %v518 = vld [vmem:[%s1 + $0x70c] sm:$0xf]
  %v519 = vld [vmem:[%s1 + $0x710] sm:$0xf]
  %v520 = vld [vmem:[%s1 + $0x714] sm:$0xf]
  %v521 = vld [vmem:[%s1 + $0x718] sm:$0xf]
  %v522 = vld [vmem:[%s1 + $0x71c] sm:$0xf]
  %v523 = vld [vmem:[%s1 + $0x720] sm:$0xf]
  %v524 = vld [vmem:[%s1 + $0x724] sm:$0xf]
  %v525 = vld [vmem:[%s1 + $0x728] sm:$0xf]
  %v526 = vld [vmem:[%s1 + $0x72c] sm:$0xf]
  %v527 = vld [vmem:[%s1 + $0x730] sm:$0xf]
  %v528 = vld [vmem:[%s1 + $0x734] sm:$0xf]
  %v529 = vld [vmem:[%s1 + $0x738] sm:$0xf]
  %v530 = vld [vmem:[%s1 + $0x73c] sm:$0xf]
  %v531 = vld [vmem:[%s1 + $0x740] sm:$0xf]
  %v532 = vld [vmem:[%s1 + $0x744] sm:$0xf]
  %v533 = vld [vmem:[%s1 + $0x748] sm:$0xf]
  %v534 = vld [vmem:[%s1 + $0x74c] sm:$0xf]
  %v535 = vld [vmem:[%s1 + $0x750] sm:$0xf]
  %v536 = vld [vmem:[%s1 + $0x754] sm:$0xf]
  %v537 = vld [vmem:[%s1 + $0x758] sm:$0xf]
  %v538 = vld [vmem:[%s1 + $0x75c] sm:$0xf]
  %v539 = vld [vmem:[%s1 + $0x760] sm:$0xf]
  %v540 = vld [vmem:[%s1 + $0x764] sm:$0xf]
  %v541 = vld [vmem:[%s1 + $0x768] sm:$0xf]
  %v542 = vld [vmem:[%s1 + $0x76c] sm:$0xf]
  %v543 = vld [vmem:[%s1 + $0x770] sm:$0xf]
  %v544 = vld [vmem:[%s1 + $0x774] sm:$0xf]
  %v545 = vld [vmem:[%s1 + $0x778] sm:$0xf]
  %v546 = vld [vmem:[%s1 + $0x77c] sm:$0xf]
  %v547 = vld [vmem:[%s1 + $0x780] sm:$0xf]
  %v548 = vld [vmem:[%s1 + $0x784] sm:$0xf]
  %v549 = vld [vmem:[%s1 + $0x788] sm:$0xf]
  %v550 = vld [vmem:[%s1 + $0x78c] sm:$0xf]
  %v551 = vld [vmem:[%s1 + $0x790] sm:$0xf]
  %v552 = vld [vmem:[%s1 + $0x794] sm:$0xf]
  %v553 = vld [vmem:[%s1 + $0x798] sm:$0xf]
  %v554 = vld [vmem:[%s1 + $0x79c] sm:$0xf]
  %v555 = vld [vmem:[%s1 + $0x7a0] sm:$0xf]
  %v556 = vld [vmem:[%s1 + $0x7a4] sm:$0xf]
  %v557 = vld [vmem:[%s1 + $0x7a8] sm:$0xf]
  %v558 = vld [vmem:[%s1 + $0x7ac] sm:$0xf]
  %v559 = vld [vmem:[%s1 + $0x7b0] sm:$0xf]
  %v560 = vld [vmem:[%s1 + $0x7b4] sm:$0xf]
  %v561 = vld [vmem:[%s1 + $0x7b8] sm:$0xf]
  %v562 = vld [vmem:[%s1 + $0x7bc] sm:$0xf]
  %v563 = vld [vmem:[%s1 + $0x7c0] sm:$0xf]
  %v564 = vld [vmem:[%s1 + $0x7c4] sm:$0xf]
  %v565 = vld [vmem:[%s1 + $0x7c8] sm:$0xf]
  %v566 = vld [vmem:[%s1 + $0x7cc] sm:$0xf]
  %v567 = vld [vmem:[%s1 + $0x7d0] sm:$0xf]
  %v568 = vld [vmem:[%s1 + $0x7d4] sm:$0xf]
  %v569 = vld [vmem:[%s1 + $0x7d8] sm:$0xf]
  %v570 = vld [vmem:[%s1 + $0x7dc] sm:$0xf]
  %v571 = vld [vmem:[%s1 + $0x7e0] sm:$0xf]
  %v572 = vld [vmem:[%s1 + $0x7e4] sm:$0xf]
  %v573 = vld [vmem:[%s1 + $0x7e8] sm:$0xf]
  %v574 = vld [vmem:[%s1 + $0x7ec] sm:$0xf]
  %v575 = vld [vmem:[%s1 + $0x7f0] sm:$0xf]
  %v576 = vld [vmem:[%s1 + $0x7f4] sm:$0xf]
  %v577 = vld [vmem:[%s1 + $0x7f8] sm:$0xf]
  %v578 = vld [vmem:[%s1 + $0x7fc] sm:$0xf]
  %v579 = vld [vmem:[%s1 + $0x800] sm:$0xf]
  %v580 = vld [vmem:[%s1 + $0x804] sm:$0xf]
  %v581 = vld [vmem:[%s1 + $0x808] sm:$0xf]
  %v582 = vld [vmem:[%s1 + $0x80c] sm:$0xf]
  %v583 = vld [vmem:[%s1 + $0x810] sm:$0xf]
  %v584 = vld [vmem:[%s1 + $0x814] sm:$0xf]
  %v585 = vld [vmem:[%s1 + $0x818] sm:$0xf]
  %v586 = vld [vmem:[%s1 + $0x81c] sm:$0xf]
  %v587 = vld [vmem:[%s1 + $0x820] sm:$0xf]
  %v588 = vld [vmem:[%s1 + $0x824] sm:$0xf]
  %v589 = vld [vmem:[%s1 + $0x828] sm:$0xf]
  %v590 = vld [vmem:[%s1 + $0x82c] sm:$0xf]
  %v591 = vld [vmem:[%s1 + $0x830] sm:$0xf]
  %v592 = vld [vmem:[%s1 + $0x834] sm:$0xf]
  %v593 = vld [vmem:[%s1 + $0x838] sm:$0xf]
  %v594 = vld [vmem:[%s1 + $0x83c] sm:$0xf]
  %v595 = vld [vmem:[%s1 + $0x840] sm:$0xf]
  %v596 = vld [vmem:[%s1 + $0x844] sm:$0xf]
  %v597 = vld [vmem:[%s1 + $0x848] sm:$0xf]
  %v598 = vld [vmem:[%s1 + $0x84c] sm:$0xf]
  %v599 = vld [vmem:[%s1 + $0x850] sm:$0xf]
  %v600 = vld [vmem:[%s1 + $0x854] sm:$0xf]
  %v601 = vld [vmem:[%s1 + $0x858] sm:$0xf]
  %v602 = vld [vmem:[%s1 + $0x85c] sm:$0xf]
  %v603 = vld [vmem:[%s1 + $0x860] sm:$0xf]
  %v604 = vld [vmem:[%s1 + $0x864] sm:$0xf]
  %v605 = vld [vmem:[%s1 + $0x868] sm:$0xf]
  %v606 = vld [vmem:[%s1 + $0x86c] sm:$0xf]
  %v607 = vld [vmem:[%s1 + $0x870] sm:$0xf]
  %v608 = vld [vmem:[%s1 + $0x874] sm:$0xf]
  %v609 = vld [vmem:[%s1 + $0x878] sm:$0xf]
  %v610 = vld [vmem:[%s1 + $0x87c] sm:$0xf]
  %v611 = vld [vmem:[%s1 + $0x880] sm:$0xf]
  %v612 = vld [vmem:[%s1 + $0x884] sm:$0xf]
  %v613 = vld [vmem:[%s1 + $0x888] sm:$0xf]
  %v614 = vld [vmem:[%s1 + $0x88c] sm:$0xf]
  %v615 = vld [vmem:[%s1 + $0x890] sm:$0xf]
  %v616 = vld [vmem:[%s1 + $0x894] sm:$0xf]
  %v617 = vld [vmem:[%s1 + $0x898] sm:$0xf]
  %v618 = vld [vmem:[%s1 + $0x89c] sm:$0xf]
  %v619 = vld [vmem:[%s1 + $0x8a0] sm:$0xf]
  %v620 = vld [vmem:[%s1 + $0x8a4] sm:$0xf]
  %v621 = vld [vmem:[%s1 + $0x8a8] sm:$0xf]
  %v622 = vld [vmem:[%s1 + $0x8ac] sm:$0xf]
  %v623 = vld [vmem:[%s1 + $0x8b0] sm:$0xf]
  %v624 = vld [vmem:[%s1 + $0x8b4] sm:$0xf]
  %v625 = vld [vmem:[%s1 + $0x8b8] sm:$0xf]
  %v626 = vld [vmem:[%s1 + $0x8bc] sm:$0xf]
  %v627 = vld [vmem:[%s1 + $0x8c0] sm:$0xf]
  %v628 = vld [vmem:[%s1 + $0x8c4] sm:$0xf]
  %v629 = vld [vmem:[%s1 + $0x8c8] sm:$0xf]
  %v630 = vld [vmem:[%s1 + $0x8cc] sm:$0xf]
  %v631 = vld [vmem:[%s1 + $0x8d0] sm:$0xf]
  %v632 = vld [vmem:[%s1 + $0x8d4] sm:$0xf]
  %v633 = vld [vmem:[%s1 + $0x8d8] sm:$0xf]
  %v634 = vld [vmem:[%s1 + $0x8dc] sm:$0xf]
  %v635 = vld [vmem:[%s1 + $0x8e0] sm:$0xf]
  %v636 = vld [vmem:[%s1 + $0x8e4] sm:$0xf]
  %v637 = vld [vmem:[%s1 + $0x8e8] sm:$0xf]
  %v638 = vld [vmem:[%s1 + $0x8ec] sm:$0xf]
  %v639 = vld [vmem:[%s1 + $0x8f0] sm:$0xf]
  %v640 = vld [vmem:[%s1 + $0x8f4] sm:$0xf]
  %v641 = vld [vmem:[%s1 + $0x8f8] sm:$0xf]
  %v642 = vld [vmem:[%s1 + $0x8fc] sm:$0xf]
  %v643 = vld [vmem:[%s1 + $0x900] sm:$0xf]
  %v644 = vld [vmem:[%s1 + $0x904] sm:$0xf]
  %v645 = vld [vmem:[%s1 + $0x908] sm:$0xf]
  %v646 = vld [vmem:[%s1 + $0x90c] sm:$0xf]
  %v647 = vld [vmem:[%s1 + $0x910] sm:$0xf]
  %v648 = vld [vmem:[%s1 + $0x914] sm:$0xf]
  %v649 = vld [vmem:[%s1 + $0x918] sm:$0xf]
  %v650 = vld [vmem:[%s1 + $0x91c] sm:$0xf]
  %v651 = vld [vmem:[%s1 + $0x920] sm:$0xf]
  %v652 = vld [vmem:[%s1 + $0x924] sm:$0xf]
  %v653 = vld [vmem:[%s1 + $0x928] sm:$0xf]
  %v654 = vld [vmem:[%s1 + $0x92c] sm:$0xf]
  %v655 = vld [vmem:[%s1 + $0x930] sm:$0xf]
  %v656 = vld [vmem:[%s1 + $0x934] sm:$0xf]
  %v657 = vld [vmem:[%s1 + $0x938] sm:$0xf]
  %v658 = vld [vmem:[%s1 + $0x93c] sm:$0xf]
  %v659 = vld [vmem:[%s1 + $0x940] sm:$0xf]
  %v660 = vld [vmem:[%s1 + $0x944] sm:$0xf]
  %v661 = vld [vmem:[%s1 + $0x948] sm:$0xf]
  %v662 = vld [vmem:[%s1 + $0x94c] sm:$0xf]
  %v663 = vld [vmem:[%s1 + $0x950] sm:$0xf]
  %v664 = vld [vmem:[%s1 + $0x954] sm:$0xf]
  %v665 = vld [vmem:[%s1 + $0x958] sm:$0xf]
  %v666 = vld [vmem:[%s1 + $0x95c] sm:$0xf]
  %v667 = vld [vmem:[%s1 + $0x960] sm:$0xf]
  %v668 = vld [vmem:[%s1 + $0x964] sm:$0xf]
  %v669 = vld [vmem:[%s1 + $0x968] sm:$0xf]
  %v670 = vld [vmem:[%s1 + $0x96c] sm:$0xf]
  %v671 = vld [vmem:[%s1 + $0x970] sm:$0xf]
  %v672 = vld [vmem:[%s1 + $0x974] sm:$0xf]
  %v673 = vld [vmem:[%s1 + $0x978] sm:$0xf]
  %v674 = vld [vmem:[%s1 + $0x97c] sm:$0xf]
  %v675 = vld [vmem:[%s1 + $0x980] sm:$0xf]
  %v676 = vld [vmem:[%s1 + $0x984] sm:$0xf]
  %v677 = vld [vmem:[%s1 + $0x988] sm:$0xf]
  %v678 = vld [vmem:[%s1 + $0x98c] sm:$0xf]
  %v679 = vld [vmem:[%s1 + $0x990] sm:$0xf]
  %v680 = vld [vmem:[%s1 + $0x994] sm:$0xf]
  %v681 = vld [vmem:[%s1 + $0x998] sm:$0xf]
  %v682 = vld [vmem:[%s1 + $0x99c] sm:$0xf]
  %v683 = vld [vmem:[%s1 + $0x9a0] sm:$0xf]
  %v684 = vld [vmem:[%s1 + $0x9a4] sm:$0xf]
  %v685 = vld [vmem:[%s1 + $0x9a8] sm:$0xf]
  %v686 = vld [vmem:[%s1 + $0x9ac] sm:$0xf]
  %v687 = vld [vmem:[%s1 + $0x9b0] sm:$0xf]
  %v688 = vld [vmem:[%s1 + $0x9b4] sm:$0xf]
  %v689 = vld [vmem:[%s1 + $0x9b8] sm:$0xf]
  %v690 = vld [vmem:[%s1 + $0x9bc] sm:$0xf]
  %v691 = vld [vmem:[%s1 + $0x9c0] sm:$0xf]
  %v692 = vld [vmem:[%s1 + $0x9c4] sm:$0xf]
  %v693 = vld [vmem:[%s1 + $0x9c8] sm:$0xf]
  %v694 = vld [vmem:[%s1 + $0x9cc] sm:$0xf]
  %v695 = vld [vmem:[%s1 + $0x9d0] sm:$0xf]
  %v696 = vld [vmem:[%s1 + $0x9d4] sm:$0xf]
  %v697 = vld [vmem:[%s1 + $0x9d8] sm:$0xf]
  %v698 = vld [vmem:[%s1 + $0x9dc] sm:$0xf]
  %v699 = vld [vmem:[%s1 + $0x9e0] sm:$0xf]
  %v700 = vld [vmem:[%s1 + $0x9e4] sm:$0xf]
  %v701 = vld [vmem:[%s1 + $0x9e8] sm:$0xf]
  %v702 = vld [vmem:[%s1 + $0x9ec] sm:$0xf]
  %v703 = vld [vmem:[%s1 + $0x9f0] sm:$0xf]
  %v704 = vld [vmem:[%s1 + $0x9f4] sm:$0xf]
  %v705 = vld [vmem:[%s1 + $0x9f8] sm:$0xf]
  %v706 = vld [vmem:[%s1 + $0x9fc] sm:$0xf]
  %v707 = vld [vmem:[%s1 + $0xa00] sm:$0xf]
  %v708 = vld [vmem:[%s1 + $0xa04] sm:$0xf]
  %v709 = vld [vmem:[%s1 + $0xa08] sm:$0xf]
  %v710 = vld [vmem:[%s1 + $0xa0c] sm:$0xf]
  %v711 = vld [vmem:[%s1 + $0xa10] sm:$0xf]
  %v712 = vld [vmem:[%s1 + $0xa14] sm:$0xf]
  %v713 = vld [vmem:[%s1 + $0xa18] sm:$0xf]
  %v714 = vld [vmem:[%s1 + $0xa1c] sm:$0xf]
  %v715 = vld [vmem:[%s1 + $0xa20] sm:$0xf]
  %v716 = vld [vmem:[%s1 + $0xa24] sm:$0xf]
  %v717 = vld [vmem:[%s1 + $0xa28] sm:$0xf]
  %v718 = vld [vmem:[%s1 + $0xa2c] sm:$0xf]
  %v719 = vld [vmem:[%s1 + $0xa30] sm:$0xf]
  %v720 = vld [vmem:[%s1 + $0xa34] sm:$0xf]
  %v721 = vld [vmem:[%s1 + $0xa38] sm:$0xf]
  %v722 = vld [vmem:[%s1 + $0xa3c] sm:$0xf]
  %v723 = vld [vmem:[%s1 + $0xa40] sm:$0xf]
  %v724 = vld [vmem:[%s1 + $0xa44] sm:$0xf]
  %v725 = vld [vmem:[%s1 + $0xa48] sm:$0xf]
  %v726 = vld [vmem:[%s1 + $0xa4c] sm:$0xf]
  %v727 = vld [vmem:[%s1 + $0xa50] sm:$0xf]
  %v728 = vld [vmem:[%s1 + $0xa54] sm:$0xf]
  %v729 = vld [vmem:[%s1 + $0xa58] sm:$0xf]
  %v730 = vld [vmem:[%s1 + $0xa5c] sm:$0xf]
  %v731 = vld [vmem:[%s1 + $0xa60] sm:$0xf]
  %v732 = vld [vmem:[%s1 + $0xa64] sm:$0xf]
  %v733 = vld [vmem:[%s1 + $0xa68] sm:$0xf]
  %v734 = vld [vmem:[%s1 + $0xa6c] sm:$0xf]
  %v735 = vld [vmem:[%s1 + $0xa70] sm:$0xf]
  %v736 = vld [vmem:[%s1 + $0xa74] sm:$0xf]
  %v737 = vld [vmem:[%s1 + $0xa78] sm:$0xf]
  %v738 = vld [vmem:[%s1 + $0xa7c] sm:$0xf]
  %v739 = vld [vmem:[%s1 + $0xa80] sm:$0xf]
  %v740 = vld [vmem:[%s1 + $0xa84] sm:$0xf]
  %v741 = vld [vmem:[%s1 + $0xa88] sm:$0xf]
  %v742 = vld [vmem:[%s1 + $0xa8c] sm:$0xf]
  %v743 = vld [vmem:[%s1 + $0xa90] sm:$0xf]
  %v744 = vld [vmem:[%s1 + $0xa94] sm:$0xf]
  %v745 = vld [vmem:[%s1 + $0xa98] sm:$0xf]
  %v746 = vld [vmem:[%s1 + $0xa9c] sm:$0xf]
  %v747 = vld [vmem:[%s1 + $0xaa0] sm:$0xf]
  %v748 = vld [vmem:[%s1 + $0xaa4] sm:$0xf]
  %v749 = vld [vmem:[%s1 + $0xaa8] sm:$0xf]
  %v750 = vld [vmem:[%s1 + $0xaac] sm:$0xf]
  %v751 = vld [vmem:[%s1 + $0xab0] sm:$0xf]
  %v752 = vld [vmem:[%s1 + $0xab4] sm:$0xf]
  %v753 = vld [vmem:[%s1 + $0xab8] sm:$0xf]
  %v754 = vld [vmem:[%s1 + $0xabc] sm:$0xf]
  %v755 = vld [vmem:[%s1 + $0xac0] sm:$0xf]
  %v756 = vld [vmem:[%s1 + $0xac4] sm:$0xf]
  %v757 = vld [vmem:[%s1 + $0xac8] sm:$0xf]
  %v758 = vld [vmem:[%s1 + $0xacc] sm:$0xf]
  %v759 = vld [vmem:[%s1 + $0xad0] sm:$0xf]
  %v760 = vld [vmem:[%s1 + $0xad4] sm:$0xf]
  %v761 = vld [vmem:[%s1 + $0xad8] sm:$0xf]
  %v762 = vld [vmem:[%s1 + $0xadc] sm:$0xf]
  %v763 = vld [vmem:[%s1 + $0xae0] sm:$0xf]
  %v764 = vld [vmem:[%s1 + $0xae4] sm:$0xf]
  %v765 = vld [vmem:[%s1 + $0xae8] sm:$0xf]
  %v766 = vld [vmem:[%s1 + $0xaec] sm:$0xf]
  %v767 = vld [vmem:[%s1 + $0xaf0] sm:$0xf]
  %v768 = vld [vmem:[%s1 + $0xaf4] sm:$0xf]
  %v769 = vld [vmem:[%s1 + $0xaf8] sm:$0xf]
  %v770 = vld [vmem:[%s1 + $0xafc] sm:$0xf]
  %v771 = vld [vmem:[%s1 + $0xb00] sm:$0xf]
  %v772 = vld [vmem:[%s1 + $0xb04] sm:$0xf]
  %v773 = vld [vmem:[%s1 + $0xb08] sm:$0xf]
  %v774 = vld [vmem:[%s1 + $0xb0c] sm:$0xf]
  %v775 = vld [vmem:[%s1 + $0xb10] sm:$0xf]
  %v776 = vld [vmem:[%s1 + $0xb14] sm:$0xf]
  %v777 = vld [vmem:[%s1 + $0xb18] sm:$0xf]
  %v778 = vld [vmem:[%s1 + $0xb1c] sm:$0xf]
  %v779 = vld [vmem:[%s1 + $0xb20] sm:$0xf]
  %v780 = vld [vmem:[%s1 + $0xb24] sm:$0xf]
  %v781 = vld [vmem:[%s1 + $0xb28] sm:$0xf]
  %v782 = vld [vmem:[%s1 + $0xb2c] sm:$0xf]
  %v783 = vld [vmem:[%s1 + $0xb30] sm:$0xf]
  %v784 = vld [vmem:[%s1 + $0xb34] sm:$0xf]
  %v785 = vld [vmem:[%s1 + $0xb38] sm:$0xf]
  %v786 = vld [vmem:[%s1 + $0xb3c] sm:$0xf]
  %v787 = vld [vmem:[%s1 + $0xb40] sm:$0xf]
  %v788 = vld [vmem:[%s1 + $0xb44] sm:$0xf]
  %v789 = vld [vmem:[%s1 + $0xb48] sm:$0xf]
  %v790 = vld [vmem:[%s1 + $0xb4c] sm:$0xf]
  %v791 = vld [vmem:[%s1 + $0xb50] sm:$0xf]
  %v792 = vld [vmem:[%s1 + $0xb54] sm:$0xf]
  %v793 = vld [vmem:[%s1 + $0xb58] sm:$0xf]
  %v794 = vld [vmem:[%s1 + $0xb5c] sm:$0xf]
  %v795 = vld [vmem:[%s1 + $0xb60] sm:$0xf]
  %v796 = vld [vmem:[%s1 + $0xb64] sm:$0xf]
  %v797 = vld [vmem:[%s1 + $0xb68] sm:$0xf]
  %v798 = vld [vmem:[%s1 + $0xb6c] sm:$0xf]
  %v799 = vld [vmem:[%s1 + $0xb70] sm:$0xf]
  %v800 = vld [vmem:[%s1 + $0xb74] sm:$0xf]
  %v801 = vld [vmem:[%s1 + $0xb78] sm:$0xf]
  %v802 = vld [vmem:[%s1 + $0xb7c] sm:$0xf]
  %v803 = vld [vmem:[%s1 + $0xb80] sm:$0xf]
  %v804 = vld [vmem:[%s1 + $0xb84] sm:$0xf]
  %v805 = vld [vmem:[%s1 + $0xb88] sm:$0xf]
  %v806 = vld [vmem:[%s1 + $0xb8c] sm:$0xf]
  %v807 = vld [vmem:[%s1 + $0xb90] sm:$0xf]
  %v808 = vld [vmem:[%s1 + $0xb94] sm:$0xf]
  %v809 = vld [vmem:[%s1 + $0xb98] sm:$0xf]
  %v810 = vld [vmem:[%s1 + $0xb9c] sm:$0xf]
  %v811 = vld [vmem:[%s1 + $0xba0] sm:$0xf]
  %v812 = vld [vmem:[%s1 + $0xba4] sm:$0xf]
  %v813 = vld [vmem:[%s1 + $0xba8] sm:$0xf]
  %v814 = vld [vmem:[%s1 + $0xbac] sm:$0xf]
  %v815 = vld [vmem:[%s1 + $0xbb0] sm:$0xf]
  %v816 = vld [vmem:[%s1 + $0xbb4] sm:$0xf]
  %v817 = vld [vmem:[%s1 + $0xbb8] sm:$0xf]
  %v818 = vld [vmem:[%s1 + $0xbbc] sm:$0xf]
  %v819 = vld [vmem:[%s1 + $0xbc0] sm:$0xf]
  %v820 = vld [vmem:[%s1 + $0xbc4] sm:$0xf]
  %v821 = vld [vmem:[%s1 + $0xbc8] sm:$0xf]
  %v822 = vld [vmem:[%s1 + $0xbcc] sm:$0xf]
  %v823 = vld [vmem:[%s1 + $0xbd0] sm:$0xf]
  %v824 = vld [vmem:[%s1 + $0xbd4] sm:$0xf]
  %v825 = vld [vmem:[%s1 + $0xbd8] sm:$0xf]
  %v826 = vld [vmem:[%s1 + $0xbdc] sm:$0xf]
  %v827 = vld [vmem:[%s1 + $0xbe0] sm:$0xf]
  %v828 = vld [vmem:[%s1 + $0xbe4] sm:$0xf]
  %v829 = vld [vmem:[%s1 + $0xbe8] sm:$0xf]
  %v830 = vld [vmem:[%s1 + $0xbec] sm:$0xf]
  %v831 = vld [vmem:[%s1 + $0xbf0] sm:$0xf]
  %v832 = vld [vmem:[%s1 + $0xbf4] sm:$0xf]
  %v833 = vld [vmem:[%s1 + $0xbf8] sm:$0xf]
  %v834 = vld [vmem:[%s1 + $0xbfc] sm:$0xf]
  %v835 = vld [vmem:[%s1 + $0xc00] sm:$0xf]
  %v836 = vld [vmem:[%s1 + $0xc04] sm:$0xf]
  %v837 = vld [vmem:[%s1 + $0xc08] sm:$0xf]
  %v838 = vld [vmem:[%s1 + $0xc0c] sm:$0xf]
  %v839 = vld [vmem:[%s1 + $0xc10] sm:$0xf]
  %v840 = vld [vmem:[%s1 + $0xc14] sm:$0xf]
  %v841 = vld [vmem:[%s1 + $0xc18] sm:$0xf]
  %v842 = vld [vmem:[%s1 + $0xc1c] sm:$0xf]
  %v843 = vld [vmem:[%s1 + $0xc20] sm:$0xf]
  %v844 = vld [vmem:[%s1 + $0xc24] sm:$0xf]
  %v845 = vld [vmem:[%s1 + $0xc28] sm:$0xf]
  %v846 = vld [vmem:[%s1 + $0xc2c] sm:$0xf]
  %v847 = vld [vmem:[%s1 + $0xc30] sm:$0xf]
  %v848 = vld [vmem:[%s1 + $0xc34] sm:$0xf]
  %v849 = vld [vmem:[%s1 + $0xc38] sm:$0xf]
  %v850 = vld [vmem:[%s1 + $0xc3c] sm:$0xf]
  %v851 = vld [vmem:[%s1 + $0xc40] sm:$0xf]
  %v852 = vld [vmem:[%s1 + $0xc44] sm:$0xf]
  %v853 = vld [vmem:[%s1 + $0xc48] sm:$0xf]
  %v854 = vld [vmem:[%s1 + $0xc4c] sm:$0xf]
  %v855 = vld [vmem:[%s1 + $0xc50] sm:$0xf]
  %v856 = vld [vmem:[%s1 + $0xc54] sm:$0xf]
  %v857 = vld [vmem:[%s1 + $0xc58] sm:$0xf]
  %v858 = vld [vmem:[%s1 + $0xc5c] sm:$0xf]
  %v859 = vld [vmem:[%s1 + $0xc60] sm:$0xf]
  %v860 = vld [vmem:[%s1 + $0xc64] sm:$0xf]
  %v861 = vld [vmem:[%s1 + $0xc68] sm:$0xf]
  %v862 = vld [vmem:[%s1 + $0xc6c] sm:$0xf]
  %v863 = vld [vmem:[%s1 + $0xc70] sm:$0xf]
  %v864 = vld [vmem:[%s1 + $0xc74] sm:$0xf]
  %v865 = vld [vmem:[%s1 + $0xc78] sm:$0xf]
  %v866 = vld [vmem:[%s1 + $0xc7c] sm:$0xf]
  %v867 = vld [vmem:[%s1 + $0xc80] sm:$0xf]
  %v868 = vld [vmem:[%s1 + $0xc84] sm:$0xf]
  %v869 = vld [vmem:[%s1 + $0xc88] sm:$0xf]
  %v870 = vld [vmem:[%s1 + $0xc8c] sm:$0xf]
  %v871 = vld [vmem:[%s1 + $0xc90] sm:$0xf]
  %v872 = vld [vmem:[%s1 + $0xc94] sm:$0xf]
  %v873 = vld [vmem:[%s1 + $0xc98] sm:$0xf]
  %v874 = vld [vmem:[%s1 + $0xc9c] sm:$0xf]
  %v875 = vld [vmem:[%s1 + $0xca0] sm:$0xf]
  %v876 = vld [vmem:[%s1 + $0xca4] sm:$0xf]
  %v877 = vld [vmem:[%s1 + $0xca8] sm:$0xf]
  %v878 = vld [vmem:[%s1 + $0xcac] sm:$0xf]
  %v879 = vld [vmem:[%s1 + $0xcb0] sm:$0xf]
  %v880 = vld [vmem:[%s1 + $0xcb4] sm:$0xf]
  %v881 = vld [vmem:[%s1 + $0xcb8] sm:$0xf]
  %v882 = vld [vmem:[%s1 + $0xcbc] sm:$0xf]
  %v883 = vld [vmem:[%s1 + $0xcc0] sm:$0xf]
  %v884 = vld [vmem:[%s1 + $0xcc4] sm:$0xf]
  %v885 = vld [vmem:[%s1 + $0xcc8] sm:$0xf]
  %v886 = vld [vmem:[%s1 + $0xccc] sm:$0xf]
  %v887 = vld [vmem:[%s1 + $0xcd0] sm:$0xf]
  %v888 = vld [vmem:[%s1 + $0xcd4] sm:$0xf]
  %v889 = vld [vmem:[%s1 + $0xcd8] sm:$0xf]
  %v890 = vld [vmem:[%s1 + $0xcdc] sm:$0xf]
  %v891 = vld [vmem:[%s1 + $0xce0] sm:$0xf]
  %v892 = vld [vmem:[%s1 + $0xce4] sm:$0xf]
  %v893 = vld [vmem:[%s1 + $0xce8] sm:$0xf]
  %v894 = vld [vmem:[%s1 + $0xcec] sm:$0xf]
  %v895 = vld [vmem:[%s1 + $0xcf0] sm:$0xf]
  %v896 = vld [vmem:[%s1 + $0xcf4] sm:$0xf]
  %v897 = vld [vmem:[%s1 + $0xcf8] sm:$0xf]
  %v898 = vld [vmem:[%s1 + $0xcfc] sm:$0xf]
  %v899 = vld [vmem:[%s1 + $0xd00] sm:$0xf]
  %v900 = vld [vmem:[%s1 + $0xd04] sm:$0xf]
  %v901 = vld [vmem:[%s1 + $0xd08] sm:$0xf]
  %v902 = vld [vmem:[%s1 + $0xd0c] sm:$0xf]
  %v903 = vld [vmem:[%s1 + $0xd10] sm:$0xf]
  %v904 = vld [vmem:[%s1 + $0xd14] sm:$0xf]
  %v905 = vld [vmem:[%s1 + $0xd18] sm:$0xf]
  %v906 = vld [vmem:[%s1 + $0xd1c] sm:$0xf]
  %v907 = vld [vmem:[%s1 + $0xd20] sm:$0xf]
  %v908 = vld [vmem:[%s1 + $0xd24] sm:$0xf]
  %v909 = vld [vmem:[%s1 + $0xd28] sm:$0xf]
  %v910 = vld [vmem:[%s1 + $0xd2c] sm:$0xf]
  %v911 = vld [vmem:[%s1 + $0xd30] sm:$0xf]
  %v912 = vld [vmem:[%s1 + $0xd34] sm:$0xf]
  %v913 = vld [vmem:[%s1 + $0xd38] sm:$0xf]
  %v914 = vld [vmem:[%s1 + $0xd3c] sm:$0xf]
  %v915 = vld [vmem:[%s1 + $0xd40] sm:$0xf]
  %v916 = vld [vmem:[%s1 + $0xd44] sm:$0xf]
  %v917 = vld [vmem:[%s1 + $0xd48] sm:$0xf]
  %v918 = vld [vmem:[%s1 + $0xd4c] sm:$0xf]
  %v919 = vld [vmem:[%s1 + $0xd50] sm:$0xf]
  %v920 = vld [vmem:[%s1 + $0xd54] sm:$0xf]
  %v921 = vld [vmem:[%s1 + $0xd58] sm:$0xf]
  %v922 = vld [vmem:[%s1 + $0xd5c] sm:$0xf]
  %v923 = vld [vmem:[%s1 + $0xd60] sm:$0xf]
  %v924 = vld [vmem:[%s1 + $0xd64] sm:$0xf]
  %v925 = vld [vmem:[%s1 + $0xd68] sm:$0xf]
  %v926 = vld [vmem:[%s1 + $0xd6c] sm:$0xf]
  %v927 = vld [vmem:[%s1 + $0xd70] sm:$0xf]
  %v928 = vld [vmem:[%s1 + $0xd74] sm:$0xf]
  %v929 = vld [vmem:[%s1 + $0xd78] sm:$0xf]
  %v930 = vld [vmem:[%s1 + $0xd7c] sm:$0xf]
  %v931 = vld [vmem:[%s1 + $0xd80] sm:$0xf]
  %v932 = vld [vmem:[%s1 + $0xd84] sm:$0xf]
  %v933 = vld [vmem:[%s1 + $0xd88] sm:$0xf]
  %v934 = vld [vmem:[%s1 + $0xd8c] sm:$0xf]
  %v935 = vld [vmem:[%s1 + $0xd90] sm:$0xf]
  %v936 = vld [vmem:[%s1 + $0xd94] sm:$0xf]
  %v937 = vld [vmem:[%s1 + $0xd98] sm:$0xf]
  %v938 = vld [vmem:[%s1 + $0xd9c] sm:$0xf]
  %v939 = vld [vmem:[%s1 + $0xda0] sm:$0xf]
  %v940 = vld [vmem:[%s1 + $0xda4] sm:$0xf]
  %v941 = vld [vmem:[%s1 + $0xda8] sm:$0xf]
  %v942 = vld [vmem:[%s1 + $0xdac] sm:$0xf]
  %v943 = vld [vmem:[%s1 + $0xdb0] sm:$0xf]
  %v944 = vld [vmem:[%s1 + $0xdb4] sm:$0xf]
  %v945 = vld [vmem:[%s1 + $0xdb8] sm:$0xf]
  %v946 = vld [vmem:[%s1 + $0xdbc] sm:$0xf]
  %v947 = vld [vmem:[%s1 + $0xdc0] sm:$0xf]
  %v948 = vld [vmem:[%s1 + $0xdc4] sm:$0xf]
  %v949 = vld [vmem:[%s1 + $0xdc8] sm:$0xf]
  %v950 = vld [vmem:[%s1 + $0xdcc] sm:$0xf]
  %v951 = vld [vmem:[%s1 + $0xdd0] sm:$0xf]
  %v952 = vld [vmem:[%s1 + $0xdd4] sm:$0xf]
  %v953 = vld [vmem:[%s1 + $0xdd8] sm:$0xf]
  %v954 = vld [vmem:[%s1 + $0xddc] sm:$0xf]
  %v955 = vld [vmem:[%s1 + $0xde0] sm:$0xf]
  %v956 = vld [vmem:[%s1 + $0xde4] sm:$0xf]
  %v957 = vld [vmem:[%s1 + $0xde8] sm:$0xf]
  %v958 = vld [vmem:[%s1 + $0xdec] sm:$0xf]
  %v959 = vld [vmem:[%s1 + $0xdf0] sm:$0xf]
  %v960 = vld [vmem:[%s1 + $0xdf4] sm:$0xf]
  %v961 = vld [vmem:[%s1 + $0xdf8] sm:$0xf]
  %v962 = vld [vmem:[%s1 + $0xdfc] sm:$0xf]
  %v963 = vld [vmem:[%s2] sm:$0x1]
  %v965 = vlaneseq
  %v966 = vshrl.u32 %v965, 7
  %v967 = vsub.s32 0, %v966
  %v968 = vrot.slane %v963, %v967
  %v998 = vunpack.c.l.b16 %v39
  %v999 = vunpack.c.h.b16 %v39
  %v1000 = vunpack.c.l.b16 %v40
  %v1001 = vunpack.c.h.b16 %v40
  %v1002 = vunpack.c.l.b16 %v41
  %v1003 = vunpack.c.h.b16 %v41
  %v1004 = vunpack.c.l.b16 %v42
  %v1005 = vunpack.c.h.b16 %v42
  %v1006 = vunpack.c.l.b16 %v43
  %v1007 = vunpack.c.h.b16 %v43
  %v1008 = vunpack.c.l.b16 %v44
  %v1009 = vunpack.c.h.b16 %v44
  %v1010 = vunpack.c.l.b16 %v45
  %v1011 = vunpack.c.h.b16 %v45
  %v1012 = vunpack.c.l.b16 %v46
  %v1013 = vunpack.c.h.b16 %v46
  %v1014 = vunpack.c.l.b16 %v47
  %v1015 = vunpack.c.h.b16 %v47
  %v1016 = vunpack.c.l.b16 %v48
  %v1017 = vunpack.c.h.b16 %v48
  %v1018 = vunpack.c.l.b16 %v49
  %v1019 = vunpack.c.h.b16 %v49
  %v1020 = vunpack.c.l.b16 %v50
  %v1021 = vunpack.c.h.b16 %v50
  %v1022 = vunpack.c.l.b16 %v51
  %v1023 = vunpack.c.h.b16 %v51
  %v1024 = vunpack.c.l.b16 %v52
  %v1025 = vunpack.c.h.b16 %v52
  %v1026 = vunpack.c.l.b16 %v53
  %v1027 = vunpack.c.h.b16 %v53
  %v1028 = vunpack.c.l.b16 %v54
  %v1029 = vunpack.c.h.b16 %v54
  %v1030 = vunpack.c.l.b16 %v55
  %v1031 = vunpack.c.h.b16 %v55
  %v1032 = vunpack.c.l.b16 %v56
  %v1033 = vunpack.c.h.b16 %v56
  %v1034 = vunpack.c.l.b16 %v57
  %v1035 = vunpack.c.h.b16 %v57
  %v1036 = vunpack.c.l.b16 %v58
  %v1037 = vunpack.c.h.b16 %v58
  %v1038 = vunpack.c.l.b16 %v59
  %v1039 = vunpack.c.h.b16 %v59
  %v1040 = vunpack.c.l.b16 %v60
  %v1041 = vunpack.c.h.b16 %v60
  %v1042 = vunpack.c.l.b16 %v61
  %v1043 = vunpack.c.h.b16 %v61
  %v1044 = vunpack.c.l.b16 %v62
  %v1045 = vunpack.c.h.b16 %v62
  %v1046 = vunpack.c.l.b16 %v63
  %v1047 = vunpack.c.h.b16 %v63
  %v1048 = vunpack.c.l.b16 %v64
  %v1049 = vunpack.c.h.b16 %v64
  %v1050 = vunpack.c.l.b16 %v65
  %v1051 = vunpack.c.h.b16 %v65
  %v1052 = vunpack.c.l.b16 %v66
  %v1053 = vunpack.c.h.b16 %v66
  %v1054 = vpack.c.b16 %v998, %v998
  %v1055 = vpack.c.b16 %v999, %v999
  %v1056 = vpack.c.b16 %v1000, %v1000
  %v1057 = vpack.c.b16 %v1001, %v1001
  %v1058 = vpack.c.b16 %v1002, %v1002
  %v1059 = vpack.c.b16 %v1003, %v1003
  %v1060 = vpack.c.b16 %v1004, %v1004
  %v1061 = vpack.c.b16 %v1005, %v1005
  %v1062 = vpack.c.b16 %v1006, %v1006
  %v1063 = vpack.c.b16 %v1007, %v1007
  %v1064 = vpack.c.b16 %v1008, %v1008
  %v1065 = vpack.c.b16 %v1009, %v1009
  %v1066 = vpack.c.b16 %v1010, %v1010
  %v1067 = vpack.c.b16 %v1011, %v1011
  %v1068 = vpack.c.b16 %v1012, %v1012
  %v1069 = vpack.c.b16 %v1013, %v1013
  %v1070 = vpack.c.b16 %v1014, %v1014
  %v1071 = vpack.c.b16 %v1015, %v1015
  %v1072 = vpack.c.b16 %v1016, %v1016
  %v1073 = vpack.c.b16 %v1017, %v1017
  %v1074 = vpack.c.b16 %v1018, %v1018
  %v1075 = vpack.c.b16 %v1019, %v1019
  %v1076 = vpack.c.b16 %v1020, %v1020
  %v1077 = vpack.c.b16 %v1021, %v1021
  %v1078 = vpack.c.b16 %v1022, %v1022
  %v1079 = vpack.c.b16 %v1023, %v1023
  %v1080 = vpack.c.b16 %v1024, %v1024
  %v1081 = vpack.c.b16 %v1025, %v1025
  %v1082 = vpack.c.b16 %v1026, %v1026
  %v1083 = vpack.c.b16 %v1027, %v1027
  %v1084 = vpack.c.b16 %v1028, %v1028
  %v1085 = vpack.c.b16 %v1029, %v1029
  %v1086 = vpack.c.b16 %v1030, %v1030
  %v1087 = vpack.c.b16 %v1031, %v1031
  %v1088 = vpack.c.b16 %v1032, %v1032
  %v1089 = vpack.c.b16 %v1033, %v1033
  %v1090 = vpack.c.b16 %v1034, %v1034
  %v1091 = vpack.c.b16 %v1035, %v1035
  %v1092 = vpack.c.b16 %v1036, %v1036
  %v1093 = vpack.c.b16 %v1037, %v1037
  %v1094 = vpack.c.b16 %v1038, %v1038
  %v1095 = vpack.c.b16 %v1039, %v1039
  %v1096 = vpack.c.b16 %v1040, %v1040
  %v1097 = vpack.c.b16 %v1041, %v1041
  %v1098 = vpack.c.b16 %v1042, %v1042
  %v1099 = vpack.c.b16 %v1043, %v1043
  %v1100 = vpack.c.b16 %v1044, %v1044
  %v1101 = vpack.c.b16 %v1045, %v1045
  %v1102 = vpack.c.b16 %v1046, %v1046
  %v1103 = vpack.c.b16 %v1047, %v1047
  %v1104 = vpack.c.b16 %v1048, %v1048
  %v1105 = vpack.c.b16 %v1049, %v1049
  %v1106 = vpack.c.b16 %v1050, %v1050
  %v1107 = vpack.c.b16 %v1051, %v1051
  %v1108 = vpack.c.b16 %v1052, %v1052
  %v1109 = vpack.c.b16 %v1053, %v1053
  %v2062 = vunpack.c.l.b16 %v67
  %v2063 = vunpack.c.l.b16 %v68
  %v2064 = vunpack.c.l.b16 %v69
  %v2065 = vunpack.c.l.b16 %v70
  %v2066 = vunpack.c.l.b16 %v71
  %v2067 = vunpack.c.l.b16 %v72
  %v2068 = vunpack.c.l.b16 %v73
  %v2069 = vunpack.c.l.b16 %v74
  %v2070 = vunpack.c.l.b16 %v75
  %v2071 = vunpack.c.l.b16 %v76
  %v2072 = vunpack.c.l.b16 %v77
  %v2073 = vunpack.c.l.b16 %v78
  %v2074 = vunpack.c.l.b16 %v79
  %v2075 = vunpack.c.l.b16 %v80
  %v2076 = vunpack.c.l.b16 %v81
  %v2077 = vunpack.c.l.b16 %v82
  %v2078 = vunpack.c.l.b16 %v83
  %v2079 = vunpack.c.l.b16 %v84
  %v2080 = vunpack.c.l.b16 %v85
  %v2081 = vunpack.c.l.b16 %v86
  %v2082 = vunpack.c.l.b16 %v87
  %v2083 = vunpack.c.l.b16 %v88
  %v2084 = vunpack.c.l.b16 %v89
  %v2085 = vunpack.c.l.b16 %v90
  %v2086 = vunpack.c.l.b16 %v91
  %v2087 = vunpack.c.l.b16 %v92
  %v2088 = vunpack.c.l.b16 %v93
  %v2089 = vunpack.c.l.b16 %v94
  %v2090 = vunpack.c.l.b16 %v95
  %v2091 = vunpack.c.l.b16 %v96
  %v2092 = vunpack.c.l.b16 %v97
  %v2093 = vunpack.c.l.b16 %v98
  %v2094 = vunpack.c.l.b16 %v99
  %v2095 = vunpack.c.l.b16 %v100
  %v2096 = vunpack.c.l.b16 %v101
  %v2097 = vunpack.c.l.b16 %v102
  %v2098 = vunpack.c.l.b16 %v103
  %v2099 = vunpack.c.l.b16 %v104
  %v2100 = vunpack.c.l.b16 %v105
  %v2101 = vunpack.c.l.b16 %v106
  %v2102 = vunpack.c.l.b16 %v107
  %v2103 = vunpack.c.l.b16 %v108
  %v2104 = vunpack.c.l.b16 %v109
  %v2105 = vunpack.c.l.b16 %v110
  %v2106 = vunpack.c.l.b16 %v111
  %v2107 = vunpack.c.l.b16 %v112
  %v2108 = vunpack.c.l.b16 %v113
  %v2109 = vunpack.c.l.b16 %v114
  %v2110 = vunpack.c.l.b16 %v115
  %v2111 = vunpack.c.l.b16 %v116
  %v2112 = vunpack.c.l.b16 %v117
  %v2113 = vunpack.c.l.b16 %v118
  %v2114 = vunpack.c.l.b16 %v119
  %v2115 = vunpack.c.l.b16 %v120
  %v2116 = vunpack.c.l.b16 %v121
  %v2117 = vunpack.c.l.b16 %v122
  %v2118 = vunpack.c.l.b16 %v123
  %v2119 = vunpack.c.l.b16 %v124
  %v2120 = vunpack.c.l.b16 %v125
  %v2121 = vunpack.c.l.b16 %v126
  %v2122 = vunpack.c.l.b16 %v127
  %v2123 = vunpack.c.l.b16 %v128
  %v2124 = vunpack.c.l.b16 %v129
  %v2125 = vunpack.c.l.b16 %v130
  %v2126 = vunpack.c.l.b16 %v131
  %v2127 = vunpack.c.l.b16 %v132
  %v2128 = vunpack.c.l.b16 %v133
  %v2129 = vunpack.c.l.b16 %v134
  %v2130 = vunpack.c.l.b16 %v135
  %v2131 = vunpack.c.l.b16 %v136
  %v2132 = vunpack.c.l.b16 %v137
  %v2133 = vunpack.c.l.b16 %v138
  %v2134 = vunpack.c.l.b16 %v139
  %v2135 = vunpack.c.l.b16 %v140
  %v2136 = vunpack.c.l.b16 %v141
  %v2137 = vunpack.c.l.b16 %v142
  %v2138 = vunpack.c.l.b16 %v143
  %v2139 = vunpack.c.l.b16 %v144
  %v2140 = vunpack.c.l.b16 %v145
  %v2141 = vunpack.c.l.b16 %v146
  %v2142 = vunpack.c.l.b16 %v147
  %v2143 = vunpack.c.l.b16 %v148
  %v2144 = vunpack.c.l.b16 %v149
  %v2145 = vunpack.c.l.b16 %v150
  %v2146 = vunpack.c.l.b16 %v151
  %v2147 = vunpack.c.l.b16 %v152
  %v2148 = vunpack.c.l.b16 %v153
  %v2149 = vunpack.c.l.b16 %v154
  %v2150 = vunpack.c.l.b16 %v155
  %v2151 = vunpack.c.l.b16 %v156
  %v2152 = vunpack.c.l.b16 %v157
  %v2153 = vunpack.c.l.b16 %v158
  %v2154 = vunpack.c.l.b16 %v159
  %v2155 = vunpack.c.l.b16 %v160
  %v2156 = vunpack.c.l.b16 %v161
  %v2157 = vunpack.c.l.b16 %v162
  %v2158 = vunpack.c.l.b16 %v163
  %v2159 = vunpack.c.l.b16 %v164
  %v2160 = vunpack.c.l.b16 %v165
  %v2161 = vunpack.c.l.b16 %v166
  %v2162 = vunpack.c.l.b16 %v167
  %v2163 = vunpack.c.l.b16 %v168
  %v2164 = vunpack.c.l.b16 %v169
  %v2165 = vunpack.c.l.b16 %v170
  %v2166 = vunpack.c.l.b16 %v171
  %v2167 = vunpack.c.l.b16 %v172
  %v2168 = vunpack.c.l.b16 %v173
  %v2169 = vunpack.c.l.b16 %v174
  %v2170 = vunpack.c.l.b16 %v175
  %v2171 = vunpack.c.l.b16 %v176
  %v2172 = vunpack.c.l.b16 %v177
  %v2173 = vunpack.c.l.b16 %v178
  %v2174 = vunpack.c.l.b16 %v179
  %v2175 = vunpack.c.l.b16 %v180
  %v2176 = vunpack.c.l.b16 %v181
  %v2177 = vunpack.c.l.b16 %v182
  %v2178 = vunpack.c.l.b16 %v183
  %v2179 = vunpack.c.l.b16 %v184
  %v2180 = vunpack.c.l.b16 %v185
  %v2181 = vunpack.c.l.b16 %v186
  %v2182 = vunpack.c.l.b16 %v187
  %v2183 = vunpack.c.l.b16 %v188
  %v2184 = vunpack.c.l.b16 %v189
  %v2185 = vunpack.c.l.b16 %v190
  %v2186 = vunpack.c.l.b16 %v191
  %v2187 = vunpack.c.l.b16 %v192
  %v2188 = vunpack.c.l.b16 %v193
  %v2189 = vunpack.c.l.b16 %v194
  %v2190 = vunpack.c.l.b16 %v195
  %v2191 = vunpack.c.l.b16 %v196
  %v2192 = vunpack.c.l.b16 %v197
  %v2193 = vunpack.c.l.b16 %v198
  %v2194 = vunpack.c.l.b16 %v199
  %v2195 = vunpack.c.l.b16 %v200
  %v2196 = vunpack.c.l.b16 %v201
  %v2197 = vunpack.c.l.b16 %v202
  %v2198 = vunpack.c.l.b16 %v203
  %v2199 = vunpack.c.l.b16 %v204
  %v2200 = vunpack.c.l.b16 %v205
  %v2201 = vunpack.c.l.b16 %v206
  %v2202 = vunpack.c.l.b16 %v207
  %v2203 = vunpack.c.l.b16 %v208
  %v2204 = vunpack.c.l.b16 %v209
  %v2205 = vunpack.c.l.b16 %v210
  %v2206 = vunpack.c.l.b16 %v211
  %v2207 = vunpack.c.l.b16 %v212
  %v2208 = vunpack.c.l.b16 %v213
  %v2209 = vunpack.c.l.b16 %v214
  %v2210 = vunpack.c.l.b16 %v215
  %v2211 = vunpack.c.l.b16 %v216
  %v2212 = vunpack.c.l.b16 %v217
  %v2213 = vunpack.c.l.b16 %v218
  %v2214 = vunpack.c.l.b16 %v219
  %v2215 = vunpack.c.l.b16 %v220
  %v2216 = vunpack.c.l.b16 %v221
  %v2217 = vunpack.c.l.b16 %v222
  %v2218 = vunpack.c.l.b16 %v223
  %v2219 = vunpack.c.l.b16 %v224
  %v2220 = vunpack.c.l.b16 %v225
  %v2221 = vunpack.c.l.b16 %v226
  %v2222 = vunpack.c.l.b16 %v227
  %v2223 = vunpack.c.l.b16 %v228
  %v2224 = vunpack.c.l.b16 %v229
  %v2225 = vunpack.c.l.b16 %v230
  %v2226 = vunpack.c.l.b16 %v231
  %v2227 = vunpack.c.l.b16 %v232
  %v2228 = vunpack.c.l.b16 %v233
  %v2229 = vunpack.c.l.b16 %v234
  %v2230 = vunpack.c.l.b16 %v235
  %v2231 = vunpack.c.l.b16 %v236
  %v2232 = vunpack.c.l.b16 %v237
  %v2233 = vunpack.c.l.b16 %v238
  %v2234 = vunpack.c.l.b16 %v239
  %v2235 = vunpack.c.l.b16 %v240
  %v2236 = vunpack.c.l.b16 %v241
  %v2237 = vunpack.c.l.b16 %v242
  %v2238 = vunpack.c.l.b16 %v243
  %v2239 = vunpack.c.l.b16 %v244
  %v2240 = vunpack.c.l.b16 %v245
  %v2241 = vunpack.c.l.b16 %v246
  %v2242 = vunpack.c.l.b16 %v247
  %v2243 = vunpack.c.l.b16 %v248
  %v2244 = vunpack.c.l.b16 %v249
  %v2245 = vunpack.c.l.b16 %v250
  %v2246 = vunpack.c.l.b16 %v251
  %v2247 = vunpack.c.l.b16 %v252
  %v2248 = vunpack.c.l.b16 %v253
  %v2249 = vunpack.c.l.b16 %v254
  %v2250 = vunpack.c.l.b16 %v255
  %v2251 = vunpack.c.l.b16 %v256
  %v2252 = vunpack.c.l.b16 %v257
  %v2253 = vunpack.c.l.b16 %v258
  %v2254 = vunpack.c.l.b16 %v259
  %v2255 = vunpack.c.l.b16 %v260
  %v2256 = vunpack.c.l.b16 %v261
  %v2257 = vunpack.c.l.b16 %v262
  %v2258 = vunpack.c.l.b16 %v263
  %v2259 = vunpack.c.l.b16 %v264
  %v2260 = vunpack.c.l.b16 %v265
  %v2261 = vunpack.c.l.b16 %v266
  %v2262 = vunpack.c.l.b16 %v267
  %v2263 = vunpack.c.l.b16 %v268
  %v2264 = vunpack.c.l.b16 %v269
  %v2265 = vunpack.c.l.b16 %v270
  %v2266 = vunpack.c.l.b16 %v271
  %v2267 = vunpack.c.l.b16 %v272
  %v2268 = vunpack.c.l.b16 %v273
  %v2269 = vunpack.c.l.b16 %v274
  %v2270 = vunpack.c.l.b16 %v275
  %v2271 = vunpack.c.l.b16 %v276
  %v2272 = vunpack.c.l.b16 %v277
  %v2273 = vunpack.c.l.b16 %v278
  %v2274 = vunpack.c.l.b16 %v279
  %v2275 = vunpack.c.l.b16 %v280
  %v2276 = vunpack.c.l.b16 %v281
  %v2277 = vunpack.c.l.b16 %v282
  %v2278 = vunpack.c.l.b16 %v283
  %v2279 = vunpack.c.l.b16 %v284
  %v2280 = vunpack.c.l.b16 %v285
  %v2281 = vunpack.c.l.b16 %v286
  %v2282 = vunpack.c.l.b16 %v287
  %v2283 = vunpack.c.l.b16 %v288
  %v2284 = vunpack.c.l.b16 %v289
  %v2285 = vunpack.c.l.b16 %v290
  %v2286 = vunpack.c.l.b16 %v291
  %v2287 = vunpack.c.l.b16 %v292
  %v2288 = vunpack.c.l.b16 %v293
  %v2289 = vunpack.c.l.b16 %v294
  %v2290 = vunpack.c.l.b16 %v295
  %v2291 = vunpack.c.l.b16 %v296
  %v2292 = vunpack.c.l.b16 %v297
  %v2293 = vunpack.c.l.b16 %v298
  %v2294 = vunpack.c.l.b16 %v299
  %v2295 = vunpack.c.l.b16 %v300
  %v2296 = vunpack.c.l.b16 %v301
  %v2297 = vunpack.c.l.b16 %v302
  %v2298 = vunpack.c.l.b16 %v303
  %v2299 = vunpack.c.l.b16 %v304
  %v2300 = vunpack.c.l.b16 %v305
  %v2301 = vunpack.c.l.b16 %v306
  %v2302 = vunpack.c.l.b16 %v307
  %v2303 = vunpack.c.l.b16 %v308
  %v2304 = vunpack.c.l.b16 %v309
  %v2305 = vunpack.c.l.b16 %v310
  %v2306 = vunpack.c.l.b16 %v311
  %v2307 = vunpack.c.l.b16 %v312
  %v2308 = vunpack.c.l.b16 %v313
  %v2309 = vunpack.c.l.b16 %v314
  %v2310 = vunpack.c.l.b16 %v315
  %v2311 = vunpack.c.l.b16 %v316
  %v2312 = vunpack.c.l.b16 %v317
  %v2313 = vunpack.c.l.b16 %v318
  %v2314 = vunpack.c.l.b16 %v319
  %v2315 = vunpack.c.l.b16 %v320
  %v2316 = vunpack.c.l.b16 %v321
  %v2317 = vunpack.c.l.b16 %v322
  %v2318 = vunpack.c.l.b16 %v323
  %v2319 = vunpack.c.l.b16 %v324
  %v2320 = vunpack.c.l.b16 %v325
  %v2321 = vunpack.c.l.b16 %v326
  %v2322 = vunpack.c.l.b16 %v327
  %v2323 = vunpack.c.l.b16 %v328
  %v2324 = vunpack.c.l.b16 %v329
  %v2325 = vunpack.c.l.b16 %v330
  %v2326 = vunpack.c.l.b16 %v331
  %v2327 = vunpack.c.l.b16 %v332
  %v2328 = vunpack.c.l.b16 %v333
  %v2329 = vunpack.c.l.b16 %v334
  %v2330 = vunpack.c.l.b16 %v335
  %v2331 = vunpack.c.l.b16 %v336
  %v2332 = vunpack.c.l.b16 %v337
  %v2333 = vunpack.c.l.b16 %v338
  %v2334 = vunpack.c.l.b16 %v339
  %v2335 = vunpack.c.l.b16 %v340
  %v2336 = vunpack.c.l.b16 %v341
  %v2337 = vunpack.c.l.b16 %v342
  %v2338 = vunpack.c.l.b16 %v343
  %v2339 = vunpack.c.l.b16 %v344
  %v2340 = vunpack.c.l.b16 %v345
  %v2341 = vunpack.c.l.b16 %v346
  %v2342 = vunpack.c.l.b16 %v347
  %v2343 = vunpack.c.l.b16 %v348
  %v2344 = vunpack.c.l.b16 %v349
  %v2345 = vunpack.c.l.b16 %v350
  %v2346 = vunpack.c.l.b16 %v351
  %v2347 = vunpack.c.l.b16 %v352
  %v2348 = vunpack.c.l.b16 %v353
  %v2349 = vunpack.c.l.b16 %v354
  %v2350 = vunpack.c.l.b16 %v355
  %v2351 = vunpack.c.l.b16 %v356
  %v2352 = vunpack.c.l.b16 %v357
  %v2353 = vunpack.c.l.b16 %v358
  %v2354 = vunpack.c.l.b16 %v359
  %v2355 = vunpack.c.l.b16 %v360
  %v2356 = vunpack.c.l.b16 %v361
  %v2357 = vunpack.c.l.b16 %v362
  %v2358 = vunpack.c.l.b16 %v363
  %v2359 = vunpack.c.l.b16 %v364
  %v2360 = vunpack.c.l.b16 %v365
  %v2361 = vunpack.c.l.b16 %v366
  %v2362 = vunpack.c.l.b16 %v367
  %v2363 = vunpack.c.l.b16 %v368
  %v2364 = vunpack.c.l.b16 %v369
  %v2365 = vunpack.c.l.b16 %v370
  %v2366 = vunpack.c.l.b16 %v371
  %v2367 = vunpack.c.l.b16 %v372
  %v2368 = vunpack.c.l.b16 %v373
  %v2369 = vunpack.c.l.b16 %v374
  %v2370 = vunpack.c.l.b16 %v375
  %v2371 = vunpack.c.l.b16 %v376
  %v2372 = vunpack.c.l.b16 %v377
  %v2373 = vunpack.c.l.b16 %v378
  %v2374 = vunpack.c.l.b16 %v379
  %v2375 = vunpack.c.l.b16 %v380
  %v2376 = vunpack.c.l.b16 %v381
  %v2377 = vunpack.c.l.b16 %v382
  %v2378 = vunpack.c.l.b16 %v383
  %v2379 = vunpack.c.l.b16 %v384
  %v2380 = vunpack.c.l.b16 %v385
  %v2381 = vunpack.c.l.b16 %v386
  %v2382 = vunpack.c.l.b16 %v387
  %v2383 = vunpack.c.l.b16 %v388
  %v2384 = vunpack.c.l.b16 %v389
  %v2385 = vunpack.c.l.b16 %v390
  %v2386 = vunpack.c.l.b16 %v391
  %v2387 = vunpack.c.l.b16 %v392
  %v2388 = vunpack.c.l.b16 %v393
  %v2389 = vunpack.c.l.b16 %v394
  %v2390 = vunpack.c.l.b16 %v395
  %v2391 = vunpack.c.l.b16 %v396
  %v2392 = vunpack.c.l.b16 %v397
  %v2393 = vunpack.c.l.b16 %v398
  %v2394 = vunpack.c.l.b16 %v399
  %v2395 = vunpack.c.l.b16 %v400
  %v2396 = vunpack.c.l.b16 %v401
  %v2397 = vunpack.c.l.b16 %v402
  %v2398 = vunpack.c.l.b16 %v403
  %v2399 = vunpack.c.l.b16 %v404
  %v2400 = vunpack.c.l.b16 %v405
  %v2401 = vunpack.c.l.b16 %v406
  %v2402 = vunpack.c.l.b16 %v407
  %v2403 = vunpack.c.l.b16 %v408
  %v2404 = vunpack.c.l.b16 %v409
  %v2405 = vunpack.c.l.b16 %v410
  %v2406 = vunpack.c.l.b16 %v411
  %v2407 = vunpack.c.l.b16 %v412
  %v2408 = vunpack.c.l.b16 %v413
  %v2409 = vunpack.c.l.b16 %v414
  %v2410 = vunpack.c.l.b16 %v415
  %v2411 = vunpack.c.l.b16 %v416
  %v2412 = vunpack.c.l.b16 %v417
  %v2413 = vunpack.c.l.b16 %v418
  %v2414 = vunpack.c.l.b16 %v419
  %v2415 = vunpack.c.l.b16 %v420
  %v2416 = vunpack.c.l.b16 %v421
  %v2417 = vunpack.c.l.b16 %v422
  %v2418 = vunpack.c.l.b16 %v423
  %v2419 = vunpack.c.l.b16 %v424
  %v2420 = vunpack.c.l.b16 %v425
  %v2421 = vunpack.c.l.b16 %v426
  %v2422 = vunpack.c.l.b16 %v427
  %v2423 = vunpack.c.l.b16 %v428
  %v2424 = vunpack.c.l.b16 %v429
  %v2425 = vunpack.c.l.b16 %v430
  %v2426 = vunpack.c.l.b16 %v431
  %v2427 = vunpack.c.l.b16 %v432
  %v2428 = vunpack.c.l.b16 %v433
  %v2429 = vunpack.c.l.b16 %v434
  %v2430 = vunpack.c.l.b16 %v435
  %v2431 = vunpack.c.l.b16 %v436
  %v2432 = vunpack.c.l.b16 %v437
  %v2433 = vunpack.c.l.b16 %v438
  %v2434 = vunpack.c.l.b16 %v439
  %v2435 = vunpack.c.l.b16 %v440
  %v2436 = vunpack.c.l.b16 %v441
  %v2437 = vunpack.c.l.b16 %v442
  %v2438 = vunpack.c.l.b16 %v443
  %v2439 = vunpack.c.l.b16 %v444
  %v2440 = vunpack.c.l.b16 %v445
  %v2441 = vunpack.c.l.b16 %v446
  %v2442 = vunpack.c.l.b16 %v447
  %v2443 = vunpack.c.l.b16 %v448
  %v2444 = vunpack.c.l.b16 %v449
  %v2445 = vunpack.c.l.b16 %v450
  %v2446 = vunpack.c.l.b16 %v451
  %v2447 = vunpack.c.l.b16 %v452
  %v2448 = vunpack.c.l.b16 %v453
  %v2449 = vunpack.c.l.b16 %v454
  %v2450 = vunpack.c.l.b16 %v455
  %v2451 = vunpack.c.l.b16 %v456
  %v2452 = vunpack.c.l.b16 %v457
  %v2453 = vunpack.c.l.b16 %v458
  %v2454 = vunpack.c.l.b16 %v459
  %v2455 = vunpack.c.l.b16 %v460
  %v2456 = vunpack.c.l.b16 %v461
  %v2457 = vunpack.c.l.b16 %v462
  %v2458 = vunpack.c.l.b16 %v463
  %v2459 = vunpack.c.l.b16 %v464
  %v2460 = vunpack.c.l.b16 %v465
  %v2461 = vunpack.c.l.b16 %v466
  %v2462 = vunpack.c.l.b16 %v467
  %v2463 = vunpack.c.l.b16 %v468
  %v2464 = vunpack.c.l.b16 %v469
  %v2465 = vunpack.c.l.b16 %v470
  %v2466 = vunpack.c.l.b16 %v471
  %v2467 = vunpack.c.l.b16 %v472
  %v2468 = vunpack.c.l.b16 %v473
  %v2469 = vunpack.c.l.b16 %v474
  %v2470 = vunpack.c.l.b16 %v475
  %v2471 = vunpack.c.l.b16 %v476
  %v2472 = vunpack.c.l.b16 %v477
  %v2473 = vunpack.c.l.b16 %v478
  %v2474 = vunpack.c.l.b16 %v479
  %v2475 = vunpack.c.l.b16 %v480
  %v2476 = vunpack.c.l.b16 %v481
  %v2477 = vunpack.c.l.b16 %v482
  %v2478 = vunpack.c.l.b16 %v483
  %v2479 = vunpack.c.l.b16 %v484
  %v2480 = vunpack.c.l.b16 %v485
  %v2481 = vunpack.c.l.b16 %v486
  %v2482 = vunpack.c.l.b16 %v487
  %v2483 = vunpack.c.l.b16 %v488
  %v2484 = vunpack.c.l.b16 %v489
  %v2485 = vunpack.c.l.b16 %v490
  %v2486 = vunpack.c.l.b16 %v491
  %v2487 = vunpack.c.l.b16 %v492
  %v2488 = vunpack.c.l.b16 %v493
  %v2489 = vunpack.c.l.b16 %v494
  %v2490 = vunpack.c.l.b16 %v495
  %v2491 = vunpack.c.l.b16 %v496
  %v2492 = vunpack.c.l.b16 %v497
  %v2493 = vunpack.c.l.b16 %v498
  %v2494 = vunpack.c.l.b16 %v499
  %v2495 = vunpack.c.l.b16 %v500
  %v2496 = vunpack.c.l.b16 %v501
  %v2497 = vunpack.c.l.b16 %v502
  %v2498 = vunpack.c.l.b16 %v503
  %v2499 = vunpack.c.l.b16 %v504
  %v2500 = vunpack.c.l.b16 %v505
  %v2501 = vunpack.c.l.b16 %v506
  %v2502 = vunpack.c.l.b16 %v507
  %v2503 = vunpack.c.l.b16 %v508
  %v2504 = vunpack.c.l.b16 %v509
  %v2505 = vunpack.c.l.b16 %v510
  %v2506 = vunpack.c.l.b16 %v511
  %v2507 = vunpack.c.l.b16 %v512
  %v2508 = vunpack.c.l.b16 %v513
  %v2509 = vunpack.c.l.b16 %v514
  %v2510 = vunpack.c.l.b16 %v515
  %v2511 = vunpack.c.l.b16 %v516
  %v2512 = vunpack.c.l.b16 %v517
  %v2513 = vunpack.c.l.b16 %v518
  %v2514 = vunpack.c.l.b16 %v519
  %v2515 = vunpack.c.l.b16 %v520
  %v2516 = vunpack.c.l.b16 %v521
  %v2517 = vunpack.c.l.b16 %v522
  %v2518 = vunpack.c.l.b16 %v523
  %v2519 = vunpack.c.l.b16 %v524
  %v2520 = vunpack.c.l.b16 %v525
  %v2521 = vunpack.c.l.b16 %v526
  %v2522 = vunpack.c.l.b16 %v527
  %v2523 = vunpack.c.l.b16 %v528
  %v2524 = vunpack.c.l.b16 %v529
  %v2525 = vunpack.c.l.b16 %v530
  %v2526 = vunpack.c.l.b16 %v531
  %v2527 = vunpack.c.l.b16 %v532
  %v2528 = vunpack.c.l.b16 %v533
  %v2529 = vunpack.c.l.b16 %v534
  %v2530 = vunpack.c.l.b16 %v535
  %v2531 = vunpack.c.l.b16 %v536
  %v2532 = vunpack.c.l.b16 %v537
  %v2533 = vunpack.c.l.b16 %v538
  %v2534 = vunpack.c.l.b16 %v539
  %v2535 = vunpack.c.l.b16 %v540
  %v2536 = vunpack.c.l.b16 %v541
  %v2537 = vunpack.c.l.b16 %v542
  %v2538 = vunpack.c.l.b16 %v543
  %v2539 = vunpack.c.l.b16 %v544
  %v2540 = vunpack.c.l.b16 %v545
  %v2541 = vunpack.c.l.b16 %v546
  %v2542 = vunpack.c.l.b16 %v547
  %v2543 = vunpack.c.l.b16 %v548
  %v2544 = vunpack.c.l.b16 %v549
  %v2545 = vunpack.c.l.b16 %v550
  %v2546 = vunpack.c.l.b16 %v551
  %v2547 = vunpack.c.l.b16 %v552
  %v2548 = vunpack.c.l.b16 %v553
  %v2549 = vunpack.c.l.b16 %v554
  %v2550 = vunpack.c.l.b16 %v555
  %v2551 = vunpack.c.l.b16 %v556
  %v2552 = vunpack.c.l.b16 %v557
  %v2553 = vunpack.c.l.b16 %v558
  %v2554 = vunpack.c.l.b16 %v559
  %v2555 = vunpack.c.l.b16 %v560
  %v2556 = vunpack.c.l.b16 %v561
  %v2557 = vunpack.c.l.b16 %v562
  %v2558 = vunpack.c.l.b16 %v563
  %v2559 = vunpack.c.l.b16 %v564
  %v2560 = vunpack.c.l.b16 %v565
  %v2561 = vunpack.c.l.b16 %v566
  %v2562 = vunpack.c.l.b16 %v567
  %v2563 = vunpack.c.l.b16 %v568
  %v2564 = vunpack.c.l.b16 %v569
  %v2565 = vunpack.c.l.b16 %v570
  %v2566 = vunpack.c.l.b16 %v571
  %v2567 = vunpack.c.l.b16 %v572
  %v2568 = vunpack.c.l.b16 %v573
  %v2569 = vunpack.c.l.b16 %v574
  %v2570 = vunpack.c.l.b16 %v575
  %v2571 = vunpack.c.l.b16 %v576
  %v2572 = vunpack.c.l.b16 %v577
  %v2573 = vunpack.c.l.b16 %v578
  %v2574 = vunpack.c.l.b16 %v579
  %v2575 = vunpack.c.l.b16 %v580
  %v2576 = vunpack.c.l.b16 %v581
  %v2577 = vunpack.c.l.b16 %v582
  %v2578 = vunpack.c.l.b16 %v583
  %v2579 = vunpack.c.l.b16 %v584
  %v2580 = vunpack.c.l.b16 %v585
  %v2581 = vunpack.c.l.b16 %v586
  %v2582 = vunpack.c.l.b16 %v587
  %v2583 = vunpack.c.l.b16 %v588
  %v2584 = vunpack.c.l.b16 %v589
  %v2585 = vunpack.c.l.b16 %v590
  %v2586 = vunpack.c.l.b16 %v591
  %v2587 = vunpack.c.l.b16 %v592
  %v2588 = vunpack.c.l.b16 %v593
  %v2589 = vunpack.c.l.b16 %v594
  %v2590 = vunpack.c.l.b16 %v595
  %v2591 = vunpack.c.l.b16 %v596
  %v2592 = vunpack.c.l.b16 %v597
  %v2593 = vunpack.c.l.b16 %v598
  %v2594 = vunpack.c.l.b16 %v599
  %v2595 = vunpack.c.l.b16 %v600
  %v2596 = vunpack.c.l.b16 %v601
  %v2597 = vunpack.c.l.b16 %v602
  %v2598 = vunpack.c.l.b16 %v603
  %v2599 = vunpack.c.l.b16 %v604
  %v2600 = vunpack.c.l.b16 %v605
  %v2601 = vunpack.c.l.b16 %v606
  %v2602 = vunpack.c.l.b16 %v607
  %v2603 = vunpack.c.l.b16 %v608
  %v2604 = vunpack.c.l.b16 %v609
  %v2605 = vunpack.c.l.b16 %v610
  %v2606 = vunpack.c.l.b16 %v611
  %v2607 = vunpack.c.l.b16 %v612
  %v2608 = vunpack.c.l.b16 %v613
  %v2609 = vunpack.c.l.b16 %v614
  %v2610 = vunpack.c.l.b16 %v615
  %v2611 = vunpack.c.l.b16 %v616
  %v2612 = vunpack.c.l.b16 %v617
  %v2613 = vunpack.c.l.b16 %v618
  %v2614 = vunpack.c.l.b16 %v619
  %v2615 = vunpack.c.l.b16 %v620
  %v2616 = vunpack.c.l.b16 %v621
  %v2617 = vunpack.c.l.b16 %v622
  %v2618 = vunpack.c.l.b16 %v623
  %v2619 = vunpack.c.l.b16 %v624
  %v2620 = vunpack.c.l.b16 %v625
  %v2621 = vunpack.c.l.b16 %v626
  %v2622 = vunpack.c.l.b16 %v627
  %v2623 = vunpack.c.l.b16 %v628
  %v2624 = vunpack.c.l.b16 %v629
  %v2625 = vunpack.c.l.b16 %v630
  %v2626 = vunpack.c.l.b16 %v631
  %v2627 = vunpack.c.l.b16 %v632
  %v2628 = vunpack.c.l.b16 %v633
  %v2629 = vunpack.c.l.b16 %v634
  %v2630 = vunpack.c.l.b16 %v635
  %v2631 = vunpack.c.l.b16 %v636
  %v2632 = vunpack.c.l.b16 %v637
  %v2633 = vunpack.c.l.b16 %v638
  %v2634 = vunpack.c.l.b16 %v639
  %v2635 = vunpack.c.l.b16 %v640
  %v2636 = vunpack.c.l.b16 %v641
  %v2637 = vunpack.c.l.b16 %v642
  %v2638 = vunpack.c.l.b16 %v643
  %v2639 = vunpack.c.l.b16 %v644
  %v2640 = vunpack.c.l.b16 %v645
  %v2641 = vunpack.c.l.b16 %v646
  %v2642 = vunpack.c.l.b16 %v647
  %v2643 = vunpack.c.l.b16 %v648
  %v2644 = vunpack.c.l.b16 %v649
  %v2645 = vunpack.c.l.b16 %v650
  %v2646 = vunpack.c.l.b16 %v651
  %v2647 = vunpack.c.l.b16 %v652
  %v2648 = vunpack.c.l.b16 %v653
  %v2649 = vunpack.c.l.b16 %v654
  %v2650 = vunpack.c.l.b16 %v655
  %v2651 = vunpack.c.l.b16 %v656
  %v2652 = vunpack.c.l.b16 %v657
  %v2653 = vunpack.c.l.b16 %v658
  %v2654 = vunpack.c.l.b16 %v659
  %v2655 = vunpack.c.l.b16 %v660
  %v2656 = vunpack.c.l.b16 %v661
  %v2657 = vunpack.c.l.b16 %v662
  %v2658 = vunpack.c.l.b16 %v663
  %v2659 = vunpack.c.l.b16 %v664
  %v2660 = vunpack.c.l.b16 %v665
  %v2661 = vunpack.c.l.b16 %v666
  %v2662 = vunpack.c.l.b16 %v667
  %v2663 = vunpack.c.l.b16 %v668
  %v2664 = vunpack.c.l.b16 %v669
  %v2665 = vunpack.c.l.b16 %v670
  %v2666 = vunpack.c.l.b16 %v671
  %v2667 = vunpack.c.l.b16 %v672
  %v2668 = vunpack.c.l.b16 %v673
  %v2669 = vunpack.c.l.b16 %v674
  %v2670 = vunpack.c.l.b16 %v675
  %v2671 = vunpack.c.l.b16 %v676
  %v2672 = vunpack.c.l.b16 %v677
  %v2673 = vunpack.c.l.b16 %v678
  %v2674 = vunpack.c.l.b16 %v679
  %v2675 = vunpack.c.l.b16 %v680
  %v2676 = vunpack.c.l.b16 %v681
  %v2677 = vunpack.c.l.b16 %v682
  %v2678 = vunpack.c.l.b16 %v683
  %v2679 = vunpack.c.l.b16 %v684
  %v2680 = vunpack.c.l.b16 %v685
  %v2681 = vunpack.c.l.b16 %v686
  %v2682 = vunpack.c.l.b16 %v687
  %v2683 = vunpack.c.l.b16 %v688
  %v2684 = vunpack.c.l.b16 %v689
  %v2685 = vunpack.c.l.b16 %v690
  %v2686 = vunpack.c.l.b16 %v691
  %v2687 = vunpack.c.l.b16 %v692
  %v2688 = vunpack.c.l.b16 %v693
  %v2689 = vunpack.c.l.b16 %v694
  %v2690 = vunpack.c.l.b16 %v695
  %v2691 = vunpack.c.l.b16 %v696
  %v2692 = vunpack.c.l.b16 %v697
  %v2693 = vunpack.c.l.b16 %v698
  %v2694 = vunpack.c.l.b16 %v699
  %v2695 = vunpack.c.l.b16 %v700
  %v2696 = vunpack.c.l.b16 %v701
  %v2697 = vunpack.c.l.b16 %v702
  %v2698 = vunpack.c.l.b16 %v703
  %v2699 = vunpack.c.l.b16 %v704
  %v2700 = vunpack.c.l.b16 %v705
  %v2701 = vunpack.c.l.b16 %v706
  %v2702 = vunpack.c.l.b16 %v707
  %v2703 = vunpack.c.l.b16 %v708
  %v2704 = vunpack.c.l.b16 %v709
  %v2705 = vunpack.c.l.b16 %v710
  %v2706 = vunpack.c.l.b16 %v711
  %v2707 = vunpack.c.l.b16 %v712
  %v2708 = vunpack.c.l.b16 %v713
  %v2709 = vunpack.c.l.b16 %v714
  %v2710 = vunpack.c.l.b16 %v715
  %v2711 = vunpack.c.l.b16 %v716
  %v2712 = vunpack.c.l.b16 %v717
  %v2713 = vunpack.c.l.b16 %v718
  %v2714 = vunpack.c.l.b16 %v719
  %v2715 = vunpack.c.l.b16 %v720
  %v2716 = vunpack.c.l.b16 %v721
  %v2717 = vunpack.c.l.b16 %v722
  %v2718 = vunpack.c.l.b16 %v723
  %v2719 = vunpack.c.l.b16 %v724
  %v2720 = vunpack.c.l.b16 %v725
  %v2721 = vunpack.c.l.b16 %v726
  %v2722 = vunpack.c.l.b16 %v727
  %v2723 = vunpack.c.l.b16 %v728
  %v2724 = vunpack.c.l.b16 %v729
  %v2725 = vunpack.c.l.b16 %v730
  %v2726 = vunpack.c.l.b16 %v731
  %v2727 = vunpack.c.l.b16 %v732
  %v2728 = vunpack.c.l.b16 %v733
  %v2729 = vunpack.c.l.b16 %v734
  %v2730 = vunpack.c.l.b16 %v735
  %v2731 = vunpack.c.l.b16 %v736
  %v2732 = vunpack.c.l.b16 %v737
  %v2733 = vunpack.c.l.b16 %v738
  %v2734 = vunpack.c.l.b16 %v739
  %v2735 = vunpack.c.l.b16 %v740
  %v2736 = vunpack.c.l.b16 %v741
  %v2737 = vunpack.c.l.b16 %v742
  %v2738 = vunpack.c.l.b16 %v743
  %v2739 = vunpack.c.l.b16 %v744
  %v2740 = vunpack.c.l.b16 %v745
  %v2741 = vunpack.c.l.b16 %v746
  %v2742 = vunpack.c.l.b16 %v747
  %v2743 = vunpack.c.l.b16 %v748
  %v2744 = vunpack.c.l.b16 %v749
  %v2745 = vunpack.c.l.b16 %v750
  %v2746 = vunpack.c.l.b16 %v751
  %v2747 = vunpack.c.l.b16 %v752
  %v2748 = vunpack.c.l.b16 %v753
  %v2749 = vunpack.c.l.b16 %v754
  %v2750 = vunpack.c.l.b16 %v755
  %v2751 = vunpack.c.l.b16 %v756
  %v2752 = vunpack.c.l.b16 %v757
  %v2753 = vunpack.c.l.b16 %v758
  %v2754 = vunpack.c.l.b16 %v759
  %v2755 = vunpack.c.l.b16 %v760
  %v2756 = vunpack.c.l.b16 %v761
  %v2757 = vunpack.c.l.b16 %v762
  %v2758 = vunpack.c.l.b16 %v763
  %v2759 = vunpack.c.l.b16 %v764
  %v2760 = vunpack.c.l.b16 %v765
  %v2761 = vunpack.c.l.b16 %v766
  %v2762 = vunpack.c.l.b16 %v767
  %v2763 = vunpack.c.l.b16 %v768
  %v2764 = vunpack.c.l.b16 %v769
  %v2765 = vunpack.c.l.b16 %v770
  %v2766 = vunpack.c.l.b16 %v771
  %v2767 = vunpack.c.l.b16 %v772
  %v2768 = vunpack.c.l.b16 %v773
  %v2769 = vunpack.c.l.b16 %v774
  %v2770 = vunpack.c.l.b16 %v775
  %v2771 = vunpack.c.l.b16 %v776
  %v2772 = vunpack.c.l.b16 %v777
  %v2773 = vunpack.c.l.b16 %v778
  %v2774 = vunpack.c.l.b16 %v779
  %v2775 = vunpack.c.l.b16 %v780
  %v2776 = vunpack.c.l.b16 %v781
  %v2777 = vunpack.c.l.b16 %v782
  %v2778 = vunpack.c.l.b16 %v783
  %v2779 = vunpack.c.l.b16 %v784
  %v2780 = vunpack.c.l.b16 %v785
  %v2781 = vunpack.c.l.b16 %v786
  %v2782 = vunpack.c.l.b16 %v787
  %v2783 = vunpack.c.l.b16 %v788
  %v2784 = vunpack.c.l.b16 %v789
  %v2785 = vunpack.c.l.b16 %v790
  %v2786 = vunpack.c.l.b16 %v791
  %v2787 = vunpack.c.l.b16 %v792
  %v2788 = vunpack.c.l.b16 %v793
  %v2789 = vunpack.c.l.b16 %v794
  %v2790 = vunpack.c.l.b16 %v795
  %v2791 = vunpack.c.l.b16 %v796
  %v2792 = vunpack.c.l.b16 %v797
  %v2793 = vunpack.c.l.b16 %v798
  %v2794 = vunpack.c.l.b16 %v799
  %v2795 = vunpack.c.l.b16 %v800
  %v2796 = vunpack.c.l.b16 %v801
  %v2797 = vunpack.c.l.b16 %v802
  %v2798 = vunpack.c.l.b16 %v803
  %v2799 = vunpack.c.l.b16 %v804
  %v2800 = vunpack.c.l.b16 %v805
  %v2801 = vunpack.c.l.b16 %v806
  %v2802 = vunpack.c.l.b16 %v807
  %v2803 = vunpack.c.l.b16 %v808
  %v2804 = vunpack.c.l.b16 %v809
  %v2805 = vunpack.c.l.b16 %v810
  %v2806 = vunpack.c.l.b16 %v811
  %v2807 = vunpack.c.l.b16 %v812
  %v2808 = vunpack.c.l.b16 %v813
  %v2809 = vunpack.c.l.b16 %v814
  %v2810 = vunpack.c.l.b16 %v815
  %v2811 = vunpack.c.l.b16 %v816
  %v2812 = vunpack.c.l.b16 %v817
  %v2813 = vunpack.c.l.b16 %v818
  %v2814 = vunpack.c.l.b16 %v819
  %v2815 = vunpack.c.l.b16 %v820
  %v2816 = vunpack.c.l.b16 %v821
  %v2817 = vunpack.c.l.b16 %v822
  %v2818 = vunpack.c.l.b16 %v823
  %v2819 = vunpack.c.l.b16 %v824
  %v2820 = vunpack.c.l.b16 %v825
  %v2821 = vunpack.c.l.b16 %v826
  %v2822 = vunpack.c.l.b16 %v827
  %v2823 = vunpack.c.l.b16 %v828
  %v2824 = vunpack.c.l.b16 %v829
  %v2825 = vunpack.c.l.b16 %v830
  %v2826 = vunpack.c.l.b16 %v831
  %v2827 = vunpack.c.l.b16 %v832
  %v2828 = vunpack.c.l.b16 %v833
  %v2829 = vunpack.c.l.b16 %v834
  %v2830 = vunpack.c.l.b16 %v835
  %v2831 = vunpack.c.l.b16 %v836
  %v2832 = vunpack.c.l.b16 %v837
  %v2833 = vunpack.c.l.b16 %v838
  %v2834 = vunpack.c.l.b16 %v839
  %v2835 = vunpack.c.l.b16 %v840
  %v2836 = vunpack.c.l.b16 %v841
  %v2837 = vunpack.c.l.b16 %v842
  %v2838 = vunpack.c.l.b16 %v843
  %v2839 = vunpack.c.l.b16 %v844
  %v2840 = vunpack.c.l.b16 %v845
  %v2841 = vunpack.c.l.b16 %v846
  %v2842 = vunpack.c.l.b16 %v847
  %v2843 = vunpack.c.l.b16 %v848
  %v2844 = vunpack.c.l.b16 %v849
  %v2845 = vunpack.c.l.b16 %v850
  %v2846 = vunpack.c.l.b16 %v851
  %v2847 = vunpack.c.l.b16 %v852
  %v2848 = vunpack.c.l.b16 %v853
  %v2849 = vunpack.c.l.b16 %v854
  %v2850 = vunpack.c.l.b16 %v855
  %v2851 = vunpack.c.l.b16 %v856
  %v2852 = vunpack.c.l.b16 %v857
  %v2853 = vunpack.c.l.b16 %v858
  %v2854 = vunpack.c.l.b16 %v859
  %v2855 = vunpack.c.l.b16 %v860
  %v2856 = vunpack.c.l.b16 %v861
  %v2857 = vunpack.c.l.b16 %v862
  %v2858 = vunpack.c.l.b16 %v863
  %v2859 = vunpack.c.l.b16 %v864
  %v2860 = vunpack.c.l.b16 %v865
  %v2861 = vunpack.c.l.b16 %v866
  %v2862 = vunpack.c.l.b16 %v867
  %v2863 = vunpack.c.l.b16 %v868
  %v2864 = vunpack.c.l.b16 %v869
  %v2865 = vunpack.c.l.b16 %v870
  %v2866 = vunpack.c.l.b16 %v871
  %v2867 = vunpack.c.l.b16 %v872
  %v2868 = vunpack.c.l.b16 %v873
  %v2869 = vunpack.c.l.b16 %v874
  %v2870 = vunpack.c.l.b16 %v875
  %v2871 = vunpack.c.l.b16 %v876
  %v2872 = vunpack.c.l.b16 %v877
  %v2873 = vunpack.c.l.b16 %v878
  %v2874 = vunpack.c.l.b16 %v879
  %v2875 = vunpack.c.l.b16 %v880
  %v2876 = vunpack.c.l.b16 %v881
  %v2877 = vunpack.c.l.b16 %v882
  %v2878 = vunpack.c.l.b16 %v883
  %v2879 = vunpack.c.l.b16 %v884
  %v2880 = vunpack.c.l.b16 %v885
  %v2881 = vunpack.c.l.b16 %v886
  %v2882 = vunpack.c.l.b16 %v887
  %v2883 = vunpack.c.l.b16 %v888
  %v2884 = vunpack.c.l.b16 %v889
  %v2885 = vunpack.c.l.b16 %v890
  %v2886 = vunpack.c.l.b16 %v891
  %v2887 = vunpack.c.l.b16 %v892
  %v2888 = vunpack.c.l.b16 %v893
  %v2889 = vunpack.c.l.b16 %v894
  %v2890 = vunpack.c.l.b16 %v895
  %v2891 = vunpack.c.l.b16 %v896
  %v2892 = vunpack.c.l.b16 %v897
  %v2893 = vunpack.c.l.b16 %v898
  %v2894 = vunpack.c.l.b16 %v899
  %v2895 = vunpack.c.l.b16 %v900
  %v2896 = vunpack.c.l.b16 %v901
  %v2897 = vunpack.c.l.b16 %v902
  %v2898 = vunpack.c.l.b16 %v903
  %v2899 = vunpack.c.l.b16 %v904
  %v2900 = vunpack.c.l.b16 %v905
  %v2901 = vunpack.c.l.b16 %v906
  %v2902 = vunpack.c.l.b16 %v907
  %v2903 = vunpack.c.l.b16 %v908
  %v2904 = vunpack.c.l.b16 %v909
  %v2905 = vunpack.c.l.b16 %v910
  %v2906 = vunpack.c.l.b16 %v911
  %v2907 = vunpack.c.l.b16 %v912
  %v2908 = vunpack.c.l.b16 %v913
  %v2909 = vunpack.c.l.b16 %v914
  %v2910 = vunpack.c.l.b16 %v915
  %v2911 = vunpack.c.l.b16 %v916
  %v2912 = vunpack.c.l.b16 %v917
  %v2913 = vunpack.c.l.b16 %v918
  %v2914 = vunpack.c.l.b16 %v919
  %v2915 = vunpack.c.l.b16 %v920
  %v2916 = vunpack.c.l.b16 %v921
  %v2917 = vunpack.c.l.b16 %v922
  %v2918 = vunpack.c.l.b16 %v923
  %v2919 = vunpack.c.l.b16 %v924
  %v2920 = vunpack.c.l.b16 %v925
  %v2921 = vunpack.c.l.b16 %v926
  %v2922 = vunpack.c.l.b16 %v927
  %v2923 = vunpack.c.l.b16 %v928
  %v2924 = vunpack.c.l.b16 %v929
  %v2925 = vunpack.c.l.b16 %v930
  %v2926 = vunpack.c.l.b16 %v931
  %v2927 = vunpack.c.l.b16 %v932
  %v2928 = vunpack.c.l.b16 %v933
  %v2929 = vunpack.c.l.b16 %v934
  %v2930 = vunpack.c.l.b16 %v935
  %v2931 = vunpack.c.l.b16 %v936
  %v2932 = vunpack.c.l.b16 %v937
  %v2933 = vunpack.c.l.b16 %v938
  %v2934 = vunpack.c.l.b16 %v939
  %v2935 = vunpack.c.l.b16 %v940
  %v2936 = vunpack.c.l.b16 %v941
  %v2937 = vunpack.c.l.b16 %v942
  %v2938 = vunpack.c.l.b16 %v943
  %v2939 = vunpack.c.l.b16 %v944
  %v2940 = vunpack.c.l.b16 %v945
  %v2941 = vunpack.c.l.b16 %v946
  %v2942 = vunpack.c.l.b16 %v947
  %v2943 = vunpack.c.l.b16 %v948
  %v2944 = vunpack.c.l.b16 %v949
  %v2945 = vunpack.c.l.b16 %v950
  %v2946 = vunpack.c.l.b16 %v951
  %v2947 = vunpack.c.l.b16 %v952
  %v2948 = vunpack.c.l.b16 %v953
  %v2949 = vunpack.c.l.b16 %v954
  %v2950 = vunpack.c.l.b16 %v955
  %v2951 = vunpack.c.l.b16 %v956
  %v2952 = vunpack.c.l.b16 %v957
  %v2953 = vunpack.c.l.b16 %v958
  %v2954 = vunpack.c.l.b16 %v959
  %v2955 = vunpack.c.l.b16 %v960
  %v2956 = vunpack.c.l.b16 %v961
  %v2957 = vunpack.c.l.b16 %v962
  %v2958 = vpack.c.b16 %v2063, %v2062
  %v2959 = vpack.c.b16 %v2065, %v2064
  %v2960 = vpack.c.b16 %v2067, %v2066
  %v2961 = vpack.c.b16 %v2069, %v2068
  %v2962 = vpack.c.b16 %v2071, %v2070
  %v2963 = vpack.c.b16 %v2073, %v2072
  %v2964 = vpack.c.b16 %v2075, %v2074
  %v2965 = vpack.c.b16 %v2077, %v2076
  %v2966 = vpack.c.b16 %v2079, %v2078
  %v2967 = vpack.c.b16 %v2081, %v2080
  %v2968 = vpack.c.b16 %v2083, %v2082
  %v2969 = vpack.c.b16 %v2085, %v2084
  %v2970 = vpack.c.b16 %v2087, %v2086
  %v2971 = vpack.c.b16 %v2089, %v2088
  %v2972 = vpack.c.b16 %v2091, %v2090
  %v2973 = vpack.c.b16 %v2093, %v2092
  %v2974 = vpack.c.b16 %v2095, %v2094
  %v2975 = vpack.c.b16 %v2097, %v2096
  %v2976 = vpack.c.b16 %v2099, %v2098
  %v2977 = vpack.c.b16 %v2101, %v2100
  %v2978 = vpack.c.b16 %v2103, %v2102
  %v2979 = vpack.c.b16 %v2105, %v2104
  %v2980 = vpack.c.b16 %v2107, %v2106
  %v2981 = vpack.c.b16 %v2109, %v2108
  %v2982 = vpack.c.b16 %v2111, %v2110
  %v2983 = vpack.c.b16 %v2113, %v2112
  %v2984 = vpack.c.b16 %v2115, %v2114
  %v2985 = vpack.c.b16 %v2117, %v2116
  %v2986 = vpack.c.b16 %v2119, %v2118
  %v2987 = vpack.c.b16 %v2121, %v2120
  %v2988 = vpack.c.b16 %v2123, %v2122
  %v2989 = vpack.c.b16 %v2125, %v2124
  %v2990 = vpack.c.b16 %v2127, %v2126
  %v2991 = vpack.c.b16 %v2129, %v2128
  %v2992 = vpack.c.b16 %v2131, %v2130
  %v2993 = vpack.c.b16 %v2133, %v2132
  %v2994 = vpack.c.b16 %v2135, %v2134
  %v2995 = vpack.c.b16 %v2137, %v2136
  %v2996 = vpack.c.b16 %v2139, %v2138
  %v2997 = vpack.c.b16 %v2141, %v2140
  %v2998 = vpack.c.b16 %v2143, %v2142
  %v2999 = vpack.c.b16 %v2145, %v2144
  %v3000 = vpack.c.b16 %v2147, %v2146
  %v3001 = vpack.c.b16 %v2149, %v2148
  %v3002 = vpack.c.b16 %v2151, %v2150
  %v3003 = vpack.c.b16 %v2153, %v2152
  %v3004 = vpack.c.b16 %v2155, %v2154
  %v3005 = vpack.c.b16 %v2157, %v2156
  %v3006 = vpack.c.b16 %v2159, %v2158
  %v3007 = vpack.c.b16 %v2161, %v2160
  %v3008 = vpack.c.b16 %v2163, %v2162
  %v3009 = vpack.c.b16 %v2165, %v2164
  %v3010 = vpack.c.b16 %v2167, %v2166
  %v3011 = vpack.c.b16 %v2169, %v2168
  %v3012 = vpack.c.b16 %v2171, %v2170
  %v3013 = vpack.c.b16 %v2173, %v2172
  %v3014 = vpack.c.b16 %v2175, %v2174
  %v3015 = vpack.c.b16 %v2177, %v2176
  %v3016 = vpack.c.b16 %v2179, %v2178
  %v3017 = vpack.c.b16 %v2181, %v2180
  %v3018 = vpack.c.b16 %v2183, %v2182
  %v3019 = vpack.c.b16 %v2185, %v2184
  %v3020 = vpack.c.b16 %v2187, %v2186
  %v3021 = vpack.c.b16 %v2189, %v2188
  %v3022 = vpack.c.b16 %v2191, %v2190
  %v3023 = vpack.c.b16 %v2193, %v2192
  %v3024 = vpack.c.b16 %v2195, %v2194
  %v3025 = vpack.c.b16 %v2197, %v2196
  %v3026 = vpack.c.b16 %v2199, %v2198
  %v3027 = vpack.c.b16 %v2201, %v2200
  %v3028 = vpack.c.b16 %v2203, %v2202
  %v3029 = vpack.c.b16 %v2205, %v2204
  %v3030 = vpack.c.b16 %v2207, %v2206
  %v3031 = vpack.c.b16 %v2209, %v2208
  %v3032 = vpack.c.b16 %v2211, %v2210
  %v3033 = vpack.c.b16 %v2213, %v2212
  %v3034 = vpack.c.b16 %v2215, %v2214
  %v3035 = vpack.c.b16 %v2217, %v2216
  %v3036 = vpack.c.b16 %v2219, %v2218
  %v3037 = vpack.c.b16 %v2221, %v2220
  %v3038 = vpack.c.b16 %v2223, %v2222
  %v3039 = vpack.c.b16 %v2225, %v2224
  %v3040 = vpack.c.b16 %v2227, %v2226
  %v3041 = vpack.c.b16 %v2229, %v2228
  %v3042 = vpack.c.b16 %v2231, %v2230
  %v3043 = vpack.c.b16 %v2233, %v2232
  %v3044 = vpack.c.b16 %v2235, %v2234
  %v3045 = vpack.c.b16 %v2237, %v2236
  %v3046 = vpack.c.b16 %v2239, %v2238
  %v3047 = vpack.c.b16 %v2241, %v2240
  %v3048 = vpack.c.b16 %v2243, %v2242
  %v3049 = vpack.c.b16 %v2245, %v2244
  %v3050 = vpack.c.b16 %v2247, %v2246
  %v3051 = vpack.c.b16 %v2249, %v2248
  %v3052 = vpack.c.b16 %v2251, %v2250
  %v3053 = vpack.c.b16 %v2253, %v2252
  %v3054 = vpack.c.b16 %v2255, %v2254
  %v3055 = vpack.c.b16 %v2257, %v2256
  %v3056 = vpack.c.b16 %v2259, %v2258
  %v3057 = vpack.c.b16 %v2261, %v2260
  %v3058 = vpack.c.b16 %v2263, %v2262
  %v3059 = vpack.c.b16 %v2265, %v2264
  %v3060 = vpack.c.b16 %v2267, %v2266
  %v3061 = vpack.c.b16 %v2269, %v2268
  %v3062 = vpack.c.b16 %v2271, %v2270
  %v3063 = vpack.c.b16 %v2273, %v2272
  %v3064 = vpack.c.b16 %v2275, %v2274
  %v3065 = vpack.c.b16 %v2277, %v2276
  %v3066 = vpack.c.b16 %v2279, %v2278
  %v3067 = vpack.c.b16 %v2281, %v2280
  %v3068 = vpack.c.b16 %v2283, %v2282
  %v3069 = vpack.c.b16 %v2285, %v2284
  %v3070 = vpack.c.b16 %v2287, %v2286
  %v3071 = vpack.c.b16 %v2289, %v2288
  %v3072 = vpack.c.b16 %v2291, %v2290
  %v3073 = vpack.c.b16 %v2293, %v2292
  %v3074 = vpack.c.b16 %v2295, %v2294
  %v3075 = vpack.c.b16 %v2297, %v2296
  %v3076 = vpack.c.b16 %v2299, %v2298
  %v3077 = vpack.c.b16 %v2301, %v2300
  %v3078 = vpack.c.b16 %v2303, %v2302
  %v3079 = vpack.c.b16 %v2305, %v2304
  %v3080 = vpack.c.b16 %v2307, %v2306
  %v3081 = vpack.c.b16 %v2309, %v2308
  %v3082 = vpack.c.b16 %v2311, %v2310
  %v3083 = vpack.c.b16 %v2313, %v2312
  %v3084 = vpack.c.b16 %v2315, %v2314
  %v3085 = vpack.c.b16 %v2317, %v2316
  %v3086 = vpack.c.b16 %v2319, %v2318
  %v3087 = vpack.c.b16 %v2321, %v2320
  %v3088 = vpack.c.b16 %v2323, %v2322
  %v3089 = vpack.c.b16 %v2325, %v2324
  %v3090 = vpack.c.b16 %v2327, %v2326
  %v3091 = vpack.c.b16 %v2329, %v2328
  %v3092 = vpack.c.b16 %v2331, %v2330
  %v3093 = vpack.c.b16 %v2333, %v2332
  %v3094 = vpack.c.b16 %v2335, %v2334
  %v3095 = vpack.c.b16 %v2337, %v2336
  %v3096 = vpack.c.b16 %v2339, %v2338
  %v3097 = vpack.c.b16 %v2341, %v2340
  %v3098 = vpack.c.b16 %v2343, %v2342
  %v3099 = vpack.c.b16 %v2345, %v2344
  %v3100 = vpack.c.b16 %v2347, %v2346
  %v3101 = vpack.c.b16 %v2349, %v2348
  %v3102 = vpack.c.b16 %v2351, %v2350
  %v3103 = vpack.c.b16 %v2353, %v2352
  %v3104 = vpack.c.b16 %v2355, %v2354
  %v3105 = vpack.c.b16 %v2357, %v2356
  %v3106 = vpack.c.b16 %v2359, %v2358
  %v3107 = vpack.c.b16 %v2361, %v2360
  %v3108 = vpack.c.b16 %v2363, %v2362
  %v3109 = vpack.c.b16 %v2365, %v2364
  %v3110 = vpack.c.b16 %v2367, %v2366
  %v3111 = vpack.c.b16 %v2369, %v2368
  %v3112 = vpack.c.b16 %v2371, %v2370
  %v3113 = vpack.c.b16 %v2373, %v2372
  %v3114 = vpack.c.b16 %v2375, %v2374
  %v3115 = vpack.c.b16 %v2377, %v2376
  %v3116 = vpack.c.b16 %v2379, %v2378
  %v3117 = vpack.c.b16 %v2381, %v2380
  %v3118 = vpack.c.b16 %v2383, %v2382
  %v3119 = vpack.c.b16 %v2385, %v2384
  %v3120 = vpack.c.b16 %v2387, %v2386
  %v3121 = vpack.c.b16 %v2389, %v2388
  %v3122 = vpack.c.b16 %v2391, %v2390
  %v3123 = vpack.c.b16 %v2393, %v2392
  %v3124 = vpack.c.b16 %v2395, %v2394
  %v3125 = vpack.c.b16 %v2397, %v2396
  %v3126 = vpack.c.b16 %v2399, %v2398
  %v3127 = vpack.c.b16 %v2401, %v2400
  %v3128 = vpack.c.b16 %v2403, %v2402
  %v3129 = vpack.c.b16 %v2405, %v2404
  %v3130 = vpack.c.b16 %v2407, %v2406
  %v3131 = vpack.c.b16 %v2409, %v2408
  %v3132 = vpack.c.b16 %v2411, %v2410
  %v3133 = vpack.c.b16 %v2413, %v2412
  %v3134 = vpack.c.b16 %v2415, %v2414
  %v3135 = vpack.c.b16 %v2417, %v2416
  %v3136 = vpack.c.b16 %v2419, %v2418
  %v3137 = vpack.c.b16 %v2421, %v2420
  %v3138 = vpack.c.b16 %v2423, %v2422
  %v3139 = vpack.c.b16 %v2425, %v2424
  %v3140 = vpack.c.b16 %v2427, %v2426
  %v3141 = vpack.c.b16 %v2429, %v2428
  %v3142 = vpack.c.b16 %v2431, %v2430
  %v3143 = vpack.c.b16 %v2433, %v2432
  %v3144 = vpack.c.b16 %v2435, %v2434
  %v3145 = vpack.c.b16 %v2437, %v2436
  %v3146 = vpack.c.b16 %v2439, %v2438
  %v3147 = vpack.c.b16 %v2441, %v2440
  %v3148 = vpack.c.b16 %v2443, %v2442
  %v3149 = vpack.c.b16 %v2445, %v2444
  %v3150 = vpack.c.b16 %v2447, %v2446
  %v3151 = vpack.c.b16 %v2449, %v2448
  %v3152 = vpack.c.b16 %v2451, %v2450
  %v3153 = vpack.c.b16 %v2453, %v2452
  %v3154 = vpack.c.b16 %v2455, %v2454
  %v3155 = vpack.c.b16 %v2457, %v2456
  %v3156 = vpack.c.b16 %v2459, %v2458
  %v3157 = vpack.c.b16 %v2461, %v2460
  %v3158 = vpack.c.b16 %v2463, %v2462
  %v3159 = vpack.c.b16 %v2465, %v2464
  %v3160 = vpack.c.b16 %v2467, %v2466
  %v3161 = vpack.c.b16 %v2469, %v2468
  %v3162 = vpack.c.b16 %v2471, %v2470
  %v3163 = vpack.c.b16 %v2473, %v2472
  %v3164 = vpack.c.b16 %v2475, %v2474
  %v3165 = vpack.c.b16 %v2477, %v2476
  %v3166 = vpack.c.b16 %v2479, %v2478
  %v3167 = vpack.c.b16 %v2481, %v2480
  %v3168 = vpack.c.b16 %v2483, %v2482
  %v3169 = vpack.c.b16 %v2485, %v2484
  %v3170 = vpack.c.b16 %v2487, %v2486
  %v3171 = vpack.c.b16 %v2489, %v2488
  %v3172 = vpack.c.b16 %v2491, %v2490
  %v3173 = vpack.c.b16 %v2493, %v2492
  %v3174 = vpack.c.b16 %v2495, %v2494
  %v3175 = vpack.c.b16 %v2497, %v2496
  %v3176 = vpack.c.b16 %v2499, %v2498
  %v3177 = vpack.c.b16 %v2501, %v2500
  %v3178 = vpack.c.b16 %v2503, %v2502
  %v3179 = vpack.c.b16 %v2505, %v2504
  %v3180 = vpack.c.b16 %v2507, %v2506
  %v3181 = vpack.c.b16 %v2509, %v2508
  %v3182 = vpack.c.b16 %v2511, %v2510
  %v3183 = vpack.c.b16 %v2513, %v2512
  %v3184 = vpack.c.b16 %v2515, %v2514
  %v3185 = vpack.c.b16 %v2517, %v2516
  %v3186 = vpack.c.b16 %v2519, %v2518
  %v3187 = vpack.c.b16 %v2521, %v2520
  %v3188 = vpack.c.b16 %v2523, %v2522
  %v3189 = vpack.c.b16 %v2525, %v2524
  %v3190 = vpack.c.b16 %v2527, %v2526
  %v3191 = vpack.c.b16 %v2529, %v2528
  %v3192 = vpack.c.b16 %v2531, %v2530
  %v3193 = vpack.c.b16 %v2533, %v2532
  %v3194 = vpack.c.b16 %v2535, %v2534
  %v3195 = vpack.c.b16 %v2537, %v2536
  %v3196 = vpack.c.b16 %v2539, %v2538
  %v3197 = vpack.c.b16 %v2541, %v2540
  %v3198 = vpack.c.b16 %v2543, %v2542
  %v3199 = vpack.c.b16 %v2545, %v2544
  %v3200 = vpack.c.b16 %v2547, %v2546
  %v3201 = vpack.c.b16 %v2549, %v2548
  %v3202 = vpack.c.b16 %v2551, %v2550
  %v3203 = vpack.c.b16 %v2553, %v2552
  %v3204 = vpack.c.b16 %v2555, %v2554
  %v3205 = vpack.c.b16 %v2557, %v2556
  %v3206 = vpack.c.b16 %v2559, %v2558
  %v3207 = vpack.c.b16 %v2561, %v2560
  %v3208 = vpack.c.b16 %v2563, %v2562
  %v3209 = vpack.c.b16 %v2565, %v2564
  %v3210 = vpack.c.b16 %v2567, %v2566
  %v3211 = vpack.c.b16 %v2569, %v2568
  %v3212 = vpack.c.b16 %v2571, %v2570
  %v3213 = vpack.c.b16 %v2573, %v2572
  %v3214 = vpack.c.b16 %v2575, %v2574
  %v3215 = vpack.c.b16 %v2577, %v2576
  %v3216 = vpack.c.b16 %v2579, %v2578
  %v3217 = vpack.c.b16 %v2581, %v2580
  %v3218 = vpack.c.b16 %v2583, %v2582
  %v3219 = vpack.c.b16 %v2585, %v2584
  %v3220 = vpack.c.b16 %v2587, %v2586
  %v3221 = vpack.c.b16 %v2589, %v2588
  %v3222 = vpack.c.b16 %v2591, %v2590
  %v3223 = vpack.c.b16 %v2593, %v2592
  %v3224 = vpack.c.b16 %v2595, %v2594
  %v3225 = vpack.c.b16 %v2597, %v2596
  %v3226 = vpack.c.b16 %v2599, %v2598
  %v3227 = vpack.c.b16 %v2601, %v2600
  %v3228 = vpack.c.b16 %v2603, %v2602
  %v3229 = vpack.c.b16 %v2605, %v2604
  %v3230 = vpack.c.b16 %v2607, %v2606
  %v3231 = vpack.c.b16 %v2609, %v2608
  %v3232 = vpack.c.b16 %v2611, %v2610
  %v3233 = vpack.c.b16 %v2613, %v2612
  %v3234 = vpack.c.b16 %v2615, %v2614
  %v3235 = vpack.c.b16 %v2617, %v2616
  %v3236 = vpack.c.b16 %v2619, %v2618
  %v3237 = vpack.c.b16 %v2621, %v2620
  %v3238 = vpack.c.b16 %v2623, %v2622
  %v3239 = vpack.c.b16 %v2625, %v2624
  %v3240 = vpack.c.b16 %v2627, %v2626
  %v3241 = vpack.c.b16 %v2629, %v2628
  %v3242 = vpack.c.b16 %v2631, %v2630
  %v3243 = vpack.c.b16 %v2633, %v2632
  %v3244 = vpack.c.b16 %v2635, %v2634
  %v3245 = vpack.c.b16 %v2637, %v2636
  %v3246 = vpack.c.b16 %v2639, %v2638
  %v3247 = vpack.c.b16 %v2641, %v2640
  %v3248 = vpack.c.b16 %v2643, %v2642
  %v3249 = vpack.c.b16 %v2645, %v2644
  %v3250 = vpack.c.b16 %v2647, %v2646
  %v3251 = vpack.c.b16 %v2649, %v2648
  %v3252 = vpack.c.b16 %v2651, %v2650
  %v3253 = vpack.c.b16 %v2653, %v2652
  %v3254 = vpack.c.b16 %v2655, %v2654
  %v3255 = vpack.c.b16 %v2657, %v2656
  %v3256 = vpack.c.b16 %v2659, %v2658
  %v3257 = vpack.c.b16 %v2661, %v2660
  %v3258 = vpack.c.b16 %v2663, %v2662
  %v3259 = vpack.c.b16 %v2665, %v2664
  %v3260 = vpack.c.b16 %v2667, %v2666
  %v3261 = vpack.c.b16 %v2669, %v2668
  %v3262 = vpack.c.b16 %v2671, %v2670
  %v3263 = vpack.c.b16 %v2673, %v2672
  %v3264 = vpack.c.b16 %v2675, %v2674
  %v3265 = vpack.c.b16 %v2677, %v2676
  %v3266 = vpack.c.b16 %v2679, %v2678
  %v3267 = vpack.c.b16 %v2681, %v2680
  %v3268 = vpack.c.b16 %v2683, %v2682
  %v3269 = vpack.c.b16 %v2685, %v2684
  %v3270 = vpack.c.b16 %v2687, %v2686
  %v3271 = vpack.c.b16 %v2689, %v2688
  %v3272 = vpack.c.b16 %v2691, %v2690
  %v3273 = vpack.c.b16 %v2693, %v2692
  %v3274 = vpack.c.b16 %v2695, %v2694
  %v3275 = vpack.c.b16 %v2697, %v2696
  %v3276 = vpack.c.b16 %v2699, %v2698
  %v3277 = vpack.c.b16 %v2701, %v2700
  %v3278 = vpack.c.b16 %v2703, %v2702
  %v3279 = vpack.c.b16 %v2705, %v2704
  %v3280 = vpack.c.b16 %v2707, %v2706
  %v3281 = vpack.c.b16 %v2709, %v2708
  %v3282 = vpack.c.b16 %v2711, %v2710
  %v3283 = vpack.c.b16 %v2713, %v2712
  %v3284 = vpack.c.b16 %v2715, %v2714
  %v3285 = vpack.c.b16 %v2717, %v2716
  %v3286 = vpack.c.b16 %v2719, %v2718
  %v3287 = vpack.c.b16 %v2721, %v2720
  %v3288 = vpack.c.b16 %v2723, %v2722
  %v3289 = vpack.c.b16 %v2725, %v2724
  %v3290 = vpack.c.b16 %v2727, %v2726
  %v3291 = vpack.c.b16 %v2729, %v2728
  %v3292 = vpack.c.b16 %v2731, %v2730
  %v3293 = vpack.c.b16 %v2733, %v2732
  %v3294 = vpack.c.b16 %v2735, %v2734
  %v3295 = vpack.c.b16 %v2737, %v2736
  %v3296 = vpack.c.b16 %v2739, %v2738
  %v3297 = vpack.c.b16 %v2741, %v2740
  %v3298 = vpack.c.b16 %v2743, %v2742
  %v3299 = vpack.c.b16 %v2745, %v2744
  %v3300 = vpack.c.b16 %v2747, %v2746
  %v3301 = vpack.c.b16 %v2749, %v2748
  %v3302 = vpack.c.b16 %v2751, %v2750
  %v3303 = vpack.c.b16 %v2753, %v2752
  %v3304 = vpack.c.b16 %v2755, %v2754
  %v3305 = vpack.c.b16 %v2757, %v2756
  %v3306 = vpack.c.b16 %v2759, %v2758
  %v3307 = vpack.c.b16 %v2761, %v2760
  %v3308 = vpack.c.b16 %v2763, %v2762
  %v3309 = vpack.c.b16 %v2765, %v2764
  %v3310 = vpack.c.b16 %v2767, %v2766
  %v3311 = vpack.c.b16 %v2769, %v2768
  %v3312 = vpack.c.b16 %v2771, %v2770
  %v3313 = vpack.c.b16 %v2773, %v2772
  %v3314 = vpack.c.b16 %v2775, %v2774
  %v3315 = vpack.c.b16 %v2777, %v2776
  %v3316 = vpack.c.b16 %v2779, %v2778
  %v3317 = vpack.c.b16 %v2781, %v2780
  %v3318 = vpack.c.b16 %v2783, %v2782
  %v3319 = vpack.c.b16 %v2785, %v2784
  %v3320 = vpack.c.b16 %v2787, %v2786
  %v3321 = vpack.c.b16 %v2789, %v2788
  %v3322 = vpack.c.b16 %v2791, %v2790
  %v3323 = vpack.c.b16 %v2793, %v2792
  %v3324 = vpack.c.b16 %v2795, %v2794
  %v3325 = vpack.c.b16 %v2797, %v2796
  %v3326 = vpack.c.b16 %v2799, %v2798
  %v3327 = vpack.c.b16 %v2801, %v2800
  %v3328 = vpack.c.b16 %v2803, %v2802
  %v3329 = vpack.c.b16 %v2805, %v2804
  %v3330 = vpack.c.b16 %v2807, %v2806
  %v3331 = vpack.c.b16 %v2809, %v2808
  %v3332 = vpack.c.b16 %v2811, %v2810
  %v3333 = vpack.c.b16 %v2813, %v2812
  %v3334 = vpack.c.b16 %v2815, %v2814
  %v3335 = vpack.c.b16 %v2817, %v2816
  %v3336 = vpack.c.b16 %v2819, %v2818
  %v3337 = vpack.c.b16 %v2821, %v2820
  %v3338 = vpack.c.b16 %v2823, %v2822
  %v3339 = vpack.c.b16 %v2825, %v2824
  %v3340 = vpack.c.b16 %v2827, %v2826
  %v3341 = vpack.c.b16 %v2829, %v2828
  %v3342 = vpack.c.b16 %v2831, %v2830
  %v3343 = vpack.c.b16 %v2833, %v2832
  %v3344 = vpack.c.b16 %v2835, %v2834
  %v3345 = vpack.c.b16 %v2837, %v2836
  %v3346 = vpack.c.b16 %v2839, %v2838
  %v3347 = vpack.c.b16 %v2841, %v2840
  %v3348 = vpack.c.b16 %v2843, %v2842
  %v3349 = vpack.c.b16 %v2845, %v2844
  %v3350 = vpack.c.b16 %v2847, %v2846
  %v3351 = vpack.c.b16 %v2849, %v2848
  %v3352 = vpack.c.b16 %v2851, %v2850
  %v3353 = vpack.c.b16 %v2853, %v2852
  %v3354 = vpack.c.b16 %v2855, %v2854
  %v3355 = vpack.c.b16 %v2857, %v2856
  %v3356 = vpack.c.b16 %v2859, %v2858
  %v3357 = vpack.c.b16 %v2861, %v2860
  %v3358 = vpack.c.b16 %v2863, %v2862
  %v3359 = vpack.c.b16 %v2865, %v2864
  %v3360 = vpack.c.b16 %v2867, %v2866
  %v3361 = vpack.c.b16 %v2869, %v2868
  %v3362 = vpack.c.b16 %v2871, %v2870
  %v3363 = vpack.c.b16 %v2873, %v2872
  %v3364 = vpack.c.b16 %v2875, %v2874
  %v3365 = vpack.c.b16 %v2877, %v2876
  %v3366 = vpack.c.b16 %v2879, %v2878
  %v3367 = vpack.c.b16 %v2881, %v2880
  %v3368 = vpack.c.b16 %v2883, %v2882
  %v3369 = vpack.c.b16 %v2885, %v2884
  %v3370 = vpack.c.b16 %v2887, %v2886
  %v3371 = vpack.c.b16 %v2889, %v2888
  %v3372 = vpack.c.b16 %v2891, %v2890
  %v3373 = vpack.c.b16 %v2893, %v2892
  %v3374 = vpack.c.b16 %v2895, %v2894
  %v3375 = vpack.c.b16 %v2897, %v2896
  %v3376 = vpack.c.b16 %v2899, %v2898
  %v3377 = vpack.c.b16 %v2901, %v2900
  %v3378 = vpack.c.b16 %v2903, %v2902
  %v3379 = vpack.c.b16 %v2905, %v2904
  %v3380 = vpack.c.b16 %v2907, %v2906
  %v3381 = vpack.c.b16 %v2909, %v2908
  %v3382 = vpack.c.b16 %v2911, %v2910
  %v3383 = vpack.c.b16 %v2913, %v2912
  %v3384 = vpack.c.b16 %v2915, %v2914
  %v3385 = vpack.c.b16 %v2917, %v2916
  %v3386 = vpack.c.b16 %v2919, %v2918
  %v3387 = vpack.c.b16 %v2921, %v2920
  %v3388 = vpack.c.b16 %v2923, %v2922
  %v3389 = vpack.c.b16 %v2925, %v2924
  %v3390 = vpack.c.b16 %v2927, %v2926
  %v3391 = vpack.c.b16 %v2929, %v2928
  %v3392 = vpack.c.b16 %v2931, %v2930
  %v3393 = vpack.c.b16 %v2933, %v2932
  %v3394 = vpack.c.b16 %v2935, %v2934
  %v3395 = vpack.c.b16 %v2937, %v2936
  %v3396 = vpack.c.b16 %v2939, %v2938
  %v3397 = vpack.c.b16 %v2941, %v2940
  %v3398 = vpack.c.b16 %v2943, %v2942
  %v3399 = vpack.c.b16 %v2945, %v2944
  %v3400 = vpack.c.b16 %v2947, %v2946
  %v3401 = vpack.c.b16 %v2949, %v2948
  %v3402 = vpack.c.b16 %v2951, %v2950
  %v3403 = vpack.c.b16 %v2953, %v2952
  %v3404 = vpack.c.b16 %v2955, %v2954
  %v3405 = vpack.c.b16 %v2957, %v2956
  %3854 = vmatprep.subr.bf16.mxu0 0
  %3855 = vmatpush1.bf16.msra.mxu0 %v2965
  %3856 = vmatprep.subr.bf16.mxu0 0
  %3857 = vmatpush1.bf16.msra.mxu0 %v2964
  %3858 = vmatprep.subr.bf16.mxu0 0
  %3859 = vmatpush1.bf16.msra.mxu0 %v2963
  %3860 = vmatprep.subr.bf16.mxu0 0
  %3861 = vmatpush1.bf16.msra.mxu0 %v2962
  %3862 = vmatprep.subr.bf16.mxu0 0
  %3863 = vmatpush1.bf16.msra.mxu0 %v2961
  %3864 = vmatprep.subr.bf16.mxu0 0
  %3865 = vmatpush1.bf16.msra.mxu0 %v2960
  %3866 = vmatprep.subr.bf16.mxu0 0
  %3867 = vmatpush1.bf16.msra.mxu0 %v2959
  %3868 = vmatprep.subr.bf16.mxu0 0
  %3869 = vmatpush1.bf16.msra.mxu0 %v2958
  %3870 = vmatprep.subr.bf16.mxu0 0
  %3871 = vmatpush2.bf16.msra.mxu0 %v2973
  %3872 = vmatprep.subr.bf16.mxu0 0
  %3873 = vmatpush2.bf16.msra.mxu0 %v2972
  %3874 = vmatprep.subr.bf16.mxu0 0
  %3875 = vmatpush2.bf16.msra.mxu0 %v2971
  %3876 = vmatprep.subr.bf16.mxu0 0
  %3877 = vmatpush2.bf16.msra.mxu0 %v2970
  %3878 = vmatprep.subr.bf16.mxu0 0
  %3879 = vmatpush2.bf16.msra.mxu0 %v2969
  %3880 = vmatprep.subr.bf16.mxu0 0
  %3881 = vmatpush2.bf16.msra.mxu0 %v2968
  %3882 = vmatprep.subr.bf16.mxu0 0
  %3883 = vmatpush2.bf16.msra.mxu0 %v2967
  %3884 = vmatprep.subr.bf16.mxu0 0
  %3885 = vmatpush2.bf16.msra.mxu0 %v2966
  %3886 = vmatprep.mubr.bf16.mxu0 %v1055
  %3887 = vmatmul.mubr.bf16.gmra.mxu0 %v1054
  %v3888 = vpop.f32.mrf.mxu0
  %v3889 = vadd.f32 %v968, %v3888
  %v3890 = vpop.f32.mrf.mxu0
  %v3891 = vpop.f32.mrf.mxu0
  %v3892 = vpop.f32.mrf.mxu0
  %3893 = vdwg.mxu0
  %3894 = vmatprep.subr.bf16.mxu0 0
  %3895 = vmatpush1.bf16.msra.mxu0 %v2981
  %3896 = vmatprep.subr.bf16.mxu0 0
  %3897 = vmatpush1.bf16.msra.mxu0 %v2980
  %3898 = vmatprep.subr.bf16.mxu0 0
  %3899 = vmatpush1.bf16.msra.mxu0 %v2979
  %3900 = vmatprep.subr.bf16.mxu0 0
  %3901 = vmatpush1.bf16.msra.mxu0 %v2978
  %3902 = vmatprep.subr.bf16.mxu0 0
  %3903 = vmatpush1.bf16.msra.mxu0 %v2977
  %3904 = vmatprep.subr.bf16.mxu0 0
  %3905 = vmatpush1.bf16.msra.mxu0 %v2976
  %3906 = vmatprep.subr.bf16.mxu0 0
  %3907 = vmatpush1.bf16.msra.mxu0 %v2975
  %3908 = vmatprep.subr.bf16.mxu0 0
  %3909 = vmatpush1.bf16.msra.mxu0 %v2974
  %3910 = vmatprep.subr.bf16.mxu0 0
  %3911 = vmatpush2.bf16.msra.mxu0 %v2989
  %3912 = vmatprep.subr.bf16.mxu0 0
  %3913 = vmatpush2.bf16.msra.mxu0 %v2988
  %3914 = vmatprep.subr.bf16.mxu0 0
  %3915 = vmatpush2.bf16.msra.mxu0 %v2987
  %3916 = vmatprep.subr.bf16.mxu0 0
  %3917 = vmatpush2.bf16.msra.mxu0 %v2986
  %3918 = vmatprep.subr.bf16.mxu0 0
  %3919 = vmatpush2.bf16.msra.mxu0 %v2985
  %3920 = vmatprep.subr.bf16.mxu0 0
  %3921 = vmatpush2.bf16.msra.mxu0 %v2984
  %3922 = vmatprep.subr.bf16.mxu0 0
  %3923 = vmatpush2.bf16.msra.mxu0 %v2983
  %3924 = vmatprep.subr.bf16.mxu0 0
  %3925 = vmatpush2.bf16.msra.mxu0 %v2982
  %3926 = vmatprep.mubr.bf16.mxu0 %v1057
  %3927 = vmatmul.mubr.bf16.gmra.mxu0 %v1056
  %v3928 = vpop.f32.mrf.mxu0
  %v3929 = vadd.f32 %v3889, %v3928
  %v3930 = vpop.f32.mrf.mxu0
  %v3931 = vpop.f32.mrf.mxu0
  %v3932 = vpop.f32.mrf.mxu0
  %3933 = vdwg.mxu0
  %3934 = vmatprep.subr.bf16.mxu0 0
  %3935 = vmatpush1.bf16.msra.mxu0 %v2997
  %3936 = vmatprep.subr.bf16.mxu0 0
  %3937 = vmatpush1.bf16.msra.mxu0 %v2996
  %3938 = vmatprep.subr.bf16.mxu0 0
  %3939 = vmatpush1.bf16.msra.mxu0 %v2995
  %3940 = vmatprep.subr.bf16.mxu0 0
  %3941 = vmatpush1.bf16.msra.mxu0 %v2994
  %3942 = vmatprep.subr.bf16.mxu0 0
  %3943 = vmatpush1.bf16.msra.mxu0 %v2993
  %3944 = vmatprep.subr.bf16.mxu0 0
  %3945 = vmatpush1.bf16.msra.mxu0 %v2992
  %3946 = vmatprep.subr.bf16.mxu0 0
  %3947 = vmatpush1.bf16.msra.mxu0 %v2991
  %3948 = vmatprep.subr.bf16.mxu0 0
  %3949 = vmatpush1.bf16.msra.mxu0 %v2990
  %3950 = vmatprep.subr.bf16.mxu0 0
  %3951 = vmatpush2.bf16.msra.mxu0 %v3005
  %3952 = vmatprep.subr.bf16.mxu0 0
  %3953 = vmatpush2.bf16.msra.mxu0 %v3004
  %3954 = vmatprep.subr.bf16.mxu0 0
  %3955 = vmatpush2.bf16.msra.mxu0 %v3003
  %3956 = vmatprep.subr.bf16.mxu0 0
  %3957 = vmatpush2.bf16.msra.mxu0 %v3002
  %3958 = vmatprep.subr.bf16.mxu0 0
  %3959 = vmatpush2.bf16.msra.mxu0 %v3001
  %3960 = vmatprep.subr.bf16.mxu0 0
  %3961 = vmatpush2.bf16.msra.mxu0 %v3000
  %3962 = vmatprep.subr.bf16.mxu0 0
  %3963 = vmatpush2.bf16.msra.mxu0 %v2999
  %3964 = vmatprep.subr.bf16.mxu0 0
  %3965 = vmatpush2.bf16.msra.mxu0 %v2998
  %3966 = vmatprep.mubr.bf16.mxu0 %v1059
  %3967 = vmatmul.mubr.bf16.gmra.mxu0 %v1058
  %v3968 = vpop.f32.mrf.mxu0
  %v3969 = vadd.f32 %v3929, %v3968
  %v3970 = vpop.f32.mrf.mxu0
  %v3971 = vpop.f32.mrf.mxu0
  %v3972 = vpop.f32.mrf.mxu0
  %3973 = vdwg.mxu0
  %3974 = vmatprep.subr.bf16.mxu0 0
  %3975 = vmatpush1.bf16.msra.mxu0 %v3013
  %3976 = vmatprep.subr.bf16.mxu0 0
  %3977 = vmatpush1.bf16.msra.mxu0 %v3012
  %3978 = vmatprep.subr.bf16.mxu0 0
  %3979 = vmatpush1.bf16.msra.mxu0 %v3011
  %3980 = vmatprep.subr.bf16.mxu0 0
  %3981 = vmatpush1.bf16.msra.mxu0 %v3010
  %3982 = vmatprep.subr.bf16.mxu0 0
  %3983 = vmatpush1.bf16.msra.mxu0 %v3009
  %3984 = vmatprep.subr.bf16.mxu0 0
  %3985 = vmatpush1.bf16.msra.mxu0 %v3008
  %3986 = vmatprep.subr.bf16.mxu0 0
  %3987 = vmatpush1.bf16.msra.mxu0 %v3007
  %3988 = vmatprep.subr.bf16.mxu0 0
  %3989 = vmatpush1.bf16.msra.mxu0 %v3006
  %3990 = vmatprep.subr.bf16.mxu0 0
  %3991 = vmatpush2.bf16.msra.mxu0 %v3021
  %3992 = vmatprep.subr.bf16.mxu0 0
  %3993 = vmatpush2.bf16.msra.mxu0 %v3020
  %3994 = vmatprep.subr.bf16.mxu0 0
  %3995 = vmatpush2.bf16.msra.mxu0 %v3019
  %3996 = vmatprep.subr.bf16.mxu0 0
  %3997 = vmatpush2.bf16.msra.mxu0 %v3018
  %3998 = vmatprep.subr.bf16.mxu0 0
  %3999 = vmatpush2.bf16.msra.mxu0 %v3017
  %4000 = vmatprep.subr.bf16.mxu0 0
  %4001 = vmatpush2.bf16.msra.mxu0 %v3016
  %4002 = vmatprep.subr.bf16.mxu0 0
  %4003 = vmatpush2.bf16.msra.mxu0 %v3015
  %4004 = vmatprep.subr.bf16.mxu0 0
  %4005 = vmatpush2.bf16.msra.mxu0 %v3014
  %4006 = vmatprep.mubr.bf16.mxu0 %v1061
  %4007 = vmatmul.mubr.bf16.gmra.mxu0 %v1060
  %v4008 = vpop.f32.mrf.mxu0
  %v4009 = vadd.f32 %v3969, %v4008
  %v4010 = vpop.f32.mrf.mxu0
  %v4011 = vpop.f32.mrf.mxu0
  %v4012 = vpop.f32.mrf.mxu0
  %4013 = vdwg.mxu0
  %4014 = vmatprep.subr.bf16.mxu0 0
  %4015 = vmatpush1.bf16.msra.mxu0 %v3029
  %4016 = vmatprep.subr.bf16.mxu0 0
  %4017 = vmatpush1.bf16.msra.mxu0 %v3028
  %4018 = vmatprep.subr.bf16.mxu0 0
  %4019 = vmatpush1.bf16.msra.mxu0 %v3027
  %4020 = vmatprep.subr.bf16.mxu0 0
  %4021 = vmatpush1.bf16.msra.mxu0 %v3026
  %4022 = vmatprep.subr.bf16.mxu0 0
  %4023 = vmatpush1.bf16.msra.mxu0 %v3025
  %4024 = vmatprep.subr.bf16.mxu0 0
  %4025 = vmatpush1.bf16.msra.mxu0 %v3024
  %4026 = vmatprep.subr.bf16.mxu0 0
  %4027 = vmatpush1.bf16.msra.mxu0 %v3023
  %4028 = vmatprep.subr.bf16.mxu0 0
  %4029 = vmatpush1.bf16.msra.mxu0 %v3022
  %4030 = vmatprep.subr.bf16.mxu0 0
  %4031 = vmatpush2.bf16.msra.mxu0 %v3037
  %4032 = vmatprep.subr.bf16.mxu0 0
  %4033 = vmatpush2.bf16.msra.mxu0 %v3036
  %4034 = vmatprep.subr.bf16.mxu0 0
  %4035 = vmatpush2.bf16.msra.mxu0 %v3035
  %4036 = vmatprep.subr.bf16.mxu0 0
  %4037 = vmatpush2.bf16.msra.mxu0 %v3034
  %4038 = vmatprep.subr.bf16.mxu0 0
  %4039 = vmatpush2.bf16.msra.mxu0 %v3033
  %4040 = vmatprep.subr.bf16.mxu0 0
  %4041 = vmatpush2.bf16.msra.mxu0 %v3032
  %4042 = vmatprep.subr.bf16.mxu0 0
  %4043 = vmatpush2.bf16.msra.mxu0 %v3031
  %4044 = vmatprep.subr.bf16.mxu0 0
  %4045 = vmatpush2.bf16.msra.mxu0 %v3030
  %4046 = vmatprep.mubr.bf16.mxu0 %v1063
  %4047 = vmatmul.mubr.bf16.gmra.mxu0 %v1062
  %v4048 = vpop.f32.mrf.mxu0
  %v4049 = vadd.f32 %v4009, %v4048
  %v4050 = vpop.f32.mrf.mxu0
  %v4051 = vpop.f32.mrf.mxu0
  %v4052 = vpop.f32.mrf.mxu0
  %4053 = vdwg.mxu0
  %4054 = vmatprep.subr.bf16.mxu0 0
  %4055 = vmatpush1.bf16.msra.mxu0 %v3045
  %4056 = vmatprep.subr.bf16.mxu0 0
  %4057 = vmatpush1.bf16.msra.mxu0 %v3044
  %4058 = vmatprep.subr.bf16.mxu0 0
  %4059 = vmatpush1.bf16.msra.mxu0 %v3043
  %4060 = vmatprep.subr.bf16.mxu0 0
  %4061 = vmatpush1.bf16.msra.mxu0 %v3042
  %4062 = vmatprep.subr.bf16.mxu0 0
  %4063 = vmatpush1.bf16.msra.mxu0 %v3041
  %4064 = vmatprep.subr.bf16.mxu0 0
  %4065 = vmatpush1.bf16.msra.mxu0 %v3040
  %4066 = vmatprep.subr.bf16.mxu0 0
  %4067 = vmatpush1.bf16.msra.mxu0 %v3039
  %4068 = vmatprep.subr.bf16.mxu0 0
  %4069 = vmatpush1.bf16.msra.mxu0 %v3038
  %4070 = vmatprep.subr.bf16.mxu0 0
  %4071 = vmatpush2.bf16.msra.mxu0 %v3053
  %4072 = vmatprep.subr.bf16.mxu0 0
  %4073 = vmatpush2.bf16.msra.mxu0 %v3052
  %4074 = vmatprep.subr.bf16.mxu0 0
  %4075 = vmatpush2.bf16.msra.mxu0 %v3051
  %4076 = vmatprep.subr.bf16.mxu0 0
  %4077 = vmatpush2.bf16.msra.mxu0 %v3050
  %4078 = vmatprep.subr.bf16.mxu0 0
  %4079 = vmatpush2.bf16.msra.mxu0 %v3049
  %4080 = vmatprep.subr.bf16.mxu0 0
  %4081 = vmatpush2.bf16.msra.mxu0 %v3048
  %4082 = vmatprep.subr.bf16.mxu0 0
  %4083 = vmatpush2.bf16.msra.mxu0 %v3047
  %4084 = vmatprep.subr.bf16.mxu0 0
  %4085 = vmatpush2.bf16.msra.mxu0 %v3046
  %4086 = vmatprep.mubr.bf16.mxu0 %v1065
  %4087 = vmatmul.mubr.bf16.gmra.mxu0 %v1064
  %v4088 = vpop.f32.mrf.mxu0
  %v4089 = vadd.f32 %v4049, %v4088
  %v4090 = vpop.f32.mrf.mxu0
  %v4091 = vpop.f32.mrf.mxu0
  %v4092 = vpop.f32.mrf.mxu0
  %4093 = vdwg.mxu0
  %4094 = vmatprep.subr.bf16.mxu0 0
  %4095 = vmatpush1.bf16.msra.mxu0 %v3061
  %4096 = vmatprep.subr.bf16.mxu0 0
  %4097 = vmatpush1.bf16.msra.mxu0 %v3060
  %4098 = vmatprep.subr.bf16.mxu0 0
  %4099 = vmatpush1.bf16.msra.mxu0 %v3059
  %4100 = vmatprep.subr.bf16.mxu0 0
  %4101 = vmatpush1.bf16.msra.mxu0 %v3058
  %4102 = vmatprep.subr.bf16.mxu0 0
  %4103 = vmatpush1.bf16.msra.mxu0 %v3057
  %4104 = vmatprep.subr.bf16.mxu0 0
  %4105 = vmatpush1.bf16.msra.mxu0 %v3056
  %4106 = vmatprep.subr.bf16.mxu0 0
  %4107 = vmatpush1.bf16.msra.mxu0 %v3055
  %4108 = vmatprep.subr.bf16.mxu0 0
  %4109 = vmatpush1.bf16.msra.mxu0 %v3054
  %4110 = vmatprep.subr.bf16.mxu0 0
  %4111 = vmatpush2.bf16.msra.mxu0 %v3069
  %4112 = vmatprep.subr.bf16.mxu0 0
  %4113 = vmatpush2.bf16.msra.mxu0 %v3068
  %4114 = vmatprep.subr.bf16.mxu0 0
  %4115 = vmatpush2.bf16.msra.mxu0 %v3067
  %4116 = vmatprep.subr.bf16.mxu0 0
  %4117 = vmatpush2.bf16.msra.mxu0 %v3066
  %4118 = vmatprep.subr.bf16.mxu0 0
  %4119 = vmatpush2.bf16.msra.mxu0 %v3065
  %4120 = vmatprep.subr.bf16.mxu0 0
  %4121 = vmatpush2.bf16.msra.mxu0 %v3064
  %4122 = vmatprep.subr.bf16.mxu0 0
  %4123 = vmatpush2.bf16.msra.mxu0 %v3063
  %4124 = vmatprep.subr.bf16.mxu0 0
  %4125 = vmatpush2.bf16.msra.mxu0 %v3062
  %4126 = vmatprep.mubr.bf16.mxu0 %v1067
  %4127 = vmatmul.mubr.bf16.gmra.mxu0 %v1066
  %v4128 = vpop.f32.mrf.mxu0
  %v4129 = vadd.f32 %v4089, %v4128
  %v4130 = vpop.f32.mrf.mxu0
  %v4131 = vpop.f32.mrf.mxu0
  %v4132 = vpop.f32.mrf.mxu0
  %4133 = vdwg.mxu0
  %4134 = vmatprep.subr.bf16.mxu0 0
  %4135 = vmatpush1.bf16.msra.mxu0 %v3077
  %4136 = vmatprep.subr.bf16.mxu0 0
  %4137 = vmatpush1.bf16.msra.mxu0 %v3076
  %4138 = vmatprep.subr.bf16.mxu0 0
  %4139 = vmatpush1.bf16.msra.mxu0 %v3075
  %4140 = vmatprep.subr.bf16.mxu0 0
  %4141 = vmatpush1.bf16.msra.mxu0 %v3074
  %4142 = vmatprep.subr.bf16.mxu0 0
  %4143 = vmatpush1.bf16.msra.mxu0 %v3073
  %4144 = vmatprep.subr.bf16.mxu0 0
  %4145 = vmatpush1.bf16.msra.mxu0 %v3072
  %4146 = vmatprep.subr.bf16.mxu0 0
  %4147 = vmatpush1.bf16.msra.mxu0 %v3071
  %4148 = vmatprep.subr.bf16.mxu0 0
  %4149 = vmatpush1.bf16.msra.mxu0 %v3070
  %4150 = vmatprep.subr.bf16.mxu0 0
  %4151 = vmatpush2.bf16.msra.mxu0 %v3085
  %4152 = vmatprep.subr.bf16.mxu0 0
  %4153 = vmatpush2.bf16.msra.mxu0 %v3084
  %4154 = vmatprep.subr.bf16.mxu0 0
  %4155 = vmatpush2.bf16.msra.mxu0 %v3083
  %4156 = vmatprep.subr.bf16.mxu0 0
  %4157 = vmatpush2.bf16.msra.mxu0 %v3082
  %4158 = vmatprep.subr.bf16.mxu0 0
  %4159 = vmatpush2.bf16.msra.mxu0 %v3081
  %4160 = vmatprep.subr.bf16.mxu0 0
  %4161 = vmatpush2.bf16.msra.mxu0 %v3080
  %4162 = vmatprep.subr.bf16.mxu0 0
  %4163 = vmatpush2.bf16.msra.mxu0 %v3079
  %4164 = vmatprep.subr.bf16.mxu0 0
  %4165 = vmatpush2.bf16.msra.mxu0 %v3078
  %4166 = vmatprep.mubr.bf16.mxu0 %v1069
  %4167 = vmatmul.mubr.bf16.gmra.mxu0 %v1068
  %v4168 = vpop.f32.mrf.mxu0
  %v4169 = vadd.f32 %v4129, %v4168
  %v4170 = vpop.f32.mrf.mxu0
  %v4171 = vpop.f32.mrf.mxu0
  %v4172 = vpop.f32.mrf.mxu0
  %4173 = vdwg.mxu0
  %4174 = vmatprep.subr.bf16.mxu0 0
  %4175 = vmatpush1.bf16.msra.mxu0 %v3093
  %4176 = vmatprep.subr.bf16.mxu0 0
  %4177 = vmatpush1.bf16.msra.mxu0 %v3092
  %4178 = vmatprep.subr.bf16.mxu0 0
  %4179 = vmatpush1.bf16.msra.mxu0 %v3091
  %4180 = vmatprep.subr.bf16.mxu0 0
  %4181 = vmatpush1.bf16.msra.mxu0 %v3090
  %4182 = vmatprep.subr.bf16.mxu0 0
  %4183 = vmatpush1.bf16.msra.mxu0 %v3089
  %4184 = vmatprep.subr.bf16.mxu0 0
  %4185 = vmatpush1.bf16.msra.mxu0 %v3088
  %4186 = vmatprep.subr.bf16.mxu0 0
  %4187 = vmatpush1.bf16.msra.mxu0 %v3087
  %4188 = vmatprep.subr.bf16.mxu0 0
  %4189 = vmatpush1.bf16.msra.mxu0 %v3086
  %4190 = vmatprep.subr.bf16.mxu0 0
  %4191 = vmatpush2.bf16.msra.mxu0 %v3101
  %4192 = vmatprep.subr.bf16.mxu0 0
  %4193 = vmatpush2.bf16.msra.mxu0 %v3100
  %4194 = vmatprep.subr.bf16.mxu0 0
  %4195 = vmatpush2.bf16.msra.mxu0 %v3099
  %4196 = vmatprep.subr.bf16.mxu0 0
  %4197 = vmatpush2.bf16.msra.mxu0 %v3098
  %4198 = vmatprep.subr.bf16.mxu0 0
  %4199 = vmatpush2.bf16.msra.mxu0 %v3097
  %4200 = vmatprep.subr.bf16.mxu0 0
  %4201 = vmatpush2.bf16.msra.mxu0 %v3096
  %4202 = vmatprep.subr.bf16.mxu0 0
  %4203 = vmatpush2.bf16.msra.mxu0 %v3095
  %4204 = vmatprep.subr.bf16.mxu0 0
  %4205 = vmatpush2.bf16.msra.mxu0 %v3094
  %4206 = vmatprep.mubr.bf16.mxu0 %v1071
  %4207 = vmatmul.mubr.bf16.gmra.mxu0 %v1070
  %v4208 = vpop.f32.mrf.mxu0
  %v4209 = vadd.f32 %v4169, %v4208
  %v4210 = vpop.f32.mrf.mxu0
  %v4211 = vpop.f32.mrf.mxu0
  %v4212 = vpop.f32.mrf.mxu0
  %4213 = vdwg.mxu0
  %4214 = vmatprep.subr.bf16.mxu0 0
  %4215 = vmatpush1.bf16.msra.mxu0 %v3109
  %4216 = vmatprep.subr.bf16.mxu0 0
  %4217 = vmatpush1.bf16.msra.mxu0 %v3108
  %4218 = vmatprep.subr.bf16.mxu0 0
  %4219 = vmatpush1.bf16.msra.mxu0 %v3107
  %4220 = vmatprep.subr.bf16.mxu0 0
  %4221 = vmatpush1.bf16.msra.mxu0 %v3106
  %4222 = vmatprep.subr.bf16.mxu0 0
  %4223 = vmatpush1.bf16.msra.mxu0 %v3105
  %4224 = vmatprep.subr.bf16.mxu0 0
  %4225 = vmatpush1.bf16.msra.mxu0 %v3104
  %4226 = vmatprep.subr.bf16.mxu0 0
  %4227 = vmatpush1.bf16.msra.mxu0 %v3103
  %4228 = vmatprep.subr.bf16.mxu0 0
  %4229 = vmatpush1.bf16.msra.mxu0 %v3102
  %4230 = vmatprep.subr.bf16.mxu0 0
  %4231 = vmatpush2.bf16.msra.mxu0 %v3117
  %4232 = vmatprep.subr.bf16.mxu0 0
  %4233 = vmatpush2.bf16.msra.mxu0 %v3116
  %4234 = vmatprep.subr.bf16.mxu0 0
  %4235 = vmatpush2.bf16.msra.mxu0 %v3115
  %4236 = vmatprep.subr.bf16.mxu0 0
  %4237 = vmatpush2.bf16.msra.mxu0 %v3114
  %4238 = vmatprep.subr.bf16.mxu0 0
  %4239 = vmatpush2.bf16.msra.mxu0 %v3113
  %4240 = vmatprep.subr.bf16.mxu0 0
  %4241 = vmatpush2.bf16.msra.mxu0 %v3112
  %4242 = vmatprep.subr.bf16.mxu0 0
  %4243 = vmatpush2.bf16.msra.mxu0 %v3111
  %4244 = vmatprep.subr.bf16.mxu0 0
  %4245 = vmatpush2.bf16.msra.mxu0 %v3110
  %4246 = vmatprep.mubr.bf16.mxu0 %v1073
  %4247 = vmatmul.mubr.bf16.gmra.mxu0 %v1072
  %v4248 = vpop.f32.mrf.mxu0
  %v4249 = vadd.f32 %v4209, %v4248
  %v4250 = vpop.f32.mrf.mxu0
  %v4251 = vpop.f32.mrf.mxu0
  %v4252 = vpop.f32.mrf.mxu0
  %4253 = vdwg.mxu0
  %4254 = vmatprep.subr.bf16.mxu0 0
  %4255 = vmatpush1.bf16.msra.mxu0 %v3125
  %4256 = vmatprep.subr.bf16.mxu0 0
  %4257 = vmatpush1.bf16.msra.mxu0 %v3124
  %4258 = vmatprep.subr.bf16.mxu0 0
  %4259 = vmatpush1.bf16.msra.mxu0 %v3123
  %4260 = vmatprep.subr.bf16.mxu0 0
  %4261 = vmatpush1.bf16.msra.mxu0 %v3122
  %4262 = vmatprep.subr.bf16.mxu0 0
  %4263 = vmatpush1.bf16.msra.mxu0 %v3121
  %4264 = vmatprep.subr.bf16.mxu0 0
  %4265 = vmatpush1.bf16.msra.mxu0 %v3120
  %4266 = vmatprep.subr.bf16.mxu0 0
  %4267 = vmatpush1.bf16.msra.mxu0 %v3119
  %4268 = vmatprep.subr.bf16.mxu0 0
  %4269 = vmatpush1.bf16.msra.mxu0 %v3118
  %4270 = vmatprep.subr.bf16.mxu0 0
  %4271 = vmatpush2.bf16.msra.mxu0 %v3133
  %4272 = vmatprep.subr.bf16.mxu0 0
  %4273 = vmatpush2.bf16.msra.mxu0 %v3132
  %4274 = vmatprep.subr.bf16.mxu0 0
  %4275 = vmatpush2.bf16.msra.mxu0 %v3131
  %4276 = vmatprep.subr.bf16.mxu0 0
  %4277 = vmatpush2.bf16.msra.mxu0 %v3130
  %4278 = vmatprep.subr.bf16.mxu0 0
  %4279 = vmatpush2.bf16.msra.mxu0 %v3129
  %4280 = vmatprep.subr.bf16.mxu0 0
  %4281 = vmatpush2.bf16.msra.mxu0 %v3128
  %4282 = vmatprep.subr.bf16.mxu0 0
  %4283 = vmatpush2.bf16.msra.mxu0 %v3127
  %4284 = vmatprep.subr.bf16.mxu0 0
  %4285 = vmatpush2.bf16.msra.mxu0 %v3126
  %4286 = vmatprep.mubr.bf16.mxu0 %v1075
  %4287 = vmatmul.mubr.bf16.gmra.mxu0 %v1074
  %v4288 = vpop.f32.mrf.mxu0
  %v4289 = vadd.f32 %v4249, %v4288
  %v4290 = vpop.f32.mrf.mxu0
  %v4291 = vpop.f32.mrf.mxu0
  %v4292 = vpop.f32.mrf.mxu0
  %4293 = vdwg.mxu0
  %4294 = vmatprep.subr.bf16.mxu0 0
  %4295 = vmatpush1.bf16.msra.mxu0 %v3141
  %4296 = vmatprep.subr.bf16.mxu0 0
  %4297 = vmatpush1.bf16.msra.mxu0 %v3140
  %4298 = vmatprep.subr.bf16.mxu0 0
  %4299 = vmatpush1.bf16.msra.mxu0 %v3139
  %4300 = vmatprep.subr.bf16.mxu0 0
  %4301 = vmatpush1.bf16.msra.mxu0 %v3138
  %4302 = vmatprep.subr.bf16.mxu0 0
  %4303 = vmatpush1.bf16.msra.mxu0 %v3137
  %4304 = vmatprep.subr.bf16.mxu0 0
  %4305 = vmatpush1.bf16.msra.mxu0 %v3136
  %4306 = vmatprep.subr.bf16.mxu0 0
  %4307 = vmatpush1.bf16.msra.mxu0 %v3135
  %4308 = vmatprep.subr.bf16.mxu0 0
  %4309 = vmatpush1.bf16.msra.mxu0 %v3134
  %4310 = vmatprep.subr.bf16.mxu0 0
  %4311 = vmatpush2.bf16.msra.mxu0 %v3149
  %4312 = vmatprep.subr.bf16.mxu0 0
  %4313 = vmatpush2.bf16.msra.mxu0 %v3148
  %4314 = vmatprep.subr.bf16.mxu0 0
  %4315 = vmatpush2.bf16.msra.mxu0 %v3147
  %4316 = vmatprep.subr.bf16.mxu0 0
  %4317 = vmatpush2.bf16.msra.mxu0 %v3146
  %4318 = vmatprep.subr.bf16.mxu0 0
  %4319 = vmatpush2.bf16.msra.mxu0 %v3145
  %4320 = vmatprep.subr.bf16.mxu0 0
  %4321 = vmatpush2.bf16.msra.mxu0 %v3144
  %4322 = vmatprep.subr.bf16.mxu0 0
  %4323 = vmatpush2.bf16.msra.mxu0 %v3143
  %4324 = vmatprep.subr.bf16.mxu0 0
  %4325 = vmatpush2.bf16.msra.mxu0 %v3142
  %4326 = vmatprep.mubr.bf16.mxu0 %v1077
  %4327 = vmatmul.mubr.bf16.gmra.mxu0 %v1076
  %v4328 = vpop.f32.mrf.mxu0
  %v4329 = vadd.f32 %v4289, %v4328
  %v4330 = vpop.f32.mrf.mxu0
  %v4331 = vpop.f32.mrf.mxu0
  %v4332 = vpop.f32.mrf.mxu0
  %4333 = vdwg.mxu0
  %4334 = vmatprep.subr.bf16.mxu0 0
  %4335 = vmatpush1.bf16.msra.mxu0 %v3157
  %4336 = vmatprep.subr.bf16.mxu0 0
  %4337 = vmatpush1.bf16.msra.mxu0 %v3156
  %4338 = vmatprep.subr.bf16.mxu0 0
  %4339 = vmatpush1.bf16.msra.mxu0 %v3155
  %4340 = vmatprep.subr.bf16.mxu0 0
  %4341 = vmatpush1.bf16.msra.mxu0 %v3154
  %4342 = vmatprep.subr.bf16.mxu0 0
  %4343 = vmatpush1.bf16.msra.mxu0 %v3153
  %4344 = vmatprep.subr.bf16.mxu0 0
  %4345 = vmatpush1.bf16.msra.mxu0 %v3152
  %4346 = vmatprep.subr.bf16.mxu0 0
  %4347 = vmatpush1.bf16.msra.mxu0 %v3151
  %4348 = vmatprep.subr.bf16.mxu0 0
  %4349 = vmatpush1.bf16.msra.mxu0 %v3150
  %4350 = vmatprep.subr.bf16.mxu0 0
  %4351 = vmatpush2.bf16.msra.mxu0 %v3165
  %4352 = vmatprep.subr.bf16.mxu0 0
  %4353 = vmatpush2.bf16.msra.mxu0 %v3164
  %4354 = vmatprep.subr.bf16.mxu0 0
  %4355 = vmatpush2.bf16.msra.mxu0 %v3163
  %4356 = vmatprep.subr.bf16.mxu0 0
  %4357 = vmatpush2.bf16.msra.mxu0 %v3162
  %4358 = vmatprep.subr.bf16.mxu0 0
  %4359 = vmatpush2.bf16.msra.mxu0 %v3161
  %4360 = vmatprep.subr.bf16.mxu0 0
  %4361 = vmatpush2.bf16.msra.mxu0 %v3160
  %4362 = vmatprep.subr.bf16.mxu0 0
  %4363 = vmatpush2.bf16.msra.mxu0 %v3159
  %4364 = vmatprep.subr.bf16.mxu0 0
  %4365 = vmatpush2.bf16.msra.mxu0 %v3158
  %4366 = vmatprep.mubr.bf16.mxu0 %v1079
  %4367 = vmatmul.mubr.bf16.gmra.mxu0 %v1078
  %v4368 = vpop.f32.mrf.mxu0
  %v4369 = vadd.f32 %v4329, %v4368
  %v4370 = vpop.f32.mrf.mxu0
  %v4371 = vpop.f32.mrf.mxu0
  %v4372 = vpop.f32.mrf.mxu0
  %4373 = vdwg.mxu0
  %4374 = vmatprep.subr.bf16.mxu0 0
  %4375 = vmatpush1.bf16.msra.mxu0 %v3173
  %4376 = vmatprep.subr.bf16.mxu0 0
  %4377 = vmatpush1.bf16.msra.mxu0 %v3172
  %4378 = vmatprep.subr.bf16.mxu0 0
  %4379 = vmatpush1.bf16.msra.mxu0 %v3171
  %4380 = vmatprep.subr.bf16.mxu0 0
  %4381 = vmatpush1.bf16.msra.mxu0 %v3170
  %4382 = vmatprep.subr.bf16.mxu0 0
  %4383 = vmatpush1.bf16.msra.mxu0 %v3169
  %4384 = vmatprep.subr.bf16.mxu0 0
  %4385 = vmatpush1.bf16.msra.mxu0 %v3168
  %4386 = vmatprep.subr.bf16.mxu0 0
  %4387 = vmatpush1.bf16.msra.mxu0 %v3167
  %4388 = vmatprep.subr.bf16.mxu0 0
  %4389 = vmatpush1.bf16.msra.mxu0 %v3166
  %4390 = vmatprep.subr.bf16.mxu0 0
  %4391 = vmatpush2.bf16.msra.mxu0 %v3181
  %4392 = vmatprep.subr.bf16.mxu0 0
  %4393 = vmatpush2.bf16.msra.mxu0 %v3180
  %4394 = vmatprep.subr.bf16.mxu0 0
  %4395 = vmatpush2.bf16.msra.mxu0 %v3179
  %4396 = vmatprep.subr.bf16.mxu0 0
  %4397 = vmatpush2.bf16.msra.mxu0 %v3178
  %4398 = vmatprep.subr.bf16.mxu0 0
  %4399 = vmatpush2.bf16.msra.mxu0 %v3177
  %4400 = vmatprep.subr.bf16.mxu0 0
  %4401 = vmatpush2.bf16.msra.mxu0 %v3176
  %4402 = vmatprep.subr.bf16.mxu0 0
  %4403 = vmatpush2.bf16.msra.mxu0 %v3175
  %4404 = vmatprep.subr.bf16.mxu0 0
  %4405 = vmatpush2.bf16.msra.mxu0 %v3174
  %4406 = vmatprep.mubr.bf16.mxu0 %v1081
  %4407 = vmatmul.mubr.bf16.gmra.mxu0 %v1080
  %v4408 = vpop.f32.mrf.mxu0
  %v4409 = vadd.f32 %v4369, %v4408
  %v4410 = vpop.f32.mrf.mxu0
  %v4411 = vpop.f32.mrf.mxu0
  %v4412 = vpop.f32.mrf.mxu0
  %4413 = vdwg.mxu0
  %4414 = vmatprep.subr.bf16.mxu0 0
  %4415 = vmatpush1.bf16.msra.mxu0 %v3189
  %4416 = vmatprep.subr.bf16.mxu0 0
  %4417 = vmatpush1.bf16.msra.mxu0 %v3188
  %4418 = vmatprep.subr.bf16.mxu0 0
  %4419 = vmatpush1.bf16.msra.mxu0 %v3187
  %4420 = vmatprep.subr.bf16.mxu0 0
  %4421 = vmatpush1.bf16.msra.mxu0 %v3186
  %4422 = vmatprep.subr.bf16.mxu0 0
  %4423 = vmatpush1.bf16.msra.mxu0 %v3185
  %4424 = vmatprep.subr.bf16.mxu0 0
  %4425 = vmatpush1.bf16.msra.mxu0 %v3184
  %4426 = vmatprep.subr.bf16.mxu0 0
  %4427 = vmatpush1.bf16.msra.mxu0 %v3183
  %4428 = vmatprep.subr.bf16.mxu0 0
  %4429 = vmatpush1.bf16.msra.mxu0 %v3182
  %4430 = vmatprep.subr.bf16.mxu0 0
  %4431 = vmatpush2.bf16.msra.mxu0 %v3197
  %4432 = vmatprep.subr.bf16.mxu0 0
  %4433 = vmatpush2.bf16.msra.mxu0 %v3196
  %4434 = vmatprep.subr.bf16.mxu0 0
  %4435 = vmatpush2.bf16.msra.mxu0 %v3195
  %4436 = vmatprep.subr.bf16.mxu0 0
  %4437 = vmatpush2.bf16.msra.mxu0 %v3194
  %4438 = vmatprep.subr.bf16.mxu0 0
  %4439 = vmatpush2.bf16.msra.mxu0 %v3193
  %4440 = vmatprep.subr.bf16.mxu0 0
  %4441 = vmatpush2.bf16.msra.mxu0 %v3192
  %4442 = vmatprep.subr.bf16.mxu0 0
  %4443 = vmatpush2.bf16.msra.mxu0 %v3191
  %4444 = vmatprep.subr.bf16.mxu0 0
  %4445 = vmatpush2.bf16.msra.mxu0 %v3190
  %4446 = vmatprep.mubr.bf16.mxu0 %v1083
  %4447 = vmatmul.mubr.bf16.gmra.mxu0 %v1082
  %v4448 = vpop.f32.mrf.mxu0
  %v4449 = vadd.f32 %v4409, %v4448
  %v4450 = vpop.f32.mrf.mxu0
  %v4451 = vpop.f32.mrf.mxu0
  %v4452 = vpop.f32.mrf.mxu0
  %4453 = vdwg.mxu0
  %4454 = vmatprep.subr.bf16.mxu0 0
  %4455 = vmatpush1.bf16.msra.mxu0 %v3205
  %4456 = vmatprep.subr.bf16.mxu0 0
  %4457 = vmatpush1.bf16.msra.mxu0 %v3204
  %4458 = vmatprep.subr.bf16.mxu0 0
  %4459 = vmatpush1.bf16.msra.mxu0 %v3203
  %4460 = vmatprep.subr.bf16.mxu0 0
  %4461 = vmatpush1.bf16.msra.mxu0 %v3202
  %4462 = vmatprep.subr.bf16.mxu0 0
  %4463 = vmatpush1.bf16.msra.mxu0 %v3201
  %4464 = vmatprep.subr.bf16.mxu0 0
  %4465 = vmatpush1.bf16.msra.mxu0 %v3200
  %4466 = vmatprep.subr.bf16.mxu0 0
  %4467 = vmatpush1.bf16.msra.mxu0 %v3199
  %4468 = vmatprep.subr.bf16.mxu0 0
  %4469 = vmatpush1.bf16.msra.mxu0 %v3198
  %4470 = vmatprep.subr.bf16.mxu0 0
  %4471 = vmatpush2.bf16.msra.mxu0 %v3213
  %4472 = vmatprep.subr.bf16.mxu0 0
  %4473 = vmatpush2.bf16.msra.mxu0 %v3212
  %4474 = vmatprep.subr.bf16.mxu0 0
  %4475 = vmatpush2.bf16.msra.mxu0 %v3211
  %4476 = vmatprep.subr.bf16.mxu0 0
  %4477 = vmatpush2.bf16.msra.mxu0 %v3210
  %4478 = vmatprep.subr.bf16.mxu0 0
  %4479 = vmatpush2.bf16.msra.mxu0 %v3209
  %4480 = vmatprep.subr.bf16.mxu0 0
  %4481 = vmatpush2.bf16.msra.mxu0 %v3208
  %4482 = vmatprep.subr.bf16.mxu0 0
  %4483 = vmatpush2.bf16.msra.mxu0 %v3207
  %4484 = vmatprep.subr.bf16.mxu0 0
  %4485 = vmatpush2.bf16.msra.mxu0 %v3206
  %4486 = vmatprep.mubr.bf16.mxu0 %v1085
  %4487 = vmatmul.mubr.bf16.gmra.mxu0 %v1084
  %v4488 = vpop.f32.mrf.mxu0
  %v4489 = vadd.f32 %v4449, %v4488
  %v4490 = vpop.f32.mrf.mxu0
  %v4491 = vpop.f32.mrf.mxu0
  %v4492 = vpop.f32.mrf.mxu0
  %4493 = vdwg.mxu0
  %4494 = vmatprep.subr.bf16.mxu0 0
  %4495 = vmatpush1.bf16.msra.mxu0 %v3221
  %4496 = vmatprep.subr.bf16.mxu0 0
  %4497 = vmatpush1.bf16.msra.mxu0 %v3220
  %4498 = vmatprep.subr.bf16.mxu0 0
  %4499 = vmatpush1.bf16.msra.mxu0 %v3219
  %4500 = vmatprep.subr.bf16.mxu0 0
  %4501 = vmatpush1.bf16.msra.mxu0 %v3218
  %4502 = vmatprep.subr.bf16.mxu0 0
  %4503 = vmatpush1.bf16.msra.mxu0 %v3217
  %4504 = vmatprep.subr.bf16.mxu0 0
  %4505 = vmatpush1.bf16.msra.mxu0 %v3216
  %4506 = vmatprep.subr.bf16.mxu0 0
  %4507 = vmatpush1.bf16.msra.mxu0 %v3215
  %4508 = vmatprep.subr.bf16.mxu0 0
  %4509 = vmatpush1.bf16.msra.mxu0 %v3214
  %4510 = vmatprep.subr.bf16.mxu0 0
  %4511 = vmatpush2.bf16.msra.mxu0 %v3229
  %4512 = vmatprep.subr.bf16.mxu0 0
  %4513 = vmatpush2.bf16.msra.mxu0 %v3228
  %4514 = vmatprep.subr.bf16.mxu0 0
  %4515 = vmatpush2.bf16.msra.mxu0 %v3227
  %4516 = vmatprep.subr.bf16.mxu0 0
  %4517 = vmatpush2.bf16.msra.mxu0 %v3226
  %4518 = vmatprep.subr.bf16.mxu0 0
  %4519 = vmatpush2.bf16.msra.mxu0 %v3225
  %4520 = vmatprep.subr.bf16.mxu0 0
  %4521 = vmatpush2.bf16.msra.mxu0 %v3224
  %4522 = vmatprep.subr.bf16.mxu0 0
  %4523 = vmatpush2.bf16.msra.mxu0 %v3223
  %4524 = vmatprep.subr.bf16.mxu0 0
  %4525 = vmatpush2.bf16.msra.mxu0 %v3222
  %4526 = vmatprep.mubr.bf16.mxu0 %v1087
  %4527 = vmatmul.mubr.bf16.gmra.mxu0 %v1086
  %v4528 = vpop.f32.mrf.mxu0
  %v4529 = vadd.f32 %v4489, %v4528
  %v4530 = vpop.f32.mrf.mxu0
  %v4531 = vpop.f32.mrf.mxu0
  %v4532 = vpop.f32.mrf.mxu0
  %4533 = vdwg.mxu0
  %4534 = vmatprep.subr.bf16.mxu0 0
  %4535 = vmatpush1.bf16.msra.mxu0 %v3237
  %4536 = vmatprep.subr.bf16.mxu0 0
  %4537 = vmatpush1.bf16.msra.mxu0 %v3236
  %4538 = vmatprep.subr.bf16.mxu0 0
  %4539 = vmatpush1.bf16.msra.mxu0 %v3235
  %4540 = vmatprep.subr.bf16.mxu0 0
  %4541 = vmatpush1.bf16.msra.mxu0 %v3234
  %4542 = vmatprep.subr.bf16.mxu0 0
  %4543 = vmatpush1.bf16.msra.mxu0 %v3233
  %4544 = vmatprep.subr.bf16.mxu0 0
  %4545 = vmatpush1.bf16.msra.mxu0 %v3232
  %4546 = vmatprep.subr.bf16.mxu0 0
  %4547 = vmatpush1.bf16.msra.mxu0 %v3231
  %4548 = vmatprep.subr.bf16.mxu0 0
  %4549 = vmatpush1.bf16.msra.mxu0 %v3230
  %4550 = vmatprep.subr.bf16.mxu0 0
  %4551 = vmatpush2.bf16.msra.mxu0 %v3245
  %4552 = vmatprep.subr.bf16.mxu0 0
  %4553 = vmatpush2.bf16.msra.mxu0 %v3244
  %4554 = vmatprep.subr.bf16.mxu0 0
  %4555 = vmatpush2.bf16.msra.mxu0 %v3243
  %4556 = vmatprep.subr.bf16.mxu0 0
  %4557 = vmatpush2.bf16.msra.mxu0 %v3242
  %4558 = vmatprep.subr.bf16.mxu0 0
  %4559 = vmatpush2.bf16.msra.mxu0 %v3241
  %4560 = vmatprep.subr.bf16.mxu0 0
  %4561 = vmatpush2.bf16.msra.mxu0 %v3240
  %4562 = vmatprep.subr.bf16.mxu0 0
  %4563 = vmatpush2.bf16.msra.mxu0 %v3239
  %4564 = vmatprep.subr.bf16.mxu0 0
  %4565 = vmatpush2.bf16.msra.mxu0 %v3238
  %4566 = vmatprep.mubr.bf16.mxu0 %v1089
  %4567 = vmatmul.mubr.bf16.gmra.mxu0 %v1088
  %v4568 = vpop.f32.mrf.mxu0
  %v4569 = vadd.f32 %v4529, %v4568
  %v4570 = vpop.f32.mrf.mxu0
  %v4571 = vpop.f32.mrf.mxu0
  %v4572 = vpop.f32.mrf.mxu0
  %4573 = vdwg.mxu0
  %4574 = vmatprep.subr.bf16.mxu0 0
  %4575 = vmatpush1.bf16.msra.mxu0 %v3253
  %4576 = vmatprep.subr.bf16.mxu0 0
  %4577 = vmatpush1.bf16.msra.mxu0 %v3252
  %4578 = vmatprep.subr.bf16.mxu0 0
  %4579 = vmatpush1.bf16.msra.mxu0 %v3251
  %4580 = vmatprep.subr.bf16.mxu0 0
  %4581 = vmatpush1.bf16.msra.mxu0 %v3250
  %4582 = vmatprep.subr.bf16.mxu0 0
  %4583 = vmatpush1.bf16.msra.mxu0 %v3249
  %4584 = vmatprep.subr.bf16.mxu0 0
  %4585 = vmatpush1.bf16.msra.mxu0 %v3248
  %4586 = vmatprep.subr.bf16.mxu0 0
  %4587 = vmatpush1.bf16.msra.mxu0 %v3247
  %4588 = vmatprep.subr.bf16.mxu0 0
  %4589 = vmatpush1.bf16.msra.mxu0 %v3246
  %4590 = vmatprep.subr.bf16.mxu0 0
  %4591 = vmatpush2.bf16.msra.mxu0 %v3261
  %4592 = vmatprep.subr.bf16.mxu0 0
  %4593 = vmatpush2.bf16.msra.mxu0 %v3260
  %4594 = vmatprep.subr.bf16.mxu0 0
  %4595 = vmatpush2.bf16.msra.mxu0 %v3259
  %4596 = vmatprep.subr.bf16.mxu0 0
  %4597 = vmatpush2.bf16.msra.mxu0 %v3258
  %4598 = vmatprep.subr.bf16.mxu0 0
  %4599 = vmatpush2.bf16.msra.mxu0 %v3257
  %4600 = vmatprep.subr.bf16.mxu0 0
  %4601 = vmatpush2.bf16.msra.mxu0 %v3256
  %4602 = vmatprep.subr.bf16.mxu0 0
  %4603 = vmatpush2.bf16.msra.mxu0 %v3255
  %4604 = vmatprep.subr.bf16.mxu0 0
  %4605 = vmatpush2.bf16.msra.mxu0 %v3254
  %4606 = vmatprep.mubr.bf16.mxu0 %v1091
  %4607 = vmatmul.mubr.bf16.gmra.mxu0 %v1090
  %v4608 = vpop.f32.mrf.mxu0
  %v4609 = vadd.f32 %v4569, %v4608
  %v4610 = vpop.f32.mrf.mxu0
  %v4611 = vpop.f32.mrf.mxu0
  %v4612 = vpop.f32.mrf.mxu0
  %4613 = vdwg.mxu0
  %4614 = vmatprep.subr.bf16.mxu0 0
  %4615 = vmatpush1.bf16.msra.mxu0 %v3269
  %4616 = vmatprep.subr.bf16.mxu0 0
  %4617 = vmatpush1.bf16.msra.mxu0 %v3268
  %4618 = vmatprep.subr.bf16.mxu0 0
  %4619 = vmatpush1.bf16.msra.mxu0 %v3267
  %4620 = vmatprep.subr.bf16.mxu0 0
  %4621 = vmatpush1.bf16.msra.mxu0 %v3266
  %4622 = vmatprep.subr.bf16.mxu0 0
  %4623 = vmatpush1.bf16.msra.mxu0 %v3265
  %4624 = vmatprep.subr.bf16.mxu0 0
  %4625 = vmatpush1.bf16.msra.mxu0 %v3264
  %4626 = vmatprep.subr.bf16.mxu0 0
  %4627 = vmatpush1.bf16.msra.mxu0 %v3263
  %4628 = vmatprep.subr.bf16.mxu0 0
  %4629 = vmatpush1.bf16.msra.mxu0 %v3262
  %4630 = vmatprep.subr.bf16.mxu0 0
  %4631 = vmatpush2.bf16.msra.mxu0 %v3277
  %4632 = vmatprep.subr.bf16.mxu0 0
  %4633 = vmatpush2.bf16.msra.mxu0 %v3276
  %4634 = vmatprep.subr.bf16.mxu0 0
  %4635 = vmatpush2.bf16.msra.mxu0 %v3275
  %4636 = vmatprep.subr.bf16.mxu0 0
  %4637 = vmatpush2.bf16.msra.mxu0 %v3274
  %4638 = vmatprep.subr.bf16.mxu0 0
  %4639 = vmatpush2.bf16.msra.mxu0 %v3273
  %4640 = vmatprep.subr.bf16.mxu0 0
  %4641 = vmatpush2.bf16.msra.mxu0 %v3272
  %4642 = vmatprep.subr.bf16.mxu0 0
  %4643 = vmatpush2.bf16.msra.mxu0 %v3271
  %4644 = vmatprep.subr.bf16.mxu0 0
  %4645 = vmatpush2.bf16.msra.mxu0 %v3270
  %4646 = vmatprep.mubr.bf16.mxu0 %v1093
  %4647 = vmatmul.mubr.bf16.gmra.mxu0 %v1092
  %v4648 = vpop.f32.mrf.mxu0
  %v4649 = vadd.f32 %v4609, %v4648
  %v4650 = vpop.f32.mrf.mxu0
  %v4651 = vpop.f32.mrf.mxu0
  %v4652 = vpop.f32.mrf.mxu0
  %4653 = vdwg.mxu0
  %4654 = vmatprep.subr.bf16.mxu0 0
  %4655 = vmatpush1.bf16.msra.mxu0 %v3285
  %4656 = vmatprep.subr.bf16.mxu0 0
  %4657 = vmatpush1.bf16.msra.mxu0 %v3284
  %4658 = vmatprep.subr.bf16.mxu0 0
  %4659 = vmatpush1.bf16.msra.mxu0 %v3283
  %4660 = vmatprep.subr.bf16.mxu0 0
  %4661 = vmatpush1.bf16.msra.mxu0 %v3282
  %4662 = vmatprep.subr.bf16.mxu0 0
  %4663 = vmatpush1.bf16.msra.mxu0 %v3281
  %4664 = vmatprep.subr.bf16.mxu0 0
  %4665 = vmatpush1.bf16.msra.mxu0 %v3280
  %4666 = vmatprep.subr.bf16.mxu0 0
  %4667 = vmatpush1.bf16.msra.mxu0 %v3279
  %4668 = vmatprep.subr.bf16.mxu0 0
  %4669 = vmatpush1.bf16.msra.mxu0 %v3278
  %4670 = vmatprep.subr.bf16.mxu0 0
  %4671 = vmatpush2.bf16.msra.mxu0 %v3293
  %4672 = vmatprep.subr.bf16.mxu0 0
  %4673 = vmatpush2.bf16.msra.mxu0 %v3292
  %4674 = vmatprep.subr.bf16.mxu0 0
  %4675 = vmatpush2.bf16.msra.mxu0 %v3291
  %4676 = vmatprep.subr.bf16.mxu0 0
  %4677 = vmatpush2.bf16.msra.mxu0 %v3290
  %4678 = vmatprep.subr.bf16.mxu0 0
  %4679 = vmatpush2.bf16.msra.mxu0 %v3289
  %4680 = vmatprep.subr.bf16.mxu0 0
  %4681 = vmatpush2.bf16.msra.mxu0 %v3288
  %4682 = vmatprep.subr.bf16.mxu0 0
  %4683 = vmatpush2.bf16.msra.mxu0 %v3287
  %4684 = vmatprep.subr.bf16.mxu0 0
  %4685 = vmatpush2.bf16.msra.mxu0 %v3286
  %4686 = vmatprep.mubr.bf16.mxu0 %v1095
  %4687 = vmatmul.mubr.bf16.gmra.mxu0 %v1094
  %v4688 = vpop.f32.mrf.mxu0
  %v4689 = vadd.f32 %v4649, %v4688
  %v4690 = vpop.f32.mrf.mxu0
  %v4691 = vpop.f32.mrf.mxu0
  %v4692 = vpop.f32.mrf.mxu0
  %4693 = vdwg.mxu0
  %4694 = vmatprep.subr.bf16.mxu0 0
  %4695 = vmatpush1.bf16.msra.mxu0 %v3301
  %4696 = vmatprep.subr.bf16.mxu0 0
  %4697 = vmatpush1.bf16.msra.mxu0 %v3300
  %4698 = vmatprep.subr.bf16.mxu0 0
  %4699 = vmatpush1.bf16.msra.mxu0 %v3299
  %4700 = vmatprep.subr.bf16.mxu0 0
  %4701 = vmatpush1.bf16.msra.mxu0 %v3298
  %4702 = vmatprep.subr.bf16.mxu0 0
  %4703 = vmatpush1.bf16.msra.mxu0 %v3297
  %4704 = vmatprep.subr.bf16.mxu0 0
  %4705 = vmatpush1.bf16.msra.mxu0 %v3296
  %4706 = vmatprep.subr.bf16.mxu0 0
  %4707 = vmatpush1.bf16.msra.mxu0 %v3295
  %4708 = vmatprep.subr.bf16.mxu0 0
  %4709 = vmatpush1.bf16.msra.mxu0 %v3294
  %4710 = vmatprep.subr.bf16.mxu0 0
  %4711 = vmatpush2.bf16.msra.mxu0 %v3309
  %4712 = vmatprep.subr.bf16.mxu0 0
  %4713 = vmatpush2.bf16.msra.mxu0 %v3308
  %4714 = vmatprep.subr.bf16.mxu0 0
  %4715 = vmatpush2.bf16.msra.mxu0 %v3307
  %4716 = vmatprep.subr.bf16.mxu0 0
  %4717 = vmatpush2.bf16.msra.mxu0 %v3306
  %4718 = vmatprep.subr.bf16.mxu0 0
  %4719 = vmatpush2.bf16.msra.mxu0 %v3305
  %4720 = vmatprep.subr.bf16.mxu0 0
  %4721 = vmatpush2.bf16.msra.mxu0 %v3304
  %4722 = vmatprep.subr.bf16.mxu0 0
  %4723 = vmatpush2.bf16.msra.mxu0 %v3303
  %4724 = vmatprep.subr.bf16.mxu0 0
  %4725 = vmatpush2.bf16.msra.mxu0 %v3302
  %4726 = vmatprep.mubr.bf16.mxu0 %v1097
  %4727 = vmatmul.mubr.bf16.gmra.mxu0 %v1096
  %v4728 = vpop.f32.mrf.mxu0
  %v4729 = vadd.f32 %v4689, %v4728
  %v4730 = vpop.f32.mrf.mxu0
  %v4731 = vpop.f32.mrf.mxu0
  %v4732 = vpop.f32.mrf.mxu0
  %4733 = vdwg.mxu0
  %4734 = vmatprep.subr.bf16.mxu0 0
  %4735 = vmatpush1.bf16.msra.mxu0 %v3317
  %4736 = vmatprep.subr.bf16.mxu0 0
  %4737 = vmatpush1.bf16.msra.mxu0 %v3316
  %4738 = vmatprep.subr.bf16.mxu0 0
  %4739 = vmatpush1.bf16.msra.mxu0 %v3315
  %4740 = vmatprep.subr.bf16.mxu0 0
  %4741 = vmatpush1.bf16.msra.mxu0 %v3314
  %4742 = vmatprep.subr.bf16.mxu0 0
  %4743 = vmatpush1.bf16.msra.mxu0 %v3313
  %4744 = vmatprep.subr.bf16.mxu0 0
  %4745 = vmatpush1.bf16.msra.mxu0 %v3312
  %4746 = vmatprep.subr.bf16.mxu0 0
  %4747 = vmatpush1.bf16.msra.mxu0 %v3311
  %4748 = vmatprep.subr.bf16.mxu0 0
  %4749 = vmatpush1.bf16.msra.mxu0 %v3310
  %4750 = vmatprep.subr.bf16.mxu0 0
  %4751 = vmatpush2.bf16.msra.mxu0 %v3325
  %4752 = vmatprep.subr.bf16.mxu0 0
  %4753 = vmatpush2.bf16.msra.mxu0 %v3324
  %4754 = vmatprep.subr.bf16.mxu0 0
  %4755 = vmatpush2.bf16.msra.mxu0 %v3323
  %4756 = vmatprep.subr.bf16.mxu0 0
  %4757 = vmatpush2.bf16.msra.mxu0 %v3322
  %4758 = vmatprep.subr.bf16.mxu0 0
  %4759 = vmatpush2.bf16.msra.mxu0 %v3321
  %4760 = vmatprep.subr.bf16.mxu0 0
  %4761 = vmatpush2.bf16.msra.mxu0 %v3320
  %4762 = vmatprep.subr.bf16.mxu0 0
  %4763 = vmatpush2.bf16.msra.mxu0 %v3319
  %4764 = vmatprep.subr.bf16.mxu0 0
  %4765 = vmatpush2.bf16.msra.mxu0 %v3318
  %4766 = vmatprep.mubr.bf16.mxu0 %v1099
  %4767 = vmatmul.mubr.bf16.gmra.mxu0 %v1098
  %v4768 = vpop.f32.mrf.mxu0
  %v4769 = vadd.f32 %v4729, %v4768
  %v4770 = vpop.f32.mrf.mxu0
  %v4771 = vpop.f32.mrf.mxu0
  %v4772 = vpop.f32.mrf.mxu0
  %4773 = vdwg.mxu0
  %4774 = vmatprep.subr.bf16.mxu0 0
  %4775 = vmatpush1.bf16.msra.mxu0 %v3333
  %4776 = vmatprep.subr.bf16.mxu0 0
  %4777 = vmatpush1.bf16.msra.mxu0 %v3332
  %4778 = vmatprep.subr.bf16.mxu0 0
  %4779 = vmatpush1.bf16.msra.mxu0 %v3331
  %4780 = vmatprep.subr.bf16.mxu0 0
  %4781 = vmatpush1.bf16.msra.mxu0 %v3330
  %4782 = vmatprep.subr.bf16.mxu0 0
  %4783 = vmatpush1.bf16.msra.mxu0 %v3329
  %4784 = vmatprep.subr.bf16.mxu0 0
  %4785 = vmatpush1.bf16.msra.mxu0 %v3328
  %4786 = vmatprep.subr.bf16.mxu0 0
  %4787 = vmatpush1.bf16.msra.mxu0 %v3327
  %4788 = vmatprep.subr.bf16.mxu0 0
  %4789 = vmatpush1.bf16.msra.mxu0 %v3326
  %4790 = vmatprep.subr.bf16.mxu0 0
  %4791 = vmatpush2.bf16.msra.mxu0 %v3341
  %4792 = vmatprep.subr.bf16.mxu0 0
  %4793 = vmatpush2.bf16.msra.mxu0 %v3340
  %4794 = vmatprep.subr.bf16.mxu0 0
  %4795 = vmatpush2.bf16.msra.mxu0 %v3339
  %4796 = vmatprep.subr.bf16.mxu0 0
  %4797 = vmatpush2.bf16.msra.mxu0 %v3338
  %4798 = vmatprep.subr.bf16.mxu0 0
  %4799 = vmatpush2.bf16.msra.mxu0 %v3337
  %4800 = vmatprep.subr.bf16.mxu0 0
  %4801 = vmatpush2.bf16.msra.mxu0 %v3336
  %4802 = vmatprep.subr.bf16.mxu0 0
  %4803 = vmatpush2.bf16.msra.mxu0 %v3335
  %4804 = vmatprep.subr.bf16.mxu0 0
  %4805 = vmatpush2.bf16.msra.mxu0 %v3334
  %4806 = vmatprep.mubr.bf16.mxu0 %v1101
  %4807 = vmatmul.mubr.bf16.gmra.mxu0 %v1100
  %v4808 = vpop.f32.mrf.mxu0
  %v4809 = vadd.f32 %v4769, %v4808
  %v4810 = vpop.f32.mrf.mxu0
  %v4811 = vpop.f32.mrf.mxu0
  %v4812 = vpop.f32.mrf.mxu0
  %4813 = vdwg.mxu0
  %4814 = vmatprep.subr.bf16.mxu0 0
  %4815 = vmatpush1.bf16.msra.mxu0 %v3349
  %4816 = vmatprep.subr.bf16.mxu0 0
  %4817 = vmatpush1.bf16.msra.mxu0 %v3348
  %4818 = vmatprep.subr.bf16.mxu0 0
  %4819 = vmatpush1.bf16.msra.mxu0 %v3347
  %4820 = vmatprep.subr.bf16.mxu0 0
  %4821 = vmatpush1.bf16.msra.mxu0 %v3346
  %4822 = vmatprep.subr.bf16.mxu0 0
  %4823 = vmatpush1.bf16.msra.mxu0 %v3345
  %4824 = vmatprep.subr.bf16.mxu0 0
  %4825 = vmatpush1.bf16.msra.mxu0 %v3344
  %4826 = vmatprep.subr.bf16.mxu0 0
  %4827 = vmatpush1.bf16.msra.mxu0 %v3343
  %4828 = vmatprep.subr.bf16.mxu0 0
  %4829 = vmatpush1.bf16.msra.mxu0 %v3342
  %4830 = vmatprep.subr.bf16.mxu0 0
  %4831 = vmatpush2.bf16.msra.mxu0 %v3357
  %4832 = vmatprep.subr.bf16.mxu0 0
  %4833 = vmatpush2.bf16.msra.mxu0 %v3356
  %4834 = vmatprep.subr.bf16.mxu0 0
  %4835 = vmatpush2.bf16.msra.mxu0 %v3355
  %4836 = vmatprep.subr.bf16.mxu0 0
  %4837 = vmatpush2.bf16.msra.mxu0 %v3354
  %4838 = vmatprep.subr.bf16.mxu0 0
  %4839 = vmatpush2.bf16.msra.mxu0 %v3353
  %4840 = vmatprep.subr.bf16.mxu0 0
  %4841 = vmatpush2.bf16.msra.mxu0 %v3352
  %4842 = vmatprep.subr.bf16.mxu0 0
  %4843 = vmatpush2.bf16.msra.mxu0 %v3351
  %4844 = vmatprep.subr.bf16.mxu0 0
  %4845 = vmatpush2.bf16.msra.mxu0 %v3350
  %4846 = vmatprep.mubr.bf16.mxu0 %v1103
  %4847 = vmatmul.mubr.bf16.gmra.mxu0 %v1102
  %v4848 = vpop.f32.mrf.mxu0
  %v4849 = vadd.f32 %v4809, %v4848
  %v4850 = vpop.f32.mrf.mxu0
  %v4851 = vpop.f32.mrf.mxu0
  %v4852 = vpop.f32.mrf.mxu0
  %4853 = vdwg.mxu0
  %4854 = vmatprep.subr.bf16.mxu0 0
  %4855 = vmatpush1.bf16.msra.mxu0 %v3365
  %4856 = vmatprep.subr.bf16.mxu0 0
  %4857 = vmatpush1.bf16.msra.mxu0 %v3364
  %4858 = vmatprep.subr.bf16.mxu0 0
  %4859 = vmatpush1.bf16.msra.mxu0 %v3363
  %4860 = vmatprep.subr.bf16.mxu0 0
  %4861 = vmatpush1.bf16.msra.mxu0 %v3362
  %4862 = vmatprep.subr.bf16.mxu0 0
  %4863 = vmatpush1.bf16.msra.mxu0 %v3361
  %4864 = vmatprep.subr.bf16.mxu0 0
  %4865 = vmatpush1.bf16.msra.mxu0 %v3360
  %4866 = vmatprep.subr.bf16.mxu0 0
  %4867 = vmatpush1.bf16.msra.mxu0 %v3359
  %4868 = vmatprep.subr.bf16.mxu0 0
  %4869 = vmatpush1.bf16.msra.mxu0 %v3358
  %4870 = vmatprep.subr.bf16.mxu0 0
  %4871 = vmatpush2.bf16.msra.mxu0 %v3373
  %4872 = vmatprep.subr.bf16.mxu0 0
  %4873 = vmatpush2.bf16.msra.mxu0 %v3372
  %4874 = vmatprep.subr.bf16.mxu0 0
  %4875 = vmatpush2.bf16.msra.mxu0 %v3371
  %4876 = vmatprep.subr.bf16.mxu0 0
  %4877 = vmatpush2.bf16.msra.mxu0 %v3370
  %4878 = vmatprep.subr.bf16.mxu0 0
  %4879 = vmatpush2.bf16.msra.mxu0 %v3369
  %4880 = vmatprep.subr.bf16.mxu0 0
  %4881 = vmatpush2.bf16.msra.mxu0 %v3368
  %4882 = vmatprep.subr.bf16.mxu0 0
  %4883 = vmatpush2.bf16.msra.mxu0 %v3367
  %4884 = vmatprep.subr.bf16.mxu0 0
  %4885 = vmatpush2.bf16.msra.mxu0 %v3366
  %4886 = vmatprep.mubr.bf16.mxu0 %v1105
  %4887 = vmatmul.mubr.bf16.gmra.mxu0 %v1104
  %v4888 = vpop.f32.mrf.mxu0
  %v4889 = vadd.f32 %v4849, %v4888
  %v4890 = vpop.f32.mrf.mxu0
  %v4891 = vpop.f32.mrf.mxu0
  %v4892 = vpop.f32.mrf.mxu0
  %4893 = vdwg.mxu0
  %4894 = vmatprep.subr.bf16.mxu0 0
  %4895 = vmatpush1.bf16.msra.mxu0 %v3381
  %4896 = vmatprep.subr.bf16.mxu0 0
  %4897 = vmatpush1.bf16.msra.mxu0 %v3380
  %4898 = vmatprep.subr.bf16.mxu0 0
  %4899 = vmatpush1.bf16.msra.mxu0 %v3379
  %4900 = vmatprep.subr.bf16.mxu0 0
  %4901 = vmatpush1.bf16.msra.mxu0 %v3378
  %4902 = vmatprep.subr.bf16.mxu0 0
  %4903 = vmatpush1.bf16.msra.mxu0 %v3377
  %4904 = vmatprep.subr.bf16.mxu0 0
  %4905 = vmatpush1.bf16.msra.mxu0 %v3376
  %4906 = vmatprep.subr.bf16.mxu0 0
  %4907 = vmatpush1.bf16.msra.mxu0 %v3375
  %4908 = vmatprep.subr.bf16.mxu0 0
  %4909 = vmatpush1.bf16.msra.mxu0 %v3374
  %4910 = vmatprep.subr.bf16.mxu0 0
  %4911 = vmatpush2.bf16.msra.mxu0 %v3389
  %4912 = vmatprep.subr.bf16.mxu0 0
  %4913 = vmatpush2.bf16.msra.mxu0 %v3388
  %4914 = vmatprep.subr.bf16.mxu0 0
  %4915 = vmatpush2.bf16.msra.mxu0 %v3387
  %4916 = vmatprep.subr.bf16.mxu0 0
  %4917 = vmatpush2.bf16.msra.mxu0 %v3386
  %4918 = vmatprep.subr.bf16.mxu0 0
  %4919 = vmatpush2.bf16.msra.mxu0 %v3385
  %4920 = vmatprep.subr.bf16.mxu0 0
  %4921 = vmatpush2.bf16.msra.mxu0 %v3384
  %4922 = vmatprep.subr.bf16.mxu0 0
  %4923 = vmatpush2.bf16.msra.mxu0 %v3383
  %4924 = vmatprep.subr.bf16.mxu0 0
  %4925 = vmatpush2.bf16.msra.mxu0 %v3382
  %4926 = vmatprep.mubr.bf16.mxu0 %v1107
  %4927 = vmatmul.mubr.bf16.gmra.mxu0 %v1106
  %v4928 = vpop.f32.mrf.mxu0
  %v4929 = vadd.f32 %v4889, %v4928
  %v4930 = vpop.f32.mrf.mxu0
  %v4931 = vpop.f32.mrf.mxu0
  %v4932 = vpop.f32.mrf.mxu0
  %4933 = vdwg.mxu0
  %4934 = vmatprep.subr.bf16.mxu0 0
  %4935 = vmatpush1.bf16.msra.mxu0 %v3397
  %4936 = vmatprep.subr.bf16.mxu0 0
  %4937 = vmatpush1.bf16.msra.mxu0 %v3396
  %4938 = vmatprep.subr.bf16.mxu0 0
  %4939 = vmatpush1.bf16.msra.mxu0 %v3395
  %4940 = vmatprep.subr.bf16.mxu0 0
  %4941 = vmatpush1.bf16.msra.mxu0 %v3394
  %4942 = vmatprep.subr.bf16.mxu0 0
  %4943 = vmatpush1.bf16.msra.mxu0 %v3393
  %4944 = vmatprep.subr.bf16.mxu0 0
  %4945 = vmatpush1.bf16.msra.mxu0 %v3392
  %4946 = vmatprep.subr.bf16.mxu0 0
  %4947 = vmatpush1.bf16.msra.mxu0 %v3391
  %4948 = vmatprep.subr.bf16.mxu0 0
  %4949 = vmatpush1.bf16.msra.mxu0 %v3390
  %4950 = vmatprep.subr.bf16.mxu0 0
  %4951 = vmatpush2.bf16.msra.mxu0 %v3405
  %4952 = vmatprep.subr.bf16.mxu0 0
  %4953 = vmatpush2.bf16.msra.mxu0 %v3404
  %4954 = vmatprep.subr.bf16.mxu0 0
  %4955 = vmatpush2.bf16.msra.mxu0 %v3403
  %4956 = vmatprep.subr.bf16.mxu0 0
  %4957 = vmatpush2.bf16.msra.mxu0 %v3402
  %4958 = vmatprep.subr.bf16.mxu0 0
  %4959 = vmatpush2.bf16.msra.mxu0 %v3401
  %4960 = vmatprep.subr.bf16.mxu0 0
  %4961 = vmatpush2.bf16.msra.mxu0 %v3400
  %4962 = vmatprep.subr.bf16.mxu0 0
  %4963 = vmatpush2.bf16.msra.mxu0 %v3399
  %4964 = vmatprep.subr.bf16.mxu0 0
  %4965 = vmatpush2.bf16.msra.mxu0 %v3398
  %4966 = vmatprep.mubr.bf16.mxu0 %v1109
  %4967 = vmatmul.mubr.bf16.gmra.mxu0 %v1108
  %v4968 = vpop.f32.mrf.mxu0
  %v4969 = vadd.f32 %v4929, %v4968
  %v4970 = vpop.f32.mrf.mxu0
  %v4971 = vpop.f32.mrf.mxu0
  %v4972 = vpop.f32.mrf.mxu0
  %4973 = vdwg.mxu0
  %v4974 = vmax.f32 %v4969, 0.0
  %v4975 = vpack.c.bf16 %v4974, %v4974
  %v4976 = vld [vmem:[%s3] sm:$0xf]
  %v4977 = vld [vmem:[%s3 + $0x4] sm:$0xf]
  %v4978 = vld [vmem:[%s3 + $0x8] sm:$0xf]
  %v4979 = vld [vmem:[%s3 + $0xc] sm:$0xf]
  %v4980 = vld [vmem:[%s3 + $0x10] sm:$0xf]
  %v4981 = vld [vmem:[%s3 + $0x14] sm:$0xf]
  %v4982 = vld [vmem:[%s3 + $0x18] sm:$0xf]
  %v4983 = vld [vmem:[%s3 + $0x1c] sm:$0xf]
  %v4984 = vld [vmem:[%s3 + $0x20] sm:$0xf]
  %v4985 = vld [vmem:[%s3 + $0x24] sm:$0xf]
  %v4986 = vld [vmem:[%s3 + $0x28] sm:$0xf]
  %v4987 = vld [vmem:[%s3 + $0x2c] sm:$0xf]
  %v4988 = vld [vmem:[%s3 + $0x30] sm:$0xf]
  %v4989 = vld [vmem:[%s3 + $0x34] sm:$0xf]
  %v4990 = vld [vmem:[%s3 + $0x38] sm:$0xf]
  %v4991 = vld [vmem:[%s3 + $0x3c] sm:$0xf]
  %v4992 = vld [vmem:[%s4] sm:$0x1]
  %v4994 = vlaneseq
  %v4995 = vshrl.u32 %v4994, 7
  %v4996 = vsub.s32 0, %v4995
  %v4997 = vrot.slane %v4992, %v4996
  %v5015 = vunpack.c.l.b16 %v4976
  %v5016 = vunpack.c.l.b16 %v4977
  %v5017 = vunpack.c.l.b16 %v4978
  %v5018 = vunpack.c.l.b16 %v4979
  %v5019 = vunpack.c.l.b16 %v4980
  %v5020 = vunpack.c.l.b16 %v4981
  %v5021 = vunpack.c.l.b16 %v4982
  %v5022 = vunpack.c.l.b16 %v4983
  %v5023 = vunpack.c.l.b16 %v4984
  %v5024 = vunpack.c.l.b16 %v4985
  %v5025 = vunpack.c.l.b16 %v4986
  %v5026 = vunpack.c.l.b16 %v4987
  %v5027 = vunpack.c.l.b16 %v4988
  %v5028 = vunpack.c.l.b16 %v4989
  %v5029 = vunpack.c.l.b16 %v4990
  %v5030 = vunpack.c.l.b16 %v4991
  %v5031 = vpack.c.b16 %v5016, %v5015
  %v5032 = vpack.c.b16 %v5018, %v5017
  %v5033 = vpack.c.b16 %v5020, %v5019
  %v5034 = vpack.c.b16 %v5022, %v5021
  %v5035 = vpack.c.b16 %v5024, %v5023
  %v5036 = vpack.c.b16 %v5026, %v5025
  %v5037 = vpack.c.b16 %v5028, %v5027
  %v5038 = vpack.c.b16 %v5030, %v5029
  %5047 = vmatprep.subr.bf16.mxu0 0
  %5048 = vmatpush1.bf16.msra.mxu0 %v5038
  %5049 = vmatprep.subr.bf16.mxu0 0
  %5050 = vmatpush1.bf16.msra.mxu0 %v5037
  %5051 = vmatprep.subr.bf16.mxu0 0
  %5052 = vmatpush1.bf16.msra.mxu0 %v5036
  %5053 = vmatprep.subr.bf16.mxu0 0
  %5054 = vmatpush1.bf16.msra.mxu0 %v5035
  %5055 = vmatprep.subr.bf16.mxu0 0
  %5056 = vmatpush1.bf16.msra.mxu0 %v5034
  %5057 = vmatprep.subr.bf16.mxu0 0
  %5058 = vmatpush1.bf16.msra.mxu0 %v5033
  %5059 = vmatprep.subr.bf16.mxu0 0
  %5060 = vmatpush1.bf16.msra.mxu0 %v5032
  %5061 = vmatprep.subr.bf16.mxu0 0
  %5062 = vmatpush1.bf16.msra.mxu0 %v5031
  %5063 = vmatprep.subr.bf16.mxu0 0
  %5064 = vmatpush2.bf16.msra.mxu0 0
  %5065 = vmatprep.subr.bf16.mxu0 0
  %5066 = vmatpush2.bf16.msra.mxu0 0
  %5067 = vmatprep.subr.bf16.mxu0 0
  %5068 = vmatpush2.bf16.msra.mxu0 0
  %5069 = vmatprep.subr.bf16.mxu0 0
  %5070 = vmatpush2.bf16.msra.mxu0 0
  %5071 = vmatprep.subr.bf16.mxu0 0
  %5072 = vmatpush2.bf16.msra.mxu0 0
  %5073 = vmatprep.subr.bf16.mxu0 0
  %5074 = vmatpush2.bf16.msra.mxu0 0
  %5075 = vmatprep.subr.bf16.mxu0 0
  %5076 = vmatpush2.bf16.msra.mxu0 0
  %5077 = vmatprep.subr.bf16.mxu0 0
  %5078 = vmatpush2.bf16.msra.mxu0 0
  %5079 = vmatprep.mubr.bf16.mxu0 0
  %5080 = vmatmul.mubr.bf16.gmra.mxu0 %v4975
  %v5081 = vpop.f32.mrf.mxu0
  %v5082 = vadd.f32 %v4997, %v5081
  %v5083 = vpop.f32.mrf.mxu0
  %v5084 = vpop.f32.mrf.mxu0
  %v5085 = vpop.f32.mrf.mxu0
  %5086 = vdwg.mxu0
  %v5087 = vmax.f32 %v5082, 0.0
  %v5088 = vpack.c.bf16 %v5087, %v5087
  %v5089 = vld [vmem:[%s5] sm:$0xf]
  %v5090 = vld [vmem:[%s5 + $0x4] sm:$0xf]
  %v5091 = vld [vmem:[%s5 + $0x8] sm:$0xf]
  %v5092 = vld [vmem:[%s5 + $0xc] sm:$0xf]
  %v5093 = vld [vmem:[%s5 + $0x10] sm:$0xf]
  %v5094 = vld [vmem:[%s5 + $0x14] sm:$0xf]
  %v5095 = vld [vmem:[%s5 + $0x18] sm:$0xf]
  %v5096 = vld [vmem:[%s5 + $0x1c] sm:$0xf]
  %v5097 = vld [vmem:[%s5 + $0x20] sm:$0xf]
  %v5098 = vld [vmem:[%s5 + $0x24] sm:$0xf]
  %v5099 = vld [vmem:[%s5 + $0x28] sm:$0xf]
  %v5100 = vld [vmem:[%s5 + $0x2c] sm:$0xf]
  %v5101 = vld [vmem:[%s5 + $0x30] sm:$0xf]
  %v5102 = vld [vmem:[%s5 + $0x34] sm:$0xf]
  %v5103 = vld [vmem:[%s5 + $0x38] sm:$0xf]
  %v5104 = vld [vmem:[%s5 + $0x3c] sm:$0xf]
  %v5121 = vunpack.c.l.b16 %v5089
  %v5122 = vunpack.c.l.b16 %v5090
  %v5123 = vunpack.c.l.b16 %v5091
  %v5124 = vunpack.c.l.b16 %v5092
  %v5125 = vunpack.c.l.b16 %v5093
  %v5126 = vunpack.c.l.b16 %v5094
  %v5127 = vunpack.c.l.b16 %v5095
  %v5128 = vunpack.c.l.b16 %v5096
  %v5129 = vunpack.c.l.b16 %v5097
  %v5130 = vunpack.c.l.b16 %v5098
  %v5131 = vunpack.c.l.b16 %v5099
  %v5132 = vunpack.c.l.b16 %v5100
  %v5133 = vunpack.c.l.b16 %v5101
  %v5134 = vunpack.c.l.b16 %v5102
  %v5135 = vunpack.c.l.b16 %v5103
  %v5136 = vunpack.c.l.b16 %v5104
  %v5137 = vpack.c.b16 %v5122, %v5121
  %v5138 = vpack.c.b16 %v5124, %v5123
  %v5139 = vpack.c.b16 %v5126, %v5125
  %v5140 = vpack.c.b16 %v5128, %v5127
  %v5141 = vpack.c.b16 %v5130, %v5129
  %v5142 = vpack.c.b16 %v5132, %v5131
  %v5143 = vpack.c.b16 %v5134, %v5133
  %v5144 = vpack.c.b16 %v5136, %v5135
  %5153 = vmatprep.subr.bf16.mxu0 0
  %5154 = vmatpush1.bf16.msra.mxu0 %v5144
  %5155 = vmatprep.subr.bf16.mxu0 0
  %5156 = vmatpush1.bf16.msra.mxu0 %v5143
  %5157 = vmatprep.subr.bf16.mxu0 0
  %5158 = vmatpush1.bf16.msra.mxu0 %v5142
  %5159 = vmatprep.subr.bf16.mxu0 0
  %5160 = vmatpush1.bf16.msra.mxu0 %v5141
  %5161 = vmatprep.subr.bf16.mxu0 0
  %5162 = vmatpush1.bf16.msra.mxu0 %v5140
  %5163 = vmatprep.subr.bf16.mxu0 0
  %5164 = vmatpush1.bf16.msra.mxu0 %v5139
  %5165 = vmatprep.subr.bf16.mxu0 0
  %5166 = vmatpush1.bf16.msra.mxu0 %v5138
  %5167 = vmatprep.subr.bf16.mxu0 0
  %5168 = vmatpush1.bf16.msra.mxu0 %v5137
  %5169 = vmatprep.subr.bf16.mxu0 0
  %5170 = vmatpush2.bf16.msra.mxu0 0
  %5171 = vmatprep.subr.bf16.mxu0 0
  %5172 = vmatpush2.bf16.msra.mxu0 0
  %5173 = vmatprep.subr.bf16.mxu0 0
  %5174 = vmatpush2.bf16.msra.mxu0 0
  %5175 = vmatprep.subr.bf16.mxu0 0
  %5176 = vmatpush2.bf16.msra.mxu0 0
  %5177 = vmatprep.subr.bf16.mxu0 0
  %5178 = vmatpush2.bf16.msra.mxu0 0
  %5179 = vmatprep.subr.bf16.mxu0 0
  %5180 = vmatpush2.bf16.msra.mxu0 0
  %5181 = vmatprep.subr.bf16.mxu0 0
  %5182 = vmatpush2.bf16.msra.mxu0 0
  %5183 = vmatprep.subr.bf16.mxu0 0
  %5184 = vmatpush2.bf16.msra.mxu0 0
  %5185 = vmatprep.mubr.bf16.mxu0 0
  %5186 = vmatmul.mubr.bf16.gmra.mxu0 %v5088
  %v5187 = vpop.f32.mrf.mxu0
  %v5188 = vadd.f32 0.0, %v5187
  %v5189 = vpop.f32.mrf.mxu0
  %v5190 = vpop.f32.mrf.mxu0
  %v5191 = vpop.f32.mrf.mxu0
  %5192 = vdwg.mxu0
  %v5193 = vmax.f32 %v5188, 0.0
  %v5194 = vpack.c.bf16 %v5193, %v5193
  %v5195 = vld [vmem:[%s6] sm:$0xf]
  %v5196 = vld [vmem:[%s6 + $0x4] sm:$0xf]
  %v5197 = vld [vmem:[%s6 + $0x8] sm:$0xf]
  %v5198 = vld [vmem:[%s6 + $0xc] sm:$0xf]
  %v5199 = vld [vmem:[%s6 + $0x10] sm:$0xf]
  %v5200 = vld [vmem:[%s6 + $0x14] sm:$0xf]
  %v5201 = vld [vmem:[%s6 + $0x18] sm:$0xf]
  %v5202 = vld [vmem:[%s6 + $0x1c] sm:$0xf]
  %v5203 = vld [vmem:[%s6 + $0x20] sm:$0xf]
  %v5204 = vld [vmem:[%s6 + $0x24] sm:$0xf]
  %v5205 = vld [vmem:[%s6 + $0x28] sm:$0xf]
  %v5206 = vld [vmem:[%s6 + $0x2c] sm:$0xf]
  %v5207 = vld [vmem:[%s6 + $0x30] sm:$0xf]
  %v5208 = vld [vmem:[%s6 + $0x34] sm:$0xf]
  %v5209 = vld [vmem:[%s6 + $0x38] sm:$0xf]
  %v5210 = vld [vmem:[%s6 + $0x3c] sm:$0xf]
  %v5227 = vunpack.c.l.b16 %v5195
  %v5228 = vunpack.c.l.b16 %v5196
  %v5229 = vunpack.c.l.b16 %v5197
  %v5230 = vunpack.c.l.b16 %v5198
  %v5231 = vunpack.c.l.b16 %v5199
  %v5232 = vunpack.c.l.b16 %v5200
  %v5233 = vunpack.c.l.b16 %v5201
  %v5234 = vunpack.c.l.b16 %v5202
  %v5235 = vunpack.c.l.b16 %v5203
  %v5236 = vunpack.c.l.b16 %v5204
  %v5237 = vunpack.c.l.b16 %v5205
  %v5238 = vunpack.c.l.b16 %v5206
  %v5239 = vunpack.c.l.b16 %v5207
  %v5240 = vunpack.c.l.b16 %v5208
  %v5241 = vunpack.c.l.b16 %v5209
  %v5242 = vunpack.c.l.b16 %v5210
  %v5243 = vpack.c.b16 %v5228, %v5227
  %v5244 = vpack.c.b16 %v5230, %v5229
  %v5245 = vpack.c.b16 %v5232, %v5231
  %v5246 = vpack.c.b16 %v5234, %v5233
  %v5247 = vpack.c.b16 %v5236, %v5235
  %v5248 = vpack.c.b16 %v5238, %v5237
  %v5249 = vpack.c.b16 %v5240, %v5239
  %v5250 = vpack.c.b16 %v5242, %v5241
  %5259 = vmatprep.subr.bf16.mxu0 0
  %5260 = vmatpush1.bf16.msra.mxu0 %v5250
  %5261 = vmatprep.subr.bf16.mxu0 0
  %5262 = vmatpush1.bf16.msra.mxu0 %v5249
  %5263 = vmatprep.subr.bf16.mxu0 0
  %5264 = vmatpush1.bf16.msra.mxu0 %v5248
  %5265 = vmatprep.subr.bf16.mxu0 0
  %5266 = vmatpush1.bf16.msra.mxu0 %v5247
  %5267 = vmatprep.subr.bf16.mxu0 0
  %5268 = vmatpush1.bf16.msra.mxu0 %v5246
  %5269 = vmatprep.subr.bf16.mxu0 0
  %5270 = vmatpush1.bf16.msra.mxu0 %v5245
  %5271 = vmatprep.subr.bf16.mxu0 0
  %5272 = vmatpush1.bf16.msra.mxu0 %v5244
  %5273 = vmatprep.subr.bf16.mxu0 0
  %5274 = vmatpush1.bf16.msra.mxu0 %v5243
  %5275 = vmatprep.subr.bf16.mxu0 0
  %5276 = vmatpush2.bf16.msra.mxu0 0
  %5277 = vmatprep.subr.bf16.mxu0 0
  %5278 = vmatpush2.bf16.msra.mxu0 0
  %5279 = vmatprep.subr.bf16.mxu0 0
  %5280 = vmatpush2.bf16.msra.mxu0 0
  %5281 = vmatprep.subr.bf16.mxu0 0
  %5282 = vmatpush2.bf16.msra.mxu0 0
  %5283 = vmatprep.subr.bf16.mxu0 0
  %5284 = vmatpush2.bf16.msra.mxu0 0
  %5285 = vmatprep.subr.bf16.mxu0 0
  %5286 = vmatpush2.bf16.msra.mxu0 0
  %5287 = vmatprep.subr.bf16.mxu0 0
  %5288 = vmatpush2.bf16.msra.mxu0 0
  %5289 = vmatprep.subr.bf16.mxu0 0
  %5290 = vmatpush2.bf16.msra.mxu0 0
  %5291 = vmatprep.mubr.bf16.mxu0 0
  %5292 = vmatmul.mubr.bf16.gmra.mxu0 %v5194
  %v5293 = vpop.f32.mrf.mxu0
  %v5294 = vadd.f32 0.0, %v5293
  %v5295 = vpop.f32.mrf.mxu0
  %v5296 = vpop.f32.mrf.mxu0
  %v5297 = vpop.f32.mrf.mxu0
  %5298 = vdwg.mxu0
  %v5299 = vadd.f32 %v5082, %v5294
  %v5300 = vmax.f32 %v5299, 0.0
  %v5301 = vpack.c.bf16 %v5300, %v5300
  %v5302 = vld [vmem:[%s7] sm:$0xf]
  %v5303 = vld [vmem:[%s7 + $0x4] sm:$0xf]
  %v5304 = vld [vmem:[%s7 + $0x8] sm:$0xf]
  %v5305 = vld [vmem:[%s7 + $0xc] sm:$0xf]
  %v5306 = vld [vmem:[%s7 + $0x10] sm:$0xf]
  %v5307 = vld [vmem:[%s7 + $0x14] sm:$0xf]
  %v5308 = vld [vmem:[%s7 + $0x18] sm:$0xf]
  %v5309 = vld [vmem:[%s7 + $0x1c] sm:$0xf]
  %v5310 = vld [vmem:[%s7 + $0x20] sm:$0xf]
  %v5311 = vld [vmem:[%s7 + $0x24] sm:$0xf]
  %v5312 = vld [vmem:[%s7 + $0x28] sm:$0xf]
  %v5313 = vld [vmem:[%s7 + $0x2c] sm:$0xf]
  %v5314 = vld [vmem:[%s7 + $0x30] sm:$0xf]
  %v5315 = vld [vmem:[%s7 + $0x34] sm:$0xf]
  %v5316 = vld [vmem:[%s7 + $0x38] sm:$0xf]
  %v5317 = vld [vmem:[%s7 + $0x3c] sm:$0xf]
  %v5334 = vunpack.c.l.b16 %v5302
  %v5335 = vunpack.c.l.b16 %v5303
  %v5336 = vunpack.c.l.b16 %v5304
  %v5337 = vunpack.c.l.b16 %v5305
  %v5338 = vunpack.c.l.b16 %v5306
  %v5339 = vunpack.c.l.b16 %v5307
  %v5340 = vunpack.c.l.b16 %v5308
  %v5341 = vunpack.c.l.b16 %v5309
  %v5342 = vunpack.c.l.b16 %v5310
  %v5343 = vunpack.c.l.b16 %v5311
  %v5344 = vunpack.c.l.b16 %v5312
  %v5345 = vunpack.c.l.b16 %v5313
  %v5346 = vunpack.c.l.b16 %v5314
  %v5347 = vunpack.c.l.b16 %v5315
  %v5348 = vunpack.c.l.b16 %v5316
  %v5349 = vunpack.c.l.b16 %v5317
  %v5350 = vpack.c.b16 %v5335, %v5334
  %v5351 = vpack.c.b16 %v5337, %v5336
  %v5352 = vpack.c.b16 %v5339, %v5338
  %v5353 = vpack.c.b16 %v5341, %v5340
  %v5354 = vpack.c.b16 %v5343, %v5342
  %v5355 = vpack.c.b16 %v5345, %v5344
  %v5356 = vpack.c.b16 %v5347, %v5346
  %v5357 = vpack.c.b16 %v5349, %v5348
  %5366 = vmatprep.subr.bf16.mxu0 0
  %5367 = vmatpush1.bf16.msra.mxu0 %v5357
  %5368 = vmatprep.subr.bf16.mxu0 0
  %5369 = vmatpush1.bf16.msra.mxu0 %v5356
  %5370 = vmatprep.subr.bf16.mxu0 0
  %5371 = vmatpush1.bf16.msra.mxu0 %v5355
  %5372 = vmatprep.subr.bf16.mxu0 0
  %5373 = vmatpush1.bf16.msra.mxu0 %v5354
  %5374 = vmatprep.subr.bf16.mxu0 0
  %5375 = vmatpush1.bf16.msra.mxu0 %v5353
  %5376 = vmatprep.subr.bf16.mxu0 0
  %5377 = vmatpush1.bf16.msra.mxu0 %v5352
  %5378 = vmatprep.subr.bf16.mxu0 0
  %5379 = vmatpush1.bf16.msra.mxu0 %v5351
  %5380 = vmatprep.subr.bf16.mxu0 0
  %5381 = vmatpush1.bf16.msra.mxu0 %v5350
  %5382 = vmatprep.subr.bf16.mxu0 0
  %5383 = vmatpush2.bf16.msra.mxu0 0
  %5384 = vmatprep.subr.bf16.mxu0 0
  %5385 = vmatpush2.bf16.msra.mxu0 0
  %5386 = vmatprep.subr.bf16.mxu0 0
  %5387 = vmatpush2.bf16.msra.mxu0 0
  %5388 = vmatprep.subr.bf16.mxu0 0
  %5389 = vmatpush2.bf16.msra.mxu0 0
  %5390 = vmatprep.subr.bf16.mxu0 0
  %5391 = vmatpush2.bf16.msra.mxu0 0
  %5392 = vmatprep.subr.bf16.mxu0 0
  %5393 = vmatpush2.bf16.msra.mxu0 0
  %5394 = vmatprep.subr.bf16.mxu0 0
  %5395 = vmatpush2.bf16.msra.mxu0 0
  %5396 = vmatprep.subr.bf16.mxu0 0
  %5397 = vmatpush2.bf16.msra.mxu0 0
  %5398 = vmatprep.mubr.bf16.mxu0 0
  %5399 = vmatmul.mubr.bf16.gmra.mxu0 %v5301
  %v5400 = vpop.f32.mrf.mxu0
  %v5401 = vadd.f32 0.0, %v5400
  %v5402 = vpop.f32.mrf.mxu0
  %v5403 = vpop.f32.mrf.mxu0
  %v5404 = vpop.f32.mrf.mxu0
  %5405 = vdwg.mxu0
  %v5406 = vmax.f32 %v5401, 0.0
  %v5407 = vpack.c.bf16 %v5406, %v5406
  %v5408 = vld [vmem:[%s8] sm:$0xf]
  %v5409 = vld [vmem:[%s8 + $0x4] sm:$0xf]
  %v5410 = vld [vmem:[%s8 + $0x8] sm:$0xf]
  %v5411 = vld [vmem:[%s8 + $0xc] sm:$0xf]
  %v5412 = vld [vmem:[%s8 + $0x10] sm:$0xf]
  %v5413 = vld [vmem:[%s8 + $0x14] sm:$0xf]
  %v5414 = vld [vmem:[%s8 + $0x18] sm:$0xf]
  %v5415 = vld [vmem:[%s8 + $0x1c] sm:$0xf]
  %v5416 = vld [vmem:[%s8 + $0x20] sm:$0xf]
  %v5417 = vld [vmem:[%s8 + $0x24] sm:$0xf]
  %v5418 = vld [vmem:[%s8 + $0x28] sm:$0xf]
  %v5419 = vld [vmem:[%s8 + $0x2c] sm:$0xf]
  %v5420 = vld [vmem:[%s8 + $0x30] sm:$0xf]
  %v5421 = vld [vmem:[%s8 + $0x34] sm:$0xf]
  %v5422 = vld [vmem:[%s8 + $0x38] sm:$0xf]
  %v5423 = vld [vmem:[%s8 + $0x3c] sm:$0xf]
  %v5440 = vunpack.c.l.b16 %v5408
  %v5441 = vunpack.c.l.b16 %v5409
  %v5442 = vunpack.c.l.b16 %v5410
  %v5443 = vunpack.c.l.b16 %v5411
  %v5444 = vunpack.c.l.b16 %v5412
  %v5445 = vunpack.c.l.b16 %v5413
  %v5446 = vunpack.c.l.b16 %v5414
  %v5447 = vunpack.c.l.b16 %v5415
  %v5448 = vunpack.c.l.b16 %v5416
  %v5449 = vunpack.c.l.b16 %v5417
  %v5450 = vunpack.c.l.b16 %v5418
  %v5451 = vunpack.c.l.b16 %v5419
  %v5452 = vunpack.c.l.b16 %v5420
  %v5453 = vunpack.c.l.b16 %v5421
  %v5454 = vunpack.c.l.b16 %v5422
  %v5455 = vunpack.c.l.b16 %v5423
  %v5456 = vpack.c.b16 %v5441, %v5440
  %v5457 = vpack.c.b16 %v5443, %v5442
  %v5458 = vpack.c.b16 %v5445, %v5444
  %v5459 = vpack.c.b16 %v5447, %v5446
  %v5460 = vpack.c.b16 %v5449, %v5448
  %v5461 = vpack.c.b16 %v5451, %v5450
  %v5462 = vpack.c.b16 %v5453, %v5452
  %v5463 = vpack.c.b16 %v5455, %v5454
  %5472 = vmatprep.subr.bf16.mxu0 0
  %5473 = vmatpush1.bf16.msra.mxu0 %v5463
  %5474 = vmatprep.subr.bf16.mxu0 0
  %5475 = vmatpush1.bf16.msra.mxu0 %v5462
  %5476 = vmatprep.subr.bf16.mxu0 0
  %5477 = vmatpush1.bf16.msra.mxu0 %v5461
  %5478 = vmatprep.subr.bf16.mxu0 0
  %5479 = vmatpush1.bf16.msra.mxu0 %v5460
  %5480 = vmatprep.subr.bf16.mxu0 0
  %5481 = vmatpush1.bf16.msra.mxu0 %v5459
  %5482 = vmatprep.subr.bf16.mxu0 0
  %5483 = vmatpush1.bf16.msra.mxu0 %v5458
  %5484 = vmatprep.subr.bf16.mxu0 0
  %5485 = vmatpush1.bf16.msra.mxu0 %v5457
  %5486 = vmatprep.subr.bf16.mxu0 0
  %5487 = vmatpush1.bf16.msra.mxu0 %v5456
  %5488 = vmatprep.subr.bf16.mxu0 0
  %5489 = vmatpush2.bf16.msra.mxu0 0
  %5490 = vmatprep.subr.bf16.mxu0 0
  %5491 = vmatpush2.bf16.msra.mxu0 0
  %5492 = vmatprep.subr.bf16.mxu0 0
  %5493 = vmatpush2.bf16.msra.mxu0 0
  %5494 = vmatprep.subr.bf16.mxu0 0
  %5495 = vmatpush2.bf16.msra.mxu0 0
  %5496 = vmatprep.subr.bf16.mxu0 0
  %5497 = vmatpush2.bf16.msra.mxu0 0
  %5498 = vmatprep.subr.bf16.mxu0 0
  %5499 = vmatpush2.bf16.msra.mxu0 0
  %5500 = vmatprep.subr.bf16.mxu0 0
  %5501 = vmatpush2.bf16.msra.mxu0 0
  %5502 = vmatprep.subr.bf16.mxu0 0
  %5503 = vmatpush2.bf16.msra.mxu0 0
  %5504 = vmatprep.mubr.bf16.mxu0 0
  %5505 = vmatmul.mubr.bf16.gmra.mxu0 %v5407
  %v5506 = vpop.f32.mrf.mxu0
  %v5507 = vadd.f32 0.0, %v5506
  %v5508 = vpop.f32.mrf.mxu0
  %v5509 = vpop.f32.mrf.mxu0
  %v5510 = vpop.f32.mrf.mxu0
  %5511 = vdwg.mxu0
  %v5512 = vadd.f32 %v5299, %v5507
  %v5513 = vmax.f32 %v5512, 0.0
  %v5514 = vpack.c.bf16 %v5513, %v5513
  %v5515 = vld [vmem:[%s9] sm:$0xf]
  %v5516 = vld [vmem:[%s9 + $0x4] sm:$0xf]
  %v5517 = vld [vmem:[%s9 + $0x8] sm:$0xf]
  %v5518 = vld [vmem:[%s9 + $0xc] sm:$0xf]
  %v5519 = vld [vmem:[%s9 + $0x10] sm:$0xf]
  %v5520 = vld [vmem:[%s9 + $0x14] sm:$0xf]
  %v5521 = vld [vmem:[%s9 + $0x18] sm:$0xf]
  %v5522 = vld [vmem:[%s9 + $0x1c] sm:$0xf]
  %v5523 = vld [vmem:[%s9 + $0x20] sm:$0xf]
  %v5524 = vld [vmem:[%s9 + $0x24] sm:$0xf]
  %v5525 = vld [vmem:[%s9 + $0x28] sm:$0xf]
  %v5526 = vld [vmem:[%s9 + $0x2c] sm:$0xf]
  %v5527 = vld [vmem:[%s9 + $0x30] sm:$0xf]
  %v5528 = vld [vmem:[%s9 + $0x34] sm:$0xf]
  %v5529 = vld [vmem:[%s9 + $0x38] sm:$0xf]
  %v5530 = vld [vmem:[%s9 + $0x3c] sm:$0xf]
  %v5531 = vld [vmem:[%s10] sm:$0x1]
  %v5533 = vlaneseq
  %v5534 = vshrl.u32 %v5533, 7
  %v5535 = vsub.s32 0, %v5534
  %v5536 = vrot.slane %v5531, %v5535
  %v5554 = vunpack.c.l.b16 %v5515
  %v5555 = vunpack.c.l.b16 %v5516
  %v5556 = vunpack.c.l.b16 %v5517
  %v5557 = vunpack.c.l.b16 %v5518
  %v5558 = vunpack.c.l.b16 %v5519
  %v5559 = vunpack.c.l.b16 %v5520
  %v5560 = vunpack.c.l.b16 %v5521
  %v5561 = vunpack.c.l.b16 %v5522
  %v5562 = vunpack.c.l.b16 %v5523
  %v5563 = vunpack.c.l.b16 %v5524
  %v5564 = vunpack.c.l.b16 %v5525
  %v5565 = vunpack.c.l.b16 %v5526
  %v5566 = vunpack.c.l.b16 %v5527
  %v5567 = vunpack.c.l.b16 %v5528
  %v5568 = vunpack.c.l.b16 %v5529
  %v5569 = vunpack.c.l.b16 %v5530
  %v5570 = vpack.c.b16 %v5555, %v5554
  %v5571 = vpack.c.b16 %v5557, %v5556
  %v5572 = vpack.c.b16 %v5559, %v5558
  %v5573 = vpack.c.b16 %v5561, %v5560
  %v5574 = vpack.c.b16 %v5563, %v5562
  %v5575 = vpack.c.b16 %v5565, %v5564
  %v5576 = vpack.c.b16 %v5567, %v5566
  %v5577 = vpack.c.b16 %v5569, %v5568
  %5586 = vmatprep.subr.bf16.mxu0 0
  %5587 = vmatpush1.bf16.msra.mxu0 %v5577
  %5588 = vmatprep.subr.bf16.mxu0 0
  %5589 = vmatpush1.bf16.msra.mxu0 %v5576
  %5590 = vmatprep.subr.bf16.mxu0 0
  %5591 = vmatpush1.bf16.msra.mxu0 %v5575
  %5592 = vmatprep.subr.bf16.mxu0 0
  %5593 = vmatpush1.bf16.msra.mxu0 %v5574
  %5594 = vmatprep.subr.bf16.mxu0 0
  %5595 = vmatpush1.bf16.msra.mxu0 %v5573
  %5596 = vmatprep.subr.bf16.mxu0 0
  %5597 = vmatpush1.bf16.msra.mxu0 %v5572
  %5598 = vmatprep.subr.bf16.mxu0 0
  %5599 = vmatpush1.bf16.msra.mxu0 %v5571
  %5600 = vmatprep.subr.bf16.mxu0 0
  %5601 = vmatpush1.bf16.msra.mxu0 %v5570
  %5602 = vmatprep.subr.bf16.mxu0 0
  %5603 = vmatpush2.bf16.msra.mxu0 0
  %5604 = vmatprep.subr.bf16.mxu0 0
  %5605 = vmatpush2.bf16.msra.mxu0 0
  %5606 = vmatprep.subr.bf16.mxu0 0
  %5607 = vmatpush2.bf16.msra.mxu0 0
  %5608 = vmatprep.subr.bf16.mxu0 0
  %5609 = vmatpush2.bf16.msra.mxu0 0
  %5610 = vmatprep.subr.bf16.mxu0 0
  %5611 = vmatpush2.bf16.msra.mxu0 0
  %5612 = vmatprep.subr.bf16.mxu0 0
  %5613 = vmatpush2.bf16.msra.mxu0 0
  %5614 = vmatprep.subr.bf16.mxu0 0
  %5615 = vmatpush2.bf16.msra.mxu0 0
  %5616 = vmatprep.subr.bf16.mxu0 0
  %5617 = vmatpush2.bf16.msra.mxu0 0
  %5618 = vmatprep.mubr.bf16.mxu0 0
  %5619 = vmatmul.mubr.bf16.gmra.mxu0 %v5514
  %v5620 = vpop.f32.mrf.mxu0
  %v5621 = vadd.f32 %v5536, %v5620
  %v5622 = vpop.f32.mrf.mxu0
  %v5623 = vpop.f32.mrf.mxu0
  %v5624 = vpop.f32.mrf.mxu0
  %5625 = vdwg.mxu0
  %5626 = vst [vmem:[%s11] sm:$0xff] %v5621
  // Predicated region
  $region46: #{encoder_forward.3} parent=0 // pred_check
    _
  $region47: #{encoder_forward.3} parent=0 // pred_check_branch
    %5628 = sbr.rel (0) target = $region49
  $region48: #{encoder_forward.3} parent=0 // pred_region
    _
  $region49: #{encoder_forward.3} parent=0 // pred_fallthru
    _
  // Predicated region
  $region50: #{encoder_forward.3} parent=0 // pred_check
    _
  $region51: #{encoder_forward.3} parent=0 // pred_check_branch
    %5630 = sbr.rel (0) target = $region53
  $region52: #{encoder_forward.3} parent=0 // pred_region
    _
  $region53: #{encoder_forward.3} parent=0 // pred_fallthru
    _

</llo_original>
